<compile_context>
chip_gen: v6e
topology: v6e:2x2x1
jax: 0.10.0
libtpu: 0.0.40
codegen_flags: <defaults>
</compile_context>

<pallas_src>
import functools

import numpy as np
import jax
import jax.numpy as jnp
from jax.experimental import pallas as pl
from jax.experimental.pallas import tpu as pltpu


# tap order t = ky*3 + kx, offsets (dy, dx) = (ky-1, kx-1)
_TAPS = tuple((dy - 1, dx - 1) for dy in range(3) for dx in range(3))

_COMPILER_PARAMS = pltpu.CompilerParams(
    dimension_semantics=("parallel",),
    vmem_limit_bytes=32 * 1024 * 1024,
)


def _round_up8(n):
    return (n + 7) // 8 * 8


# ----------------------------------------------------------------------------
# Trace-time constant: nearest-neighbour replication matrix (exact 0/1)
# ----------------------------------------------------------------------------
def _nearest_matrix(h_in, w_in, h_out, w_out):
    """0/1 matrix G (h_in*w_in, h_out*w_out): nearest resize == x_flat @ G."""
    # PyTorch 'nearest': src = floor(dst * in / out)
    sy = (np.arange(h_out) * h_in) // h_out
    sx = (np.arange(w_out) * w_in) // w_out
    src = (sy[:, None] * w_in + sx[None, :]).reshape(-1)
    g = np.zeros((h_in * w_in, h_out * w_out), np.float32)
    g[src, np.arange(h_out * w_out)] = 1.0
    return g


# ----------------------------------------------------------------------------
# In-kernel helpers
# ----------------------------------------------------------------------------
def _border_masks(h, w):
    """Per-tap validity masks {(dy, dx): bool (1, h*w)} built from iota."""
    hw = h * w
    pix = jax.lax.broadcasted_iota(jnp.int32, (1, hw), 1)
    if (w & (w - 1)) == 0:  # power-of-two width: guaranteed-cheap bit ops
        xx = jnp.bitwise_and(pix, w - 1)
        yy = jnp.right_shift(pix, int(w).bit_length() - 1)
    else:
        # TODO(synk): verify vector integer div lowering for non-pow2 widths.
        yy = pix // w
        xx = pix - yy * w
    y_ok = {-1: yy >= 1, 0: None, 1: yy <= h - 2}
    x_ok = {-1: xx >= 1, 0: None, 1: xx <= w - 2}
    masks = {}
    for dy, dx in _TAPS:
        if dy == 0 and dx == 0:
            continue
        m = None
        for c in (y_ok[dy], x_ok[dx]):
            if c is not None:
                m = c if m is None else jnp.logical_and(m, c)
        masks[(dy, dx)] = m
    return masks


def _conv3x3_bn_lrelu(x, w2d, shift, masks, h, w):
    """
    Fused 3x3 conv (padding=1) + folded BN + LeakyReLU(0.01), one matmul.

    x:     (Cin, h*w) f32     activations, pixel index on lanes
    w2d:   (Cout, 9*Cpad) bf16  weights (BN scale folded), cols (dy, dx, cin)
    shift: (Cout, 1) f32        beta + (conv_bias - running_mean) * scale
    masks: {(dy, dx): bool (1, h*w)} border-validity masks
    """
    hw = h * w
    cin = x.shape[0]
    cpad = _round_up8(cin)
    if cpad != cin:  # sublane-align every im2col chunk
        x = jnp.concatenate([x, jnp.zeros((cpad - cin, hw), x.dtype)], axis=0)
    roll = pltpu.roll if hw % 128 == 0 else jnp.roll
    cols = []
    for dy, dx in _TAPS:
        k = dy * w + dx  # flat-index offset of this tap
        if k == 0:
            cols.append(x)
        else:
            # shifted[p] = x[p + k]; wrapped / row-crossing lanes masked to 0
            shifted = roll(x, (-k) % hw, 1)
            cols.append(jnp.where(masks[(dy, dx)], shifted, 0.0))
    col = jnp.concatenate(cols, axis=0)                              # (9*cpad, hw)
    acc = jnp.dot(w2d, col.astype(jnp.bfloat16),
                  preferred_element_type=jnp.float32)                # (Cout, hw)
    y = acc + shift                                                  # folded BN (+bias)
    return jnp.where(y > 0, y, jnp.float32(0.01) * y)                # LeakyReLU(0.01)


# ----------------------------------------------------------------------------
# Single fused kernel: [UpConvBlock]*T + 4x upsample + data resize + concat
#                      + ConvBlock, all in VMEM
# ----------------------------------------------------------------------------
def _fused_kernel(*refs, n_up, h0, w0, h_out, w_out):
    conv1_ref, conv2_ref, data_ref = refs[:3]
    pos = 3
    ups = [refs[pos + 5 * t: pos + 5 * t + 5] for t in range(n_up)]
    pos += 5 * n_up
    g4_ref, gd_ref, wu1_ref, bu1_ref, wu2_ref, bu2_ref = refs[pos:pos + 6]
    o_ref = refs[pos + 6]

    x = conv1_ref[0].astype(jnp.float32)                             # (C1, h0*w0)
    h, w = h0, w0
    for g_ref, wa_ref, ba_ref, wb_ref, bb_ref in ups:                # UpConvBlocks
        h, w = 2 * h, 2 * w
        x = jnp.dot(x.astype(jnp.bfloat16), g_ref[...],              # 2x nearest
                    preferred_element_type=jnp.float32)              # (C1, h*w)
        masks = _border_masks(h, w)
        x = _conv3x3_bn_lrelu(x, wa_ref[...], ba_ref[...], masks, h, w)
        x = _conv3x3_bn_lrelu(x, wb_ref[...], bb_ref[...], masks, h, w)

    # Upsample(4x) of the conv1 branch + nearest resize of data + concat
    x = jnp.dot(x.astype(jnp.bfloat16), g4_ref[...],
                preferred_element_type=jnp.float32)                  # (C1, H*W)
    d = jnp.dot(data_ref[0].astype(jnp.bfloat16), gd_ref[...],
                preferred_element_type=jnp.float32)                  # (Cd, H*W)
    xin = jnp.concatenate([conv2_ref[0].astype(jnp.float32), x, d], axis=0)

    masks = _border_masks(h_out, w_out)
    y = _conv3x3_bn_lrelu(xin, wu1_ref[...], bu1_ref[...], masks, h_out, w_out)
    y = _conv3x3_bn_lrelu(y, wu2_ref[...], bu2_ref[...], masks, h_out, w_out)
    o_ref[0] = y.astype(o_ref.dtype)


# ----------------------------------------------------------------------------
# pallas_call wrapper
# ----------------------------------------------------------------------------
def _rep(a):
    """Replicated (grid-invariant) operand: same block for every grid step."""
    return pl.BlockSpec(a.shape, lambda *_: (0,) * a.ndim)


def _prep_scb(p):
    """HWIO (3,3,Cin,Cout) weight + folded BN -> bf16 (Cout, 9*Cpad), f32 (Cout,1)."""
    wt = p["w"] * p["scale"][None, None, None, :]     # fold BN scale into weights
    kh, kw, cin, cout = wt.shape
    cpad = _round_up8(cin)
    if cpad != cin:
        wt = jnp.pad(wt, ((0, 0), (0, 0), (0, cpad - cin), (0, 0)))
    w2d = jnp.transpose(wt, (3, 0, 1, 2)).reshape(cout, kh * kw * cpad)
    return w2d.astype(jnp.bfloat16), p["shift"].reshape(cout, 1).astype(jnp.float32)


@jax.jit
def upsample_data_block_forward(params, data, conv1, conv2):
    n, c1, h0, w0 = conv1.shape
    _, c2, h_out, w_out = conv2.shape
    _, cd, dh, dw = data.shape
    n_up = len(params["up_blocks"])
    hw_out = h_out * w_out

    operands = [conv1.reshape(n, c1, h0 * w0),
                conv2.reshape(n, c2, hw_out),
                data.reshape(n, cd, dh * dw)]
    in_specs = [pl.BlockSpec((1, c1, h0 * w0), lambda i: (i, 0, 0)),
                pl.BlockSpec((1, c2, hw_out), lambda i: (i, 0, 0)),
                pl.BlockSpec((1, cd, dh * dw), lambda i: (i, 0, 0))]

    h, w = h0, w0
    for blk in params["up_blocks"]:
        g = jnp.asarray(_nearest_matrix(h, w, 2 * h, 2 * w), jnp.bfloat16)
        h, w = 2 * h, 2 * w
        wa, ba = _prep_scb(blk["conv1"])
        wb, bb = _prep_scb(blk["conv2"])
        for a in (g, wa, ba, wb, bb):
            operands.append(a)
            in_specs.append(_rep(a))

    g4 = jnp.asarray(_nearest_matrix(h, w, h_out, w_out), jnp.bfloat16)
    gd = jnp.asarray(_nearest_matrix(dh, dw, h_out, w_out), jnp.bfloat16)
    wu1, bu1 = _prep_scb(params["updata"]["conv1"])
    wu2, bu2 = _prep_scb(params["updata"]["conv2"])
    for a in (g4, gd, wu1, bu1, wu2, bu2):
        operands.append(a)
        in_specs.append(_rep(a))

    cout = wu2.shape[0]
    kernel = functools.partial(_fused_kernel, n_up=n_up, h0=h0, w0=w0,
                               h_out=h_out, w_out=w_out)
    out = pl.pallas_call(
        kernel,
        out_shape=jax.ShapeDtypeStruct((n, cout, hw_out), conv1.dtype),
        grid=(n,),
        in_specs=in_specs,
        out_specs=pl.BlockSpec((1, cout, hw_out), lambda i: (i, 0, 0)),
        compiler_params=_COMPILER_PARAMS,
    )(*operands)
    return out.reshape(n, cout, h_out, w_out)


# ----------------------------------------------------------------------------
# Parameter construction (deterministic, in-script)
# ----------------------------------------------------------------------------
def make_scb_params(key, cin, cout, dtype=jnp.float32):
    k1, k2, k3, k4, k5, k6 = jax.random.split(key, 6)
    w = jax.random.normal(k1, (3, 3, cin, cout), dtype) / jnp.sqrt(9.0 * cin)
    b = 0.01 * jax.random.normal(k2, (cout,), dtype)
    gamma = 1.0 + 0.1 * jax.random.normal(k3, (cout,), dtype)
    beta = 0.1 * jax.random.normal(k4, (cout,), dtype)
    r_mean = 0.1 * jax.random.normal(k5, (cout,), dtype)
    r_var = jnp.abs(1.0 + 0.1 * jax.random.normal(k6, (cout,), dtype))
    eps = 1e-5
    scale = gamma / jnp.sqrt(r_var + eps)
    shift = beta + (b - r_mean) * scale
    return {"w": w, "scale": scale, "shift": shift}


def make_upsample_data_block_params(key, conv_in_channels, data_in_channels,
                                    out_channels, up_conv_times):
    keys = jax.random.split(key, 2 * up_conv_times + 2)
    up_blocks = []
    for t in range(up_conv_times):
        up_blocks.append({
            "conv1": make_scb_params(keys[2 * t], conv_in_channels, conv_in_channels),
            "conv2": make_scb_params(keys[2 * t + 1], conv_in_channels, conv_in_channels),
        })
    cat_ch = conv_in_channels * 2 + data_in_channels
    updata = {
        "conv1": make_scb_params(keys[2 * up_conv_times], cat_ch, out_channels),
        "conv2": make_scb_params(keys[2 * up_conv_times + 1], out_channels, out_channels),
    }
    return {"up_blocks": up_blocks, "updata": updata}


# ----------------------------------------------------------------------------
# Pure-JAX reference (validation only)
# ----------------------------------------------------------------------------
def _scb_reference(x, p):
    y = jax.lax.conv_general_dilated(
        x, p["w"], window_strides=(1, 1), padding="SAME",
        dimension_numbers=("NCHW", "HWIO", "NCHW"))
    y = y * p["scale"][None, :, None, None] + p["shift"][None, :, None, None]
    return jnp.where(y > 0, y, 0.01 * y)


def _nearest_resize_reference(x, h_out, w_out):
    h_in, w_in = x.shape[2], x.shape[3]
    ry = (jnp.arange(h_out) * h_in) // h_out
    rx = (jnp.arange(w_out) * w_in) // w_out
    return x[:, :, ry[:, None], rx[None, :]]


def upsample_data_block_reference(params, data, conv1, conv2):
    x = conv1
    for blk in params["up_blocks"]:
        x = _nearest_resize_reference(x, 2 * x.shape[2], 2 * x.shape[3])
        x = _scb_reference(x, blk["conv1"])
        x = _scb_reference(x, blk["conv2"])
    x = _nearest_resize_reference(x, 4 * x.shape[2], 4 * x.shape[3])
    temp = jnp.concatenate([conv2, x], axis=1)
    d = _nearest_resize_reference(data, temp.shape[2], temp.shape[3])
    y = jnp.concatenate([temp, d], axis=1)
    y = _scb_reference(y, params["updata"]["conv1"])
    y = _scb_reference(y, params["updata"]["conv2"])
    return y


if __name__ == "__main__":
    key = jax.random.PRNGKey(0)
    k_params, k_data = jax.random.split(key)

    conv_in_channels = 4
    data_in_channels = 4
    out_channels = 8
    up_conv_times = 1

    params = make_upsample_data_block_params(
        k_params, conv_in_channels, data_in_channels, out_channels, up_conv_times)

    k1, k2, k3 = jax.random.split(k_data, 3)
    # conv1: 4x4 -> (2x upsample + convs) -> 8x8 -> (4x upsample) -> 32x32,
    # so conv2 must be 32x32; data gets nearest-resized 16x16 -> 32x32.
    data = jax.random.normal(k1, (2, data_in_channels, 16, 16), jnp.float32)
    conv1 = jax.random.normal(k2, (2, conv_in_channels, 4, 4), jnp.float32)
    conv2 = jax.random.normal(k3, (2, conv_in_channels, 32, 32), jnp.float32)

    out = jax.block_until_ready(upsample_data_block_forward(params, data, conv1, conv2))
    assert out.shape == (2, out_channels, 32, 32), out.shape
    assert out.dtype == jnp.float32

    ref = jax.block_until_ready(upsample_data_block_reference(params, data, conv1, conv2))
    max_err = float(jnp.max(jnp.abs(out - ref)))
    assert jnp.allclose(out, ref, atol=5e-2, rtol=5e-2), f"max |err| = {max_err}"
    print("KERNEL_OK")
</pallas_src>

<mosaic_0001>
module attributes {stable_mosaic.version = 11 : i64} {
  func.func @_fused_kernel(%arg0: i32, %arg1: memref<1x4x16xf32, #tpu.memory_space<vmem>>, %arg2: memref<1x4x1024xf32, #tpu.memory_space<vmem>>, %arg3: memref<1x4x256xf32, #tpu.memory_space<vmem>>, %arg4: memref<16x64xbf16, #tpu.memory_space<vmem>>, %arg5: memref<4x72xbf16, #tpu.memory_space<vmem>>, %arg6: memref<4x1xf32, #tpu.memory_space<vmem>>, %arg7: memref<4x72xbf16, #tpu.memory_space<vmem>>, %arg8: memref<4x1xf32, #tpu.memory_space<vmem>>, %arg9: memref<64x1024xbf16, #tpu.memory_space<vmem>>, %arg10: memref<256x1024xbf16, #tpu.memory_space<vmem>>, %arg11: memref<8x144xbf16, #tpu.memory_space<vmem>>, %arg12: memref<8x1xf32, #tpu.memory_space<vmem>>, %arg13: memref<8x72xbf16, #tpu.memory_space<vmem>>, %arg14: memref<8x1xf32, #tpu.memory_space<vmem>>, %arg15: memref<1x8x1024xf32, #tpu.memory_space<vmem>>) attributes {dimension_semantics = [#tpu.dimension_semantics<parallel>], iteration_bounds = array<i64: 2>, scalar_prefetch = 0 : i64, scratch_operands = 0 : i64, tpu.core_type = #tpu.core_type<tc>, window_params = [{transform_indices = @transform_0, window_bounds = array<i64: 1, 4, 16>}, {transform_indices = @transform_1, window_bounds = array<i64: 1, 4, 1024>}, {transform_indices = @transform_2, window_bounds = array<i64: 1, 4, 256>}, {pipeline_mode = #tpu.pipeline_mode<synchronous>, transform_indices = @transform_3, window_bounds = array<i64: 16, 64>}, {pipeline_mode = #tpu.pipeline_mode<synchronous>, transform_indices = @transform_4, window_bounds = array<i64: 4, 72>}, {pipeline_mode = #tpu.pipeline_mode<synchronous>, transform_indices = @transform_5, window_bounds = array<i64: 4, 1>}, {pipeline_mode = #tpu.pipeline_mode<synchronous>, transform_indices = @transform_6, window_bounds = array<i64: 4, 72>}, {pipeline_mode = #tpu.pipeline_mode<synchronous>, transform_indices = @transform_7, window_bounds = array<i64: 4, 1>}, {pipeline_mode = #tpu.pipeline_mode<synchronous>, transform_indices = @transform_8, window_bounds = array<i64: 64, 1024>}, {pipeline_mode = #tpu.pipeline_mode<synchronous>, transform_indices = @transform_9, window_bounds = array<i64: 256, 1024>}, {pipeline_mode = #tpu.pipeline_mode<synchronous>, transform_indices = @transform_10, window_bounds = array<i64: 8, 144>}, {pipeline_mode = #tpu.pipeline_mode<synchronous>, transform_indices = @transform_11, window_bounds = array<i64: 8, 1>}, {pipeline_mode = #tpu.pipeline_mode<synchronous>, transform_indices = @transform_12, window_bounds = array<i64: 8, 72>}, {pipeline_mode = #tpu.pipeline_mode<synchronous>, transform_indices = @transform_13, window_bounds = array<i64: 8, 1>}, {transform_indices = @transform_14, window_bounds = array<i64: 1, 8, 1024>}]} {
    %c0 = arith.constant 0 : index
    %c0_0 = arith.constant 0 : index
    %c0_1 = arith.constant 0 : index
    %0 = vector.load %arg1[%c0, %c0_0, %c0_1] : memref<1x4x16xf32, #tpu.memory_space<vmem>>, vector<1x4x16xf32>
    %1 = vector.shape_cast %0 : vector<1x4x16xf32> to vector<4x16xf32>
    %2 = arith.truncf %1 : vector<4x16xf32> to vector<4x16xbf16>
    %c0_2 = arith.constant 0 : index
    %c0_3 = arith.constant 0 : index
    %3 = vector.load %arg4[%c0_2, %c0_3] : memref<16x64xbf16, #tpu.memory_space<vmem>>, vector<16x64xbf16>
    %cst = arith.constant dense<0.000000e+00> : vector<4x64xf32>
    %4 = tpu.matmul %2, %3, %cst {dimension_numbers = #tpu.dot_dimension_numbers<[1], [0], [0], [1], [0, 0, 1, 1], [], []>} : vector<4x16xbf16>, vector<16x64xbf16>, vector<4x64xf32> -> vector<4x64xf32>
    %5 = tpu.iota {dimensions = array<i32: 1>} : vector<1x64xi32>
    %c7_i32 = arith.constant 7 : i32
    %6 = vector.broadcast %c7_i32 : i32 to vector<1x64xi32>
    %7 = arith.andi %5, %6 : vector<1x64xi32>
    %c3_i32 = arith.constant 3 : i32
    %8 = vector.broadcast %c3_i32 : i32 to vector<1x64xi32>
    %9 = arith.shrsi %5, %8 : vector<1x64xi32>
    %c1_i32 = arith.constant 1 : i32
    %10 = vector.broadcast %c1_i32 : i32 to vector<1x64xi32>
    %11 = arith.cmpi sge, %9, %10 : vector<1x64xi32>
    %c6_i32 = arith.constant 6 : i32
    %12 = vector.broadcast %c6_i32 : i32 to vector<1x64xi32>
    %13 = arith.cmpi sle, %9, %12 : vector<1x64xi32>
    %c1_i32_4 = arith.constant 1 : i32
    %14 = vector.broadcast %c1_i32_4 : i32 to vector<1x64xi32>
    %15 = arith.cmpi sge, %7, %14 : vector<1x64xi32>
    %c6_i32_5 = arith.constant 6 : i32
    %16 = vector.broadcast %c6_i32_5 : i32 to vector<1x64xi32>
    %17 = arith.cmpi sle, %7, %16 : vector<1x64xi32>
    %18 = arith.andi %11, %15 : vector<1x64xi1>
    %19 = arith.andi %11, %17 : vector<1x64xi1>
    %20 = arith.andi %13, %15 : vector<1x64xi1>
    %21 = arith.andi %13, %17 : vector<1x64xi1>
    %c0_6 = arith.constant 0 : index
    %c0_7 = arith.constant 0 : index
    %22 = vector.load %arg5[%c0_6, %c0_7] : memref<4x72xbf16, #tpu.memory_space<vmem>>, vector<4x72xbf16>
    %c0_8 = arith.constant 0 : index
    %c0_9 = arith.constant 0 : index
    %23 = vector.load %arg6[%c0_8, %c0_9] : memref<4x1xf32, #tpu.memory_space<vmem>>, vector<4x1xf32>
    %cst_10 = arith.constant 0.000000e+00 : f32
    %24 = vector.broadcast %cst_10 : f32 to vector<4x64xf32>
    %25 = tpu.concatenate %4, %24 in 0 : vector<4x64xf32>, vector<4x64xf32> -> vector<8x64xf32>
    %26 = vector.extract_strided_slice %25 {offsets = [0, 55], sizes = [8, 9], strides = [1, 1]} : vector<8x64xf32> to vector<8x9xf32>
    %27 = vector.extract_strided_slice %25 {offsets = [0, 0], sizes = [8, 55], strides = [1, 1]} : vector<8x64xf32> to vector<8x55xf32>
    %28 = tpu.concatenate %26, %27 in 1 : vector<8x9xf32>, vector<8x55xf32> -> vector<8x64xf32>
    %cst_11 = arith.constant 0.000000e+00 : f32
    %29 = vector.shape_cast %18 : vector<1x64xi1> to vector<1x64xi1>
    %30 = vector.broadcast %29 : vector<1x64xi1> to vector<8x64xi1>
    %31 = vector.broadcast %cst_11 : f32 to vector<8x64xf32>
    %32 = arith.select %30, %28, %31 : vector<8x64xi1>, vector<8x64xf32>
    %33 = vector.extract_strided_slice %25 {offsets = [0, 56], sizes = [8, 8], strides = [1, 1]} : vector<8x64xf32> to vector<8x8xf32>
    %34 = vector.extract_strided_slice %25 {offsets = [0, 0], sizes = [8, 56], strides = [1, 1]} : vector<8x64xf32> to vector<8x56xf32>
    %35 = tpu.concatenate %33, %34 in 1 : vector<8x8xf32>, vector<8x56xf32> -> vector<8x64xf32>
    %cst_12 = arith.constant 0.000000e+00 : f32
    %36 = vector.shape_cast %11 : vector<1x64xi1> to vector<1x64xi1>
    %37 = vector.broadcast %36 : vector<1x64xi1> to vector<8x64xi1>
    %38 = vector.broadcast %cst_12 : f32 to vector<8x64xf32>
    %39 = arith.select %37, %35, %38 : vector<8x64xi1>, vector<8x64xf32>
    %40 = vector.extract_strided_slice %25 {offsets = [0, 57], sizes = [8, 7], strides = [1, 1]} : vector<8x64xf32> to vector<8x7xf32>
    %41 = vector.extract_strided_slice %25 {offsets = [0, 0], sizes = [8, 57], strides = [1, 1]} : vector<8x64xf32> to vector<8x57xf32>
    %42 = tpu.concatenate %40, %41 in 1 : vector<8x7xf32>, vector<8x57xf32> -> vector<8x64xf32>
    %cst_13 = arith.constant 0.000000e+00 : f32
    %43 = vector.shape_cast %19 : vector<1x64xi1> to vector<1x64xi1>
    %44 = vector.broadcast %43 : vector<1x64xi1> to vector<8x64xi1>
    %45 = vector.broadcast %cst_13 : f32 to vector<8x64xf32>
    %46 = arith.select %44, %42, %45 : vector<8x64xi1>, vector<8x64xf32>
    %47 = vector.extract_strided_slice %25 {offsets = [0, 63], sizes = [8, 1], strides = [1, 1]} : vector<8x64xf32> to vector<8x1xf32>
    %48 = vector.extract_strided_slice %25 {offsets = [0, 0], sizes = [8, 63], strides = [1, 1]} : vector<8x64xf32> to vector<8x63xf32>
    %49 = tpu.concatenate %47, %48 in 1 : vector<8x1xf32>, vector<8x63xf32> -> vector<8x64xf32>
    %cst_14 = arith.constant 0.000000e+00 : f32
    %50 = vector.shape_cast %15 : vector<1x64xi1> to vector<1x64xi1>
    %51 = vector.broadcast %50 : vector<1x64xi1> to vector<8x64xi1>
    %52 = vector.broadcast %cst_14 : f32 to vector<8x64xf32>
    %53 = arith.select %51, %49, %52 : vector<8x64xi1>, vector<8x64xf32>
    %54 = vector.extract_strided_slice %25 {offsets = [0, 1], sizes = [8, 63], strides = [1, 1]} : vector<8x64xf32> to vector<8x63xf32>
    %55 = vector.extract_strided_slice %25 {offsets = [0, 0], sizes = [8, 1], strides = [1, 1]} : vector<8x64xf32> to vector<8x1xf32>
    %56 = tpu.concatenate %54, %55 in 1 : vector<8x63xf32>, vector<8x1xf32> -> vector<8x64xf32>
    %cst_15 = arith.constant 0.000000e+00 : f32
    %57 = vector.shape_cast %17 : vector<1x64xi1> to vector<1x64xi1>
    %58 = vector.broadcast %57 : vector<1x64xi1> to vector<8x64xi1>
    %59 = vector.broadcast %cst_15 : f32 to vector<8x64xf32>
    %60 = arith.select %58, %56, %59 : vector<8x64xi1>, vector<8x64xf32>
    %61 = vector.extract_strided_slice %25 {offsets = [0, 7], sizes = [8, 57], strides = [1, 1]} : vector<8x64xf32> to vector<8x57xf32>
    %62 = vector.extract_strided_slice %25 {offsets = [0, 0], sizes = [8, 7], strides = [1, 1]} : vector<8x64xf32> to vector<8x7xf32>
    %63 = tpu.concatenate %61, %62 in 1 : vector<8x57xf32>, vector<8x7xf32> -> vector<8x64xf32>
    %cst_16 = arith.constant 0.000000e+00 : f32
    %64 = vector.shape_cast %20 : vector<1x64xi1> to vector<1x64xi1>
    %65 = vector.broadcast %64 : vector<1x64xi1> to vector<8x64xi1>
    %66 = vector.broadcast %cst_16 : f32 to vector<8x64xf32>
    %67 = arith.select %65, %63, %66 : vector<8x64xi1>, vector<8x64xf32>
    %68 = vector.extract_strided_slice %25 {offsets = [0, 8], sizes = [8, 56], strides = [1, 1]} : vector<8x64xf32> to vector<8x56xf32>
    %69 = vector.extract_strided_slice %25 {offsets = [0, 0], sizes = [8, 8], strides = [1, 1]} : vector<8x64xf32> to vector<8x8xf32>
    %70 = tpu.concatenate %68, %69 in 1 : vector<8x56xf32>, vector<8x8xf32> -> vector<8x64xf32>
    %cst_17 = arith.constant 0.000000e+00 : f32
    %71 = vector.shape_cast %13 : vector<1x64xi1> to vector<1x64xi1>
    %72 = vector.broadcast %71 : vector<1x64xi1> to vector<8x64xi1>
    %73 = vector.broadcast %cst_17 : f32 to vector<8x64xf32>
    %74 = arith.select %72, %70, %73 : vector<8x64xi1>, vector<8x64xf32>
    %75 = vector.extract_strided_slice %25 {offsets = [0, 9], sizes = [8, 55], strides = [1, 1]} : vector<8x64xf32> to vector<8x55xf32>
    %76 = vector.extract_strided_slice %25 {offsets = [0, 0], sizes = [8, 9], strides = [1, 1]} : vector<8x64xf32> to vector<8x9xf32>
    %77 = tpu.concatenate %75, %76 in 1 : vector<8x55xf32>, vector<8x9xf32> -> vector<8x64xf32>
    %cst_18 = arith.constant 0.000000e+00 : f32
    %78 = vector.shape_cast %21 : vector<1x64xi1> to vector<1x64xi1>
    %79 = vector.broadcast %78 : vector<1x64xi1> to vector<8x64xi1>
    %80 = vector.broadcast %cst_18 : f32 to vector<8x64xf32>
    %81 = arith.select %79, %77, %80 : vector<8x64xi1>, vector<8x64xf32>
    %82 = tpu.concatenate %32, %39, %46, %53, %25, %60, %67, %74, %81 in 0 : vector<8x64xf32>, vector<8x64xf32>, vector<8x64xf32>, vector<8x64xf32>, vector<8x64xf32>, vector<8x64xf32>, vector<8x64xf32>, vector<8x64xf32>, vector<8x64xf32> -> vector<72x64xf32>
    %83 = arith.truncf %82 : vector<72x64xf32> to vector<72x64xbf16>
    %cst_19 = arith.constant dense<0.000000e+00> : vector<4x64xf32>
    %84 = tpu.matmul %22, %83, %cst_19 {dimension_numbers = #tpu.dot_dimension_numbers<[1], [0], [0], [1], [0, 0, 1, 1], [], []>} : vector<4x72xbf16>, vector<72x64xbf16>, vector<4x64xf32> -> vector<4x64xf32>
    %85 = vector.broadcast %23 : vector<4x1xf32> to vector<4x64xf32>
    %86 = arith.addf %84, %85 : vector<4x64xf32>
    %cst_20 = arith.constant 0.000000e+00 : f32
    %87 = vector.broadcast %cst_20 : f32 to vector<4x64xf32>
    %88 = arith.cmpf ogt, %86, %87 : vector<4x64xf32>
    %cst_21 = arith.constant 0.00999999977 : f32
    %89 = vector.broadcast %cst_21 : f32 to vector<4x64xf32>
    %90 = arith.mulf %89, %86 : vector<4x64xf32>
    %91 = arith.select %88, %86, %90 : vector<4x64xi1>, vector<4x64xf32>
    %c0_22 = arith.constant 0 : index
    %c0_23 = arith.constant 0 : index
    %92 = vector.load %arg7[%c0_22, %c0_23] : memref<4x72xbf16, #tpu.memory_space<vmem>>, vector<4x72xbf16>
    %c0_24 = arith.constant 0 : index
    %c0_25 = arith.constant 0 : index
    %93 = vector.load %arg8[%c0_24, %c0_25] : memref<4x1xf32, #tpu.memory_space<vmem>>, vector<4x1xf32>
    %cst_26 = arith.constant 0.000000e+00 : f32
    %94 = vector.broadcast %cst_26 : f32 to vector<4x64xf32>
    %95 = tpu.concatenate %91, %94 in 0 : vector<4x64xf32>, vector<4x64xf32> -> vector<8x64xf32>
    %96 = vector.extract_strided_slice %95 {offsets = [0, 55], sizes = [8, 9], strides = [1, 1]} : vector<8x64xf32> to vector<8x9xf32>
    %97 = vector.extract_strided_slice %95 {offsets = [0, 0], sizes = [8, 55], strides = [1, 1]} : vector<8x64xf32> to vector<8x55xf32>
    %98 = tpu.concatenate %96, %97 in 1 : vector<8x9xf32>, vector<8x55xf32> -> vector<8x64xf32>
    %cst_27 = arith.constant 0.000000e+00 : f32
    %99 = vector.shape_cast %18 : vector<1x64xi1> to vector<1x64xi1>
    %100 = vector.broadcast %99 : vector<1x64xi1> to vector<8x64xi1>
    %101 = vector.broadcast %cst_27 : f32 to vector<8x64xf32>
    %102 = arith.select %100, %98, %101 : vector<8x64xi1>, vector<8x64xf32>
    %103 = vector.extract_strided_slice %95 {offsets = [0, 56], sizes = [8, 8], strides = [1, 1]} : vector<8x64xf32> to vector<8x8xf32>
    %104 = vector.extract_strided_slice %95 {offsets = [0, 0], sizes = [8, 56], strides = [1, 1]} : vector<8x64xf32> to vector<8x56xf32>
    %105 = tpu.concatenate %103, %104 in 1 : vector<8x8xf32>, vector<8x56xf32> -> vector<8x64xf32>
    %cst_28 = arith.constant 0.000000e+00 : f32
    %106 = vector.shape_cast %11 : vector<1x64xi1> to vector<1x64xi1>
    %107 = vector.broadcast %106 : vector<1x64xi1> to vector<8x64xi1>
    %108 = vector.broadcast %cst_28 : f32 to vector<8x64xf32>
    %109 = arith.select %107, %105, %108 : vector<8x64xi1>, vector<8x64xf32>
    %110 = vector.extract_strided_slice %95 {offsets = [0, 57], sizes = [8, 7], strides = [1, 1]} : vector<8x64xf32> to vector<8x7xf32>
    %111 = vector.extract_strided_slice %95 {offsets = [0, 0], sizes = [8, 57], strides = [1, 1]} : vector<8x64xf32> to vector<8x57xf32>
    %112 = tpu.concatenate %110, %111 in 1 : vector<8x7xf32>, vector<8x57xf32> -> vector<8x64xf32>
    %cst_29 = arith.constant 0.000000e+00 : f32
    %113 = vector.shape_cast %19 : vector<1x64xi1> to vector<1x64xi1>
    %114 = vector.broadcast %113 : vector<1x64xi1> to vector<8x64xi1>
    %115 = vector.broadcast %cst_29 : f32 to vector<8x64xf32>
    %116 = arith.select %114, %112, %115 : vector<8x64xi1>, vector<8x64xf32>
    %117 = vector.extract_strided_slice %95 {offsets = [0, 63], sizes = [8, 1], strides = [1, 1]} : vector<8x64xf32> to vector<8x1xf32>
    %118 = vector.extract_strided_slice %95 {offsets = [0, 0], sizes = [8, 63], strides = [1, 1]} : vector<8x64xf32> to vector<8x63xf32>
    %119 = tpu.concatenate %117, %118 in 1 : vector<8x1xf32>, vector<8x63xf32> -> vector<8x64xf32>
    %cst_30 = arith.constant 0.000000e+00 : f32
    %120 = vector.shape_cast %15 : vector<1x64xi1> to vector<1x64xi1>
    %121 = vector.broadcast %120 : vector<1x64xi1> to vector<8x64xi1>
    %122 = vector.broadcast %cst_30 : f32 to vector<8x64xf32>
    %123 = arith.select %121, %119, %122 : vector<8x64xi1>, vector<8x64xf32>
    %124 = vector.extract_strided_slice %95 {offsets = [0, 1], sizes = [8, 63], strides = [1, 1]} : vector<8x64xf32> to vector<8x63xf32>
    %125 = vector.extract_strided_slice %95 {offsets = [0, 0], sizes = [8, 1], strides = [1, 1]} : vector<8x64xf32> to vector<8x1xf32>
    %126 = tpu.concatenate %124, %125 in 1 : vector<8x63xf32>, vector<8x1xf32> -> vector<8x64xf32>
    %cst_31 = arith.constant 0.000000e+00 : f32
    %127 = vector.shape_cast %17 : vector<1x64xi1> to vector<1x64xi1>
    %128 = vector.broadcast %127 : vector<1x64xi1> to vector<8x64xi1>
    %129 = vector.broadcast %cst_31 : f32 to vector<8x64xf32>
    %130 = arith.select %128, %126, %129 : vector<8x64xi1>, vector<8x64xf32>
    %131 = vector.extract_strided_slice %95 {offsets = [0, 7], sizes = [8, 57], strides = [1, 1]} : vector<8x64xf32> to vector<8x57xf32>
    %132 = vector.extract_strided_slice %95 {offsets = [0, 0], sizes = [8, 7], strides = [1, 1]} : vector<8x64xf32> to vector<8x7xf32>
    %133 = tpu.concatenate %131, %132 in 1 : vector<8x57xf32>, vector<8x7xf32> -> vector<8x64xf32>
    %cst_32 = arith.constant 0.000000e+00 : f32
    %134 = vector.shape_cast %20 : vector<1x64xi1> to vector<1x64xi1>
    %135 = vector.broadcast %134 : vector<1x64xi1> to vector<8x64xi1>
    %136 = vector.broadcast %cst_32 : f32 to vector<8x64xf32>
    %137 = arith.select %135, %133, %136 : vector<8x64xi1>, vector<8x64xf32>
    %138 = vector.extract_strided_slice %95 {offsets = [0, 8], sizes = [8, 56], strides = [1, 1]} : vector<8x64xf32> to vector<8x56xf32>
    %139 = vector.extract_strided_slice %95 {offsets = [0, 0], sizes = [8, 8], strides = [1, 1]} : vector<8x64xf32> to vector<8x8xf32>
    %140 = tpu.concatenate %138, %139 in 1 : vector<8x56xf32>, vector<8x8xf32> -> vector<8x64xf32>
    %cst_33 = arith.constant 0.000000e+00 : f32
    %141 = vector.shape_cast %13 : vector<1x64xi1> to vector<1x64xi1>
    %142 = vector.broadcast %141 : vector<1x64xi1> to vector<8x64xi1>
    %143 = vector.broadcast %cst_33 : f32 to vector<8x64xf32>
    %144 = arith.select %142, %140, %143 : vector<8x64xi1>, vector<8x64xf32>
    %145 = vector.extract_strided_slice %95 {offsets = [0, 9], sizes = [8, 55], strides = [1, 1]} : vector<8x64xf32> to vector<8x55xf32>
    %146 = vector.extract_strided_slice %95 {offsets = [0, 0], sizes = [8, 9], strides = [1, 1]} : vector<8x64xf32> to vector<8x9xf32>
    %147 = tpu.concatenate %145, %146 in 1 : vector<8x55xf32>, vector<8x9xf32> -> vector<8x64xf32>
    %cst_34 = arith.constant 0.000000e+00 : f32
    %148 = vector.shape_cast %21 : vector<1x64xi1> to vector<1x64xi1>
    %149 = vector.broadcast %148 : vector<1x64xi1> to vector<8x64xi1>
    %150 = vector.broadcast %cst_34 : f32 to vector<8x64xf32>
    %151 = arith.select %149, %147, %150 : vector<8x64xi1>, vector<8x64xf32>
    %152 = tpu.concatenate %102, %109, %116, %123, %95, %130, %137, %144, %151 in 0 : vector<8x64xf32>, vector<8x64xf32>, vector<8x64xf32>, vector<8x64xf32>, vector<8x64xf32>, vector<8x64xf32>, vector<8x64xf32>, vector<8x64xf32>, vector<8x64xf32> -> vector<72x64xf32>
    %153 = arith.truncf %152 : vector<72x64xf32> to vector<72x64xbf16>
    %cst_35 = arith.constant dense<0.000000e+00> : vector<4x64xf32>
    %154 = tpu.matmul %92, %153, %cst_35 {dimension_numbers = #tpu.dot_dimension_numbers<[1], [0], [0], [1], [0, 0, 1, 1], [], []>} : vector<4x72xbf16>, vector<72x64xbf16>, vector<4x64xf32> -> vector<4x64xf32>
    %155 = vector.broadcast %93 : vector<4x1xf32> to vector<4x64xf32>
    %156 = arith.addf %154, %155 : vector<4x64xf32>
    %cst_36 = arith.constant 0.000000e+00 : f32
    %157 = vector.broadcast %cst_36 : f32 to vector<4x64xf32>
    %158 = arith.cmpf ogt, %156, %157 : vector<4x64xf32>
    %cst_37 = arith.constant 0.00999999977 : f32
    %159 = vector.broadcast %cst_37 : f32 to vector<4x64xf32>
    %160 = arith.mulf %159, %156 : vector<4x64xf32>
    %161 = arith.select %158, %156, %160 : vector<4x64xi1>, vector<4x64xf32>
    %162 = arith.truncf %161 : vector<4x64xf32> to vector<4x64xbf16>
    %c0_38 = arith.constant 0 : index
    %c0_39 = arith.constant 0 : index
    %163 = vector.load %arg9[%c0_38, %c0_39] : memref<64x1024xbf16, #tpu.memory_space<vmem>>, vector<64x1024xbf16>
    %cst_40 = arith.constant dense<0.000000e+00> : vector<4x1024xf32>
    %164 = tpu.matmul %162, %163, %cst_40 {dimension_numbers = #tpu.dot_dimension_numbers<[1], [0], [0], [1], [0, 0, 1, 1], [], []>} : vector<4x64xbf16>, vector<64x1024xbf16>, vector<4x1024xf32> -> vector<4x1024xf32>
    %c0_41 = arith.constant 0 : index
    %c0_42 = arith.constant 0 : index
    %c0_43 = arith.constant 0 : index
    %165 = vector.load %arg3[%c0_41, %c0_42, %c0_43] : memref<1x4x256xf32, #tpu.memory_space<vmem>>, vector<1x4x256xf32>
    %166 = vector.shape_cast %165 : vector<1x4x256xf32> to vector<4x256xf32>
    %167 = arith.truncf %166 : vector<4x256xf32> to vector<4x256xbf16>
    %c0_44 = arith.constant 0 : index
    %c0_45 = arith.constant 0 : index
    %168 = vector.load %arg10[%c0_44, %c0_45] : memref<256x1024xbf16, #tpu.memory_space<vmem>>, vector<256x1024xbf16>
    %cst_46 = arith.constant dense<0.000000e+00> : vector<4x1024xf32>
    %169 = tpu.matmul %167, %168, %cst_46 {dimension_numbers = #tpu.dot_dimension_numbers<[1], [0], [0], [1], [0, 0, 1, 1], [], []>} : vector<4x256xbf16>, vector<256x1024xbf16>, vector<4x1024xf32> -> vector<4x1024xf32>
    %c0_47 = arith.constant 0 : index
    %c0_48 = arith.constant 0 : index
    %c0_49 = arith.constant 0 : index
    %170 = vector.load %arg2[%c0_47, %c0_48, %c0_49] : memref<1x4x1024xf32, #tpu.memory_space<vmem>>, vector<1x4x1024xf32>
    %171 = vector.shape_cast %170 : vector<1x4x1024xf32> to vector<4x1024xf32>
    %172 = tpu.concatenate %171, %164, %169 in 0 : vector<4x1024xf32>, vector<4x1024xf32>, vector<4x1024xf32> -> vector<12x1024xf32>
    %173 = tpu.iota {dimensions = array<i32: 1>} : vector<1x1024xi32>
    %c31_i32 = arith.constant 31 : i32
    %174 = vector.broadcast %c31_i32 : i32 to vector<1x1024xi32>
    %175 = arith.andi %173, %174 : vector<1x1024xi32>
    %c5_i32 = arith.constant 5 : i32
    %176 = vector.broadcast %c5_i32 : i32 to vector<1x1024xi32>
    %177 = arith.shrsi %173, %176 : vector<1x1024xi32>
    %c1_i32_50 = arith.constant 1 : i32
    %178 = vector.broadcast %c1_i32_50 : i32 to vector<1x1024xi32>
    %179 = arith.cmpi sge, %177, %178 : vector<1x1024xi32>
    %c30_i32 = arith.constant 30 : i32
    %180 = vector.broadcast %c30_i32 : i32 to vector<1x1024xi32>
    %181 = arith.cmpi sle, %177, %180 : vector<1x1024xi32>
    %c1_i32_51 = arith.constant 1 : i32
    %182 = vector.broadcast %c1_i32_51 : i32 to vector<1x1024xi32>
    %183 = arith.cmpi sge, %175, %182 : vector<1x1024xi32>
    %c30_i32_52 = arith.constant 30 : i32
    %184 = vector.broadcast %c30_i32_52 : i32 to vector<1x1024xi32>
    %185 = arith.cmpi sle, %175, %184 : vector<1x1024xi32>
    %186 = arith.andi %179, %183 : vector<1x1024xi1>
    %187 = arith.andi %179, %185 : vector<1x1024xi1>
    %188 = arith.andi %181, %183 : vector<1x1024xi1>
    %189 = arith.andi %181, %185 : vector<1x1024xi1>
    %c0_53 = arith.constant 0 : index
    %c0_54 = arith.constant 0 : index
    %190 = vector.load %arg11[%c0_53, %c0_54] : memref<8x144xbf16, #tpu.memory_space<vmem>>, vector<8x144xbf16>
    %c0_55 = arith.constant 0 : index
    %c0_56 = arith.constant 0 : index
    %191 = vector.load %arg12[%c0_55, %c0_56] : memref<8x1xf32, #tpu.memory_space<vmem>>, vector<8x1xf32>
    %cst_57 = arith.constant 0.000000e+00 : f32
    %192 = vector.broadcast %cst_57 : f32 to vector<4x1024xf32>
    %193 = tpu.concatenate %172, %192 in 0 : vector<12x1024xf32>, vector<4x1024xf32> -> vector<16x1024xf32>
    %c33_i32 = arith.constant 33 : i32
    %194 = tpu.dynamic_rotate %193 by %c33_i32 dim 1 : vector<16x1024xf32>, i32 -> vector<16x1024xf32>
    %cst_58 = arith.constant 0.000000e+00 : f32
    %195 = vector.shape_cast %186 : vector<1x1024xi1> to vector<1x1024xi1>
    %196 = vector.broadcast %195 : vector<1x1024xi1> to vector<16x1024xi1>
    %197 = vector.broadcast %cst_58 : f32 to vector<16x1024xf32>
    %198 = arith.select %196, %194, %197 : vector<16x1024xi1>, vector<16x1024xf32>
    %c32_i32 = arith.constant 32 : i32
    %199 = tpu.dynamic_rotate %193 by %c32_i32 dim 1 : vector<16x1024xf32>, i32 -> vector<16x1024xf32>
    %cst_59 = arith.constant 0.000000e+00 : f32
    %200 = vector.shape_cast %179 : vector<1x1024xi1> to vector<1x1024xi1>
    %201 = vector.broadcast %200 : vector<1x1024xi1> to vector<16x1024xi1>
    %202 = vector.broadcast %cst_59 : f32 to vector<16x1024xf32>
    %203 = arith.select %201, %199, %202 : vector<16x1024xi1>, vector<16x1024xf32>
    %c31_i32_60 = arith.constant 31 : i32
    %204 = tpu.dynamic_rotate %193 by %c31_i32_60 dim 1 : vector<16x1024xf32>, i32 -> vector<16x1024xf32>
    %cst_61 = arith.constant 0.000000e+00 : f32
    %205 = vector.shape_cast %187 : vector<1x1024xi1> to vector<1x1024xi1>
    %206 = vector.broadcast %205 : vector<1x1024xi1> to vector<16x1024xi1>
    %207 = vector.broadcast %cst_61 : f32 to vector<16x1024xf32>
    %208 = arith.select %206, %204, %207 : vector<16x1024xi1>, vector<16x1024xf32>
    %c1_i32_62 = arith.constant 1 : i32
    %209 = tpu.dynamic_rotate %193 by %c1_i32_62 dim 1 : vector<16x1024xf32>, i32 -> vector<16x1024xf32>
    %cst_63 = arith.constant 0.000000e+00 : f32
    %210 = vector.shape_cast %183 : vector<1x1024xi1> to vector<1x1024xi1>
    %211 = vector.broadcast %210 : vector<1x1024xi1> to vector<16x1024xi1>
    %212 = vector.broadcast %cst_63 : f32 to vector<16x1024xf32>
    %213 = arith.select %211, %209, %212 : vector<16x1024xi1>, vector<16x1024xf32>
    %c1023_i32 = arith.constant 1023 : i32
    %214 = tpu.dynamic_rotate %193 by %c1023_i32 dim 1 : vector<16x1024xf32>, i32 -> vector<16x1024xf32>
    %cst_64 = arith.constant 0.000000e+00 : f32
    %215 = vector.shape_cast %185 : vector<1x1024xi1> to vector<1x1024xi1>
    %216 = vector.broadcast %215 : vector<1x1024xi1> to vector<16x1024xi1>
    %217 = vector.broadcast %cst_64 : f32 to vector<16x1024xf32>
    %218 = arith.select %216, %214, %217 : vector<16x1024xi1>, vector<16x1024xf32>
    %c993_i32 = arith.constant 993 : i32
    %219 = tpu.dynamic_rotate %193 by %c993_i32 dim 1 : vector<16x1024xf32>, i32 -> vector<16x1024xf32>
    %cst_65 = arith.constant 0.000000e+00 : f32
    %220 = vector.shape_cast %188 : vector<1x1024xi1> to vector<1x1024xi1>
    %221 = vector.broadcast %220 : vector<1x1024xi1> to vector<16x1024xi1>
    %222 = vector.broadcast %cst_65 : f32 to vector<16x1024xf32>
    %223 = arith.select %221, %219, %222 : vector<16x1024xi1>, vector<16x1024xf32>
    %c992_i32 = arith.constant 992 : i32
    %224 = tpu.dynamic_rotate %193 by %c992_i32 dim 1 : vector<16x1024xf32>, i32 -> vector<16x1024xf32>
    %cst_66 = arith.constant 0.000000e+00 : f32
    %225 = vector.shape_cast %181 : vector<1x1024xi1> to vector<1x1024xi1>
    %226 = vector.broadcast %225 : vector<1x1024xi1> to vector<16x1024xi1>
    %227 = vector.broadcast %cst_66 : f32 to vector<16x1024xf32>
    %228 = arith.select %226, %224, %227 : vector<16x1024xi1>, vector<16x1024xf32>
    %c991_i32 = arith.constant 991 : i32
    %229 = tpu.dynamic_rotate %193 by %c991_i32 dim 1 : vector<16x1024xf32>, i32 -> vector<16x1024xf32>
    %cst_67 = arith.constant 0.000000e+00 : f32
    %230 = vector.shape_cast %189 : vector<1x1024xi1> to vector<1x1024xi1>
    %231 = vector.broadcast %230 : vector<1x1024xi1> to vector<16x1024xi1>
    %232 = vector.broadcast %cst_67 : f32 to vector<16x1024xf32>
    %233 = arith.select %231, %229, %232 : vector<16x1024xi1>, vector<16x1024xf32>
    %234 = tpu.concatenate %198, %203, %208, %213, %193, %218, %223, %228, %233 in 0 : vector<16x1024xf32>, vector<16x1024xf32>, vector<16x1024xf32>, vector<16x1024xf32>, vector<16x1024xf32>, vector<16x1024xf32>, vector<16x1024xf32>, vector<16x1024xf32>, vector<16x1024xf32> -> vector<144x1024xf32>
    %235 = arith.truncf %234 : vector<144x1024xf32> to vector<144x1024xbf16>
    %cst_68 = arith.constant dense<0.000000e+00> : vector<8x1024xf32>
    %236 = tpu.matmul %190, %235, %cst_68 {dimension_numbers = #tpu.dot_dimension_numbers<[1], [0], [0], [1], [0, 0, 1, 1], [], []>} : vector<8x144xbf16>, vector<144x1024xbf16>, vector<8x1024xf32> -> vector<8x1024xf32>
    %237 = vector.broadcast %191 : vector<8x1xf32> to vector<8x1024xf32>
    %238 = arith.addf %236, %237 : vector<8x1024xf32>
    %cst_69 = arith.constant 0.000000e+00 : f32
    %239 = vector.broadcast %cst_69 : f32 to vector<8x1024xf32>
    %240 = arith.cmpf ogt, %238, %239 : vector<8x1024xf32>
    %cst_70 = arith.constant 0.00999999977 : f32
    %241 = vector.broadcast %cst_70 : f32 to vector<8x1024xf32>
    %242 = arith.mulf %241, %238 : vector<8x1024xf32>
    %243 = arith.select %240, %238, %242 : vector<8x1024xi1>, vector<8x1024xf32>
    %c0_71 = arith.constant 0 : index
    %c0_72 = arith.constant 0 : index
    %244 = vector.load %arg13[%c0_71, %c0_72] : memref<8x72xbf16, #tpu.memory_space<vmem>>, vector<8x72xbf16>
    %c0_73 = arith.constant 0 : index
    %c0_74 = arith.constant 0 : index
    %245 = vector.load %arg14[%c0_73, %c0_74] : memref<8x1xf32, #tpu.memory_space<vmem>>, vector<8x1xf32>
    %c33_i32_75 = arith.constant 33 : i32
    %246 = tpu.dynamic_rotate %243 by %c33_i32_75 dim 1 : vector<8x1024xf32>, i32 -> vector<8x1024xf32>
    %cst_76 = arith.constant 0.000000e+00 : f32
    %247 = vector.shape_cast %186 : vector<1x1024xi1> to vector<1x1024xi1>
    %248 = vector.broadcast %247 : vector<1x1024xi1> to vector<8x1024xi1>
    %249 = vector.broadcast %cst_76 : f32 to vector<8x1024xf32>
    %250 = arith.select %248, %246, %249 : vector<8x1024xi1>, vector<8x1024xf32>
    %c32_i32_77 = arith.constant 32 : i32
    %251 = tpu.dynamic_rotate %243 by %c32_i32_77 dim 1 : vector<8x1024xf32>, i32 -> vector<8x1024xf32>
    %cst_78 = arith.constant 0.000000e+00 : f32
    %252 = vector.shape_cast %179 : vector<1x1024xi1> to vector<1x1024xi1>
    %253 = vector.broadcast %252 : vector<1x1024xi1> to vector<8x1024xi1>
    %254 = vector.broadcast %cst_78 : f32 to vector<8x1024xf32>
    %255 = arith.select %253, %251, %254 : vector<8x1024xi1>, vector<8x1024xf32>
    %c31_i32_79 = arith.constant 31 : i32
    %256 = tpu.dynamic_rotate %243 by %c31_i32_79 dim 1 : vector<8x1024xf32>, i32 -> vector<8x1024xf32>
    %cst_80 = arith.constant 0.000000e+00 : f32
    %257 = vector.shape_cast %187 : vector<1x1024xi1> to vector<1x1024xi1>
    %258 = vector.broadcast %257 : vector<1x1024xi1> to vector<8x1024xi1>
    %259 = vector.broadcast %cst_80 : f32 to vector<8x1024xf32>
    %260 = arith.select %258, %256, %259 : vector<8x1024xi1>, vector<8x1024xf32>
    %c1_i32_81 = arith.constant 1 : i32
    %261 = tpu.dynamic_rotate %243 by %c1_i32_81 dim 1 : vector<8x1024xf32>, i32 -> vector<8x1024xf32>
    %cst_82 = arith.constant 0.000000e+00 : f32
    %262 = vector.shape_cast %183 : vector<1x1024xi1> to vector<1x1024xi1>
    %263 = vector.broadcast %262 : vector<1x1024xi1> to vector<8x1024xi1>
    %264 = vector.broadcast %cst_82 : f32 to vector<8x1024xf32>
    %265 = arith.select %263, %261, %264 : vector<8x1024xi1>, vector<8x1024xf32>
    %c1023_i32_83 = arith.constant 1023 : i32
    %266 = tpu.dynamic_rotate %243 by %c1023_i32_83 dim 1 : vector<8x1024xf32>, i32 -> vector<8x1024xf32>
    %cst_84 = arith.constant 0.000000e+00 : f32
    %267 = vector.shape_cast %185 : vector<1x1024xi1> to vector<1x1024xi1>
    %268 = vector.broadcast %267 : vector<1x1024xi1> to vector<8x1024xi1>
    %269 = vector.broadcast %cst_84 : f32 to vector<8x1024xf32>
    %270 = arith.select %268, %266, %269 : vector<8x1024xi1>, vector<8x1024xf32>
    %c993_i32_85 = arith.constant 993 : i32
    %271 = tpu.dynamic_rotate %243 by %c993_i32_85 dim 1 : vector<8x1024xf32>, i32 -> vector<8x1024xf32>
    %cst_86 = arith.constant 0.000000e+00 : f32
    %272 = vector.shape_cast %188 : vector<1x1024xi1> to vector<1x1024xi1>
    %273 = vector.broadcast %272 : vector<1x1024xi1> to vector<8x1024xi1>
    %274 = vector.broadcast %cst_86 : f32 to vector<8x1024xf32>
    %275 = arith.select %273, %271, %274 : vector<8x1024xi1>, vector<8x1024xf32>
    %c992_i32_87 = arith.constant 992 : i32
    %276 = tpu.dynamic_rotate %243 by %c992_i32_87 dim 1 : vector<8x1024xf32>, i32 -> vector<8x1024xf32>
    %cst_88 = arith.constant 0.000000e+00 : f32
    %277 = vector.shape_cast %181 : vector<1x1024xi1> to vector<1x1024xi1>
    %278 = vector.broadcast %277 : vector<1x1024xi1> to vector<8x1024xi1>
    %279 = vector.broadcast %cst_88 : f32 to vector<8x1024xf32>
    %280 = arith.select %278, %276, %279 : vector<8x1024xi1>, vector<8x1024xf32>
    %c991_i32_89 = arith.constant 991 : i32
    %281 = tpu.dynamic_rotate %243 by %c991_i32_89 dim 1 : vector<8x1024xf32>, i32 -> vector<8x1024xf32>
    %cst_90 = arith.constant 0.000000e+00 : f32
    %282 = vector.shape_cast %189 : vector<1x1024xi1> to vector<1x1024xi1>
    %283 = vector.broadcast %282 : vector<1x1024xi1> to vector<8x1024xi1>
    %284 = vector.broadcast %cst_90 : f32 to vector<8x1024xf32>
    %285 = arith.select %283, %281, %284 : vector<8x1024xi1>, vector<8x1024xf32>
    %286 = tpu.concatenate %250, %255, %260, %265, %243, %270, %275, %280, %285 in 0 : vector<8x1024xf32>, vector<8x1024xf32>, vector<8x1024xf32>, vector<8x1024xf32>, vector<8x1024xf32>, vector<8x1024xf32>, vector<8x1024xf32>, vector<8x1024xf32>, vector<8x1024xf32> -> vector<72x1024xf32>
    %287 = arith.truncf %286 : vector<72x1024xf32> to vector<72x1024xbf16>
    %cst_91 = arith.constant dense<0.000000e+00> : vector<8x1024xf32>
    %288 = tpu.matmul %244, %287, %cst_91 {dimension_numbers = #tpu.dot_dimension_numbers<[1], [0], [0], [1], [0, 0, 1, 1], [], []>} : vector<8x72xbf16>, vector<72x1024xbf16>, vector<8x1024xf32> -> vector<8x1024xf32>
    %289 = vector.broadcast %245 : vector<8x1xf32> to vector<8x1024xf32>
    %290 = arith.addf %288, %289 : vector<8x1024xf32>
    %cst_92 = arith.constant 0.000000e+00 : f32
    %291 = vector.broadcast %cst_92 : f32 to vector<8x1024xf32>
    %292 = arith.cmpf ogt, %290, %291 : vector<8x1024xf32>
    %cst_93 = arith.constant 0.00999999977 : f32
    %293 = vector.broadcast %cst_93 : f32 to vector<8x1024xf32>
    %294 = arith.mulf %293, %290 : vector<8x1024xf32>
    %295 = arith.select %292, %290, %294 : vector<8x1024xi1>, vector<8x1024xf32>
    %c0_94 = arith.constant 0 : index
    %c0_95 = arith.constant 0 : index
    %c0_96 = arith.constant 0 : index
    %296 = vector.load %arg15[%c0_94, %c0_95, %c0_96] : memref<1x8x1024xf32, #tpu.memory_space<vmem>>, vector<1x8x1024xf32>
    %297 = vector.shape_cast %296 : vector<1x8x1024xf32> to vector<8x1024xf32>
    %298 = vector.shape_cast %295 : vector<8x1024xf32> to vector<1x8x1024xf32>
    tpu.vector_store %arg15[%c0_94, %c0_95, %c0_96], %298 {strides = array<i32>} : memref<1x8x1024xf32, #tpu.memory_space<vmem>>, vector<1x8x1024xf32>,
    return
  }
  func.func @transform_0(%arg0: i32) -> (i32, i32, i32) {
    %c0_i32 = arith.constant 0 : i32
    %c0_i32_0 = arith.constant 0 : i32
    %c0_i32_1 = arith.constant 0 : i32
    return %arg0, %c0_i32, %c0_i32_0 : i32, i32, i32
  }
  func.func @transform_1(%arg0: i32) -> (i32, i32, i32) {
    %c0_i32 = arith.constant 0 : i32
    %c0_i32_0 = arith.constant 0 : i32
    %c0_i32_1 = arith.constant 0 : i32
    return %arg0, %c0_i32, %c0_i32_0 : i32, i32, i32
  }
  func.func @transform_2(%arg0: i32) -> (i32, i32, i32) {
    %c0_i32 = arith.constant 0 : i32
    %c0_i32_0 = arith.constant 0 : i32
    %c0_i32_1 = arith.constant 0 : i32
    return %arg0, %c0_i32, %c0_i32_0 : i32, i32, i32
  }
  func.func @transform_3(%arg0: i32) -> (i32, i32) {
    %c0_i32 = arith.constant 0 : i32
    %c0_i32_0 = arith.constant 0 : i32
    %c0_i32_1 = arith.constant 0 : i32
    return %c0_i32, %c0_i32_0 : i32, i32
  }
  func.func @transform_4(%arg0: i32) -> (i32, i32) {
    %c0_i32 = arith.constant 0 : i32
    %c0_i32_0 = arith.constant 0 : i32
    %c0_i32_1 = arith.constant 0 : i32
    return %c0_i32, %c0_i32_0 : i32, i32
  }
  func.func @transform_5(%arg0: i32) -> (i32, i32) {
    %c0_i32 = arith.constant 0 : i32
    %c0_i32_0 = arith.constant 0 : i32
    %c0_i32_1 = arith.constant 0 : i32
    return %c0_i32, %c0_i32_0 : i32, i32
  }
  func.func @transform_6(%arg0: i32) -> (i32, i32) {
    %c0_i32 = arith.constant 0 : i32
    %c0_i32_0 = arith.constant 0 : i32
    %c0_i32_1 = arith.constant 0 : i32
    return %c0_i32, %c0_i32_0 : i32, i32
  }
  func.func @transform_7(%arg0: i32) -> (i32, i32) {
    %c0_i32 = arith.constant 0 : i32
    %c0_i32_0 = arith.constant 0 : i32
    %c0_i32_1 = arith.constant 0 : i32
    return %c0_i32, %c0_i32_0 : i32, i32
  }
  func.func @transform_8(%arg0: i32) -> (i32, i32) {
    %c0_i32 = arith.constant 0 : i32
    %c0_i32_0 = arith.constant 0 : i32
    %c0_i32_1 = arith.constant 0 : i32
    return %c0_i32, %c0_i32_0 : i32, i32
  }
  func.func @transform_9(%arg0: i32) -> (i32, i32) {
    %c0_i32 = arith.constant 0 : i32
    %c0_i32_0 = arith.constant 0 : i32
    %c0_i32_1 = arith.constant 0 : i32
    return %c0_i32, %c0_i32_0 : i32, i32
  }
  func.func @transform_10(%arg0: i32) -> (i32, i32) {
    %c0_i32 = arith.constant 0 : i32
    %c0_i32_0 = arith.constant 0 : i32
    %c0_i32_1 = arith.constant 0 : i32
    return %c0_i32, %c0_i32_0 : i32, i32
  }
  func.func @transform_11(%arg0: i32) -> (i32, i32) {
    %c0_i32 = arith.constant 0 : i32
    %c0_i32_0 = arith.constant 0 : i32
    %c0_i32_1 = arith.constant 0 : i32
    return %c0_i32, %c0_i32_0 : i32, i32
  }
  func.func @transform_12(%arg0: i32) -> (i32, i32) {
    %c0_i32 = arith.constant 0 : i32
    %c0_i32_0 = arith.constant 0 : i32
    %c0_i32_1 = arith.constant 0 : i32
    return %c0_i32, %c0_i32_0 : i32, i32
  }
  func.func @transform_13(%arg0: i32) -> (i32, i32) {
    %c0_i32 = arith.constant 0 : i32
    %c0_i32_0 = arith.constant 0 : i32
    %c0_i32_1 = arith.constant 0 : i32
    return %c0_i32, %c0_i32_0 : i32, i32
  }
  func.func @transform_14(%arg0: i32) -> (i32, i32, i32) {
    %c0_i32 = arith.constant 0 : i32
    %c0_i32_0 = arith.constant 0 : i32
    %c0_i32_1 = arith.constant 0 : i32
    return %arg0, %c0_i32, %c0_i32_0 : i32, i32, i32
  }
}

</mosaic_0001>

<llo_original>
// kernel: upsample_data_block_forward.1
$region0: #{upsample_data_block_forward.1}
  #allocation0 [shape = 'u32[]', space=smem, size = 0x4, offset = 0x4, fixed_abs, tag = 'smem constant byte address 0x4 - core index']
  #allocation1 [shape = 'u32[144,128]{1,0:T(1,128)}', space=vmem, size = 0x12000, scoped, tag = 'internal scratch']
  %s0 = inlined_call_operand.vmem [shape: f32[2,4,16], index: 0, kind: input, shape index: {}]
  %s1 = inlined_call_operand.vmem [shape: f32[2,4,1024], index: 1, kind: input, shape index: {}]
  %s2 = inlined_call_operand.vmem [shape: f32[2,4,256], index: 2, kind: input, shape index: {}]
  %s3 = inlined_call_operand.vmem [shape: bf16[16,64], index: 3, kind: input, shape index: {}]
  %s4 = inlined_call_operand.vmem [shape: bf16[4,72], index: 4, kind: input, shape index: {}]
  %s5 = inlined_call_operand.vmem [shape: f32[4,1], index: 5, kind: input, shape index: {}]
  %s6 = inlined_call_operand.vmem [shape: bf16[4,72], index: 6, kind: input, shape index: {}]
  %s7 = inlined_call_operand.vmem [shape: f32[4,1], index: 7, kind: input, shape index: {}]
  %s8 = inlined_call_operand.vmem [shape: bf16[64,1024], index: 8, kind: input, shape index: {}]
  %s9 = inlined_call_operand.vmem [shape: bf16[256,1024], index: 9, kind: input, shape index: {}]
  %s10 = inlined_call_operand.vmem [shape: bf16[8,144], index: 10, kind: input, shape index: {}]
  %s11 = inlined_call_operand.vmem [shape: f32[8,1], index: 11, kind: input, shape index: {}]
  %s12 = inlined_call_operand.vmem [shape: bf16[8,72], index: 12, kind: input, shape index: {}]
  %s13 = inlined_call_operand.vmem [shape: f32[8,1], index: 13, kind: input, shape index: {}]
  %s14 = inlined_call_operand.vmem [shape: f32[2,8,1024], index: 14, kind: output, shape index: {}]
  %s15 = sld [smem:[#allocation0]]
  $region89: #{upsample_data_block_forward.1} parent=0
    _
  %s17 = ssub.s32 1, %s15
  %s18 = scalar_select 0, %s17, %s15
  loop: start=0, step=1, limit=4
  $region2: #{upsample_data_block_forward.1} parent=0 // loop_pre_header
    _
  $region3: #{upsample_data_block_forward.1} parent=0 // loop_header
    %s20 = sphi 0, %s24
    %p21 = scmp.ge.s32.totalorder %s20, 4
    %s30 = sphi 0, %s32
    %s33 = sphi 0, %s30
    %s34 = sphi 0, %s33
    %s50 = sphi 0, %s34
    %s56 = sphi 0, %s58
    %s59 = sphi 0, %s56
    %s60 = sphi 0, %s59
    %s76 = sphi 0, %s60
    %s82 = sphi 0, %s84
    %s85 = sphi 0, %s82
    %s86 = sphi 0, %s85
    %s102 = sphi 0, %s86
    %s106 = sphi 0, %s106
    %s108 = sphi 0, %s106
    %s109 = sphi 0, %s108
    %s123 = sphi 0, %s109
    %s127 = sphi 0, %s127
    %s129 = sphi 0, %s127
    %s130 = sphi 0, %s129
    %s144 = sphi 0, %s130
    %s148 = sphi 0, %s148
    %s150 = sphi 0, %s148
    %s151 = sphi 0, %s150
    %s165 = sphi 0, %s151
    %s169 = sphi 0, %s169
    %s171 = sphi 0, %s169
    %s172 = sphi 0, %s171
    %s186 = sphi 0, %s172
    %s190 = sphi 0, %s190
    %s192 = sphi 0, %s190
    %s193 = sphi 0, %s192
    %s207 = sphi 0, %s193
    %s211 = sphi 0, %s211
    %s213 = sphi 0, %s211
    %s214 = sphi 0, %s213
    %s228 = sphi 0, %s214
    %s232 = sphi 0, %s232
    %s234 = sphi 0, %s232
    %s235 = sphi 0, %s234
    %s249 = sphi 0, %s235
    %s253 = sphi 0, %s253
    %s255 = sphi 0, %s253
    %s256 = sphi 0, %s255
    %s270 = sphi 0, %s256
    %s274 = sphi 0, %s274
    %s276 = sphi 0, %s274
    %s277 = sphi 0, %s276
    %s291 = sphi 0, %s277
    %s295 = sphi 0, %s295
    %s297 = sphi 0, %s295
    %s298 = sphi 0, %s297
    %s312 = sphi 0, %s298
    %s316 = sphi 0, %s316
    %s318 = sphi 0, %s316
    %s319 = sphi 0, %s318
    %s333 = sphi 0, %s319
    %s339 = sphi 0, %s341
    %s342 = sphi 0, %s339
    %s343 = sphi 0, %s342
    %s359 = sphi 0, %s343
  $region4: #{upsample_data_block_forward.1} parent=0 // loop_header_branch
    %23 = sbr.rel (%p21) target = $region8
  $region5: #{upsample_data_block_forward.1} parent=0 // loop_body
    %s25 = ssub.s32 %s20, 1
    %s26 = ssub.s32 %s20, 2
    %s27 = sadd.s32 %s20, 1
    %s28 = ssub.s32 %s20, %s27
    %p29 = scmp.eq.s32.totalorder %s28, 0
    %s31 = sadd.s32 %s30, 1
    %s32 = scalar_select %p29, %s30, %s31
    %p35 = pneg %p29
    %p36 = scmp.eq.s32.totalorder %s20, 1
    %p37 = por %p35, %p36
    %p38 = scmp.ne.s32.totalorder %s30, %s33
    %p39 = scmp.eq.s32.totalorder %s20, 0
    %p40 = por %p38, %p39
    %p41 = scmp.ne.s32.totalorder %s30, %s33
    %p42 = scmp.eq.s32.totalorder %s25, 1
    %p43 = por %p41, %p42
    %p44 = scmp.ne.s32.totalorder %s33, %s34
    %p45 = scmp.eq.s32.totalorder %s25, 0
    %p46 = por %p44, %p45
    %p47 = scmp.ne.s32.totalorder %s33, %s34
    %p48 = scmp.eq.s32.totalorder %s26, 1
    %p49 = por %p47, %p48
    %p51 = scmp.ne.s32.totalorder %s34, %s50
    %p52 = scmp.eq.s32.totalorder %s26, 0
    %p53 = por %p51, %p52
    %s54 = ssub.s32 %s20, %s27
    %p55 = scmp.eq.s32.totalorder %s54, 0
    %s57 = sadd.s32 %s56, 1
    %s58 = scalar_select %p55, %s56, %s57
    %p61 = pneg %p55
    %p62 = scmp.eq.s32.totalorder %s20, 1
    %p63 = por %p61, %p62
    %p64 = scmp.ne.s32.totalorder %s56, %s59
    %p65 = scmp.eq.s32.totalorder %s20, 0
    %p66 = por %p64, %p65
    %p67 = scmp.ne.s32.totalorder %s56, %s59
    %p68 = scmp.eq.s32.totalorder %s25, 1
    %p69 = por %p67, %p68
    %p70 = scmp.ne.s32.totalorder %s59, %s60
    %p71 = scmp.eq.s32.totalorder %s25, 0
    %p72 = por %p70, %p71
    %p73 = scmp.ne.s32.totalorder %s59, %s60
    %p74 = scmp.eq.s32.totalorder %s26, 1
    %p75 = por %p73, %p74
    %p77 = scmp.ne.s32.totalorder %s60, %s76
    %p78 = scmp.eq.s32.totalorder %s26, 0
    %p79 = por %p77, %p78
    %s80 = ssub.s32 %s20, %s27
    %p81 = scmp.eq.s32.totalorder %s80, 0
    %s83 = sadd.s32 %s82, 1
    %s84 = scalar_select %p81, %s82, %s83
    %p87 = pneg %p81
    %p88 = scmp.eq.s32.totalorder %s20, 1
    %p89 = por %p87, %p88
    %p90 = scmp.ne.s32.totalorder %s82, %s85
    %p91 = scmp.eq.s32.totalorder %s20, 0
    %p92 = por %p90, %p91
    %p93 = scmp.ne.s32.totalorder %s82, %s85
    %p94 = scmp.eq.s32.totalorder %s25, 1
    %p95 = por %p93, %p94
    %p96 = scmp.ne.s32.totalorder %s85, %s86
    %p97 = scmp.eq.s32.totalorder %s25, 0
    %p98 = por %p96, %p97
    %p99 = scmp.ne.s32.totalorder %s85, %s86
    %p100 = scmp.eq.s32.totalorder %s26, 1
    %p101 = por %p99, %p100
    %p103 = scmp.ne.s32.totalorder %s86, %s102
    %p104 = scmp.eq.s32.totalorder %s26, 0
    %p105 = por %p103, %p104
    %s107 = sadd.s32 %s106, 1
    %p110 = scmp.eq.s32.totalorder %s20, 1
    %p111 = scmp.ne.s32.totalorder %s106, %s108
    %p112 = scmp.eq.s32.totalorder %s20, 0
    %p113 = por %p111, %p112
    %p114 = scmp.ne.s32.totalorder %s106, %s108
    %p115 = scmp.eq.s32.totalorder %s25, 1
    %p116 = por %p114, %p115
    %p117 = scmp.ne.s32.totalorder %s108, %s109
    %p118 = scmp.eq.s32.totalorder %s25, 0
    %p119 = por %p117, %p118
    %p120 = scmp.ne.s32.totalorder %s108, %s109
    %p121 = scmp.eq.s32.totalorder %s26, 1
    %p122 = por %p120, %p121
    %p124 = scmp.ne.s32.totalorder %s109, %s123
    %p125 = scmp.eq.s32.totalorder %s26, 0
    %p126 = por %p124, %p125
    %s128 = sadd.s32 %s127, 1
    %p131 = scmp.eq.s32.totalorder %s20, 1
    %p132 = scmp.ne.s32.totalorder %s127, %s129
    %p133 = scmp.eq.s32.totalorder %s20, 0
    %p134 = por %p132, %p133
    %p135 = scmp.ne.s32.totalorder %s127, %s129
    %p136 = scmp.eq.s32.totalorder %s25, 1
    %p137 = por %p135, %p136
    %p138 = scmp.ne.s32.totalorder %s129, %s130
    %p139 = scmp.eq.s32.totalorder %s25, 0
    %p140 = por %p138, %p139
    %p141 = scmp.ne.s32.totalorder %s129, %s130
    %p142 = scmp.eq.s32.totalorder %s26, 1
    %p143 = por %p141, %p142
    %p145 = scmp.ne.s32.totalorder %s130, %s144
    %p146 = scmp.eq.s32.totalorder %s26, 0
    %p147 = por %p145, %p146
    %s149 = sadd.s32 %s148, 1
    %p152 = scmp.eq.s32.totalorder %s20, 1
    %p153 = scmp.ne.s32.totalorder %s148, %s150
    %p154 = scmp.eq.s32.totalorder %s20, 0
    %p155 = por %p153, %p154
    %p156 = scmp.ne.s32.totalorder %s148, %s150
    %p157 = scmp.eq.s32.totalorder %s25, 1
    %p158 = por %p156, %p157
    %p159 = scmp.ne.s32.totalorder %s150, %s151
    %p160 = scmp.eq.s32.totalorder %s25, 0
    %p161 = por %p159, %p160
    %p162 = scmp.ne.s32.totalorder %s150, %s151
    %p163 = scmp.eq.s32.totalorder %s26, 1
    %p164 = por %p162, %p163
    %p166 = scmp.ne.s32.totalorder %s151, %s165
    %p167 = scmp.eq.s32.totalorder %s26, 0
    %p168 = por %p166, %p167
    %s170 = sadd.s32 %s169, 1
    %p173 = scmp.eq.s32.totalorder %s20, 1
    %p174 = scmp.ne.s32.totalorder %s169, %s171
    %p175 = scmp.eq.s32.totalorder %s20, 0
    %p176 = por %p174, %p175
    %p177 = scmp.ne.s32.totalorder %s169, %s171
    %p178 = scmp.eq.s32.totalorder %s25, 1
    %p179 = por %p177, %p178
    %p180 = scmp.ne.s32.totalorder %s171, %s172
    %p181 = scmp.eq.s32.totalorder %s25, 0
    %p182 = por %p180, %p181
    %p183 = scmp.ne.s32.totalorder %s171, %s172
    %p184 = scmp.eq.s32.totalorder %s26, 1
    %p185 = por %p183, %p184
    %p187 = scmp.ne.s32.totalorder %s172, %s186
    %p188 = scmp.eq.s32.totalorder %s26, 0
    %p189 = por %p187, %p188
    %s191 = sadd.s32 %s190, 1
    %p194 = scmp.eq.s32.totalorder %s20, 1
    %p195 = scmp.ne.s32.totalorder %s190, %s192
    %p196 = scmp.eq.s32.totalorder %s20, 0
    %p197 = por %p195, %p196
    %p198 = scmp.ne.s32.totalorder %s190, %s192
    %p199 = scmp.eq.s32.totalorder %s25, 1
    %p200 = por %p198, %p199
    %p201 = scmp.ne.s32.totalorder %s192, %s193
    %p202 = scmp.eq.s32.totalorder %s25, 0
    %p203 = por %p201, %p202
    %p204 = scmp.ne.s32.totalorder %s192, %s193
    %p205 = scmp.eq.s32.totalorder %s26, 1
    %p206 = por %p204, %p205
    %p208 = scmp.ne.s32.totalorder %s193, %s207
    %p209 = scmp.eq.s32.totalorder %s26, 0
    %p210 = por %p208, %p209
    %s212 = sadd.s32 %s211, 1
    %p215 = scmp.eq.s32.totalorder %s20, 1
    %p216 = scmp.ne.s32.totalorder %s211, %s213
    %p217 = scmp.eq.s32.totalorder %s20, 0
    %p218 = por %p216, %p217
    %p219 = scmp.ne.s32.totalorder %s211, %s213
    %p220 = scmp.eq.s32.totalorder %s25, 1
    %p221 = por %p219, %p220
    %p222 = scmp.ne.s32.totalorder %s213, %s214
    %p223 = scmp.eq.s32.totalorder %s25, 0
    %p224 = por %p222, %p223
    %p225 = scmp.ne.s32.totalorder %s213, %s214
    %p226 = scmp.eq.s32.totalorder %s26, 1
    %p227 = por %p225, %p226
    %p229 = scmp.ne.s32.totalorder %s214, %s228
    %p230 = scmp.eq.s32.totalorder %s26, 0
    %p231 = por %p229, %p230
    %s233 = sadd.s32 %s232, 1
    %p236 = scmp.eq.s32.totalorder %s20, 1
    %p237 = scmp.ne.s32.totalorder %s232, %s234
    %p238 = scmp.eq.s32.totalorder %s20, 0
    %p239 = por %p237, %p238
    %p240 = scmp.ne.s32.totalorder %s232, %s234
    %p241 = scmp.eq.s32.totalorder %s25, 1
    %p242 = por %p240, %p241
    %p243 = scmp.ne.s32.totalorder %s234, %s235
    %p244 = scmp.eq.s32.totalorder %s25, 0
    %p245 = por %p243, %p244
    %p246 = scmp.ne.s32.totalorder %s234, %s235
    %p247 = scmp.eq.s32.totalorder %s26, 1
    %p248 = por %p246, %p247
    %p250 = scmp.ne.s32.totalorder %s235, %s249
    %p251 = scmp.eq.s32.totalorder %s26, 0
    %p252 = por %p250, %p251
    %s254 = sadd.s32 %s253, 1
    %p257 = scmp.eq.s32.totalorder %s20, 1
    %p258 = scmp.ne.s32.totalorder %s253, %s255
    %p259 = scmp.eq.s32.totalorder %s20, 0
    %p260 = por %p258, %p259
    %p261 = scmp.ne.s32.totalorder %s253, %s255
    %p262 = scmp.eq.s32.totalorder %s25, 1
    %p263 = por %p261, %p262
    %p264 = scmp.ne.s32.totalorder %s255, %s256
    %p265 = scmp.eq.s32.totalorder %s25, 0
    %p266 = por %p264, %p265
    %p267 = scmp.ne.s32.totalorder %s255, %s256
    %p268 = scmp.eq.s32.totalorder %s26, 1
    %p269 = por %p267, %p268
    %p271 = scmp.ne.s32.totalorder %s256, %s270
    %p272 = scmp.eq.s32.totalorder %s26, 0
    %p273 = por %p271, %p272
    %s275 = sadd.s32 %s274, 1
    %p278 = scmp.eq.s32.totalorder %s20, 1
    %p279 = scmp.ne.s32.totalorder %s274, %s276
    %p280 = scmp.eq.s32.totalorder %s20, 0
    %p281 = por %p279, %p280
    %p282 = scmp.ne.s32.totalorder %s274, %s276
    %p283 = scmp.eq.s32.totalorder %s25, 1
    %p284 = por %p282, %p283
    %p285 = scmp.ne.s32.totalorder %s276, %s277
    %p286 = scmp.eq.s32.totalorder %s25, 0
    %p287 = por %p285, %p286
    %p288 = scmp.ne.s32.totalorder %s276, %s277
    %p289 = scmp.eq.s32.totalorder %s26, 1
    %p290 = por %p288, %p289
    %p292 = scmp.ne.s32.totalorder %s277, %s291
    %p293 = scmp.eq.s32.totalorder %s26, 0
    %p294 = por %p292, %p293
    %s296 = sadd.s32 %s295, 1
    %p299 = scmp.eq.s32.totalorder %s20, 1
    %p300 = scmp.ne.s32.totalorder %s295, %s297
    %p301 = scmp.eq.s32.totalorder %s20, 0
    %p302 = por %p300, %p301
    %p303 = scmp.ne.s32.totalorder %s295, %s297
    %p304 = scmp.eq.s32.totalorder %s25, 1
    %p305 = por %p303, %p304
    %p306 = scmp.ne.s32.totalorder %s297, %s298
    %p307 = scmp.eq.s32.totalorder %s25, 0
    %p308 = por %p306, %p307
    %p309 = scmp.ne.s32.totalorder %s297, %s298
    %p310 = scmp.eq.s32.totalorder %s26, 1
    %p311 = por %p309, %p310
    %p313 = scmp.ne.s32.totalorder %s298, %s312
    %p314 = scmp.eq.s32.totalorder %s26, 0
    %p315 = por %p313, %p314
    %s317 = sadd.s32 %s316, 1
    %p320 = scmp.eq.s32.totalorder %s20, 1
    %p321 = scmp.ne.s32.totalorder %s316, %s318
    %p322 = scmp.eq.s32.totalorder %s20, 0
    %p323 = por %p321, %p322
    %p324 = scmp.ne.s32.totalorder %s316, %s318
    %p325 = scmp.eq.s32.totalorder %s25, 1
    %p326 = por %p324, %p325
    %p327 = scmp.ne.s32.totalorder %s318, %s319
    %p328 = scmp.eq.s32.totalorder %s25, 0
    %p329 = por %p327, %p328
    %p330 = scmp.ne.s32.totalorder %s318, %s319
    %p331 = scmp.eq.s32.totalorder %s26, 1
    %p332 = por %p330, %p331
    %p334 = scmp.ne.s32.totalorder %s319, %s333
    %p335 = scmp.eq.s32.totalorder %s26, 0
    %p336 = por %p334, %p335
    %s337 = ssub.s32 %s20, %s27
    %p338 = scmp.eq.s32.totalorder %s337, 0
    %s340 = sadd.s32 %s339, 1
    %s341 = scalar_select %p338, %s339, %s340
    %p344 = pneg %p338
    %p345 = scmp.eq.s32.totalorder %s20, 1
    %p346 = por %p344, %p345
    %p347 = scmp.ne.s32.totalorder %s339, %s342
    %p348 = scmp.eq.s32.totalorder %s20, 0
    %p349 = por %p347, %p348
    %p350 = scmp.ne.s32.totalorder %s339, %s342
    %p351 = scmp.eq.s32.totalorder %s25, 1
    %p352 = por %p350, %p351
    %p353 = scmp.ne.s32.totalorder %s342, %s343
    %p354 = scmp.eq.s32.totalorder %s25, 0
    %p355 = por %p353, %p354
    %p356 = scmp.ne.s32.totalorder %s342, %s343
    %p357 = scmp.eq.s32.totalorder %s26, 1
    %p358 = por %p356, %p357
    %p360 = scmp.ne.s32.totalorder %s343, %s359
    %p361 = scmp.eq.s32.totalorder %s26, 0
    %p362 = por %p360, %p361
    %p363 = scmp.le.s32.totalorder 1, %s20
    %p364 = scmp.lt.s32.totalorder %s20, 3
    %p365 = pnand %p363, %p364
    %p366 = pneg %p365
    // Predicated region
    $region9: #{upsample_data_block_forward.1} parent=5 // pred_check
      _
    $region10: #{upsample_data_block_forward.1} parent=5 // pred_check_branch
      %368 = sbr.rel (%p365) target = $region12
    $region11: #{upsample_data_block_forward.1} parent=5 // pred_region
      %s369 = ssub.s32 %s20, 1
      // Predicated region
      $region13: #{upsample_data_block_forward.1} parent=11 // pred_check
        %p370 = pneg %p119
      $region14: #{upsample_data_block_forward.1} parent=11 // pred_check_branch
        %372 = sbr.rel (%p370) target = $region16
      $region15: #{upsample_data_block_forward.1} parent=11 // pred_region
        _
      $region16: #{upsample_data_block_forward.1} parent=11 // pred_fallthru
        _
      // Predicated region
      $region17: #{upsample_data_block_forward.1} parent=11 // pred_check
        %p373 = pneg %p140
      $region18: #{upsample_data_block_forward.1} parent=11 // pred_check_branch
        %375 = sbr.rel (%p373) target = $region20
      $region19: #{upsample_data_block_forward.1} parent=11 // pred_region
        _
      $region20: #{upsample_data_block_forward.1} parent=11 // pred_fallthru
        _
      // Predicated region
      $region21: #{upsample_data_block_forward.1} parent=11 // pred_check
        %p376 = pneg %p161
      $region22: #{upsample_data_block_forward.1} parent=11 // pred_check_branch
        %378 = sbr.rel (%p376) target = $region24
      $region23: #{upsample_data_block_forward.1} parent=11 // pred_region
        _
      $region24: #{upsample_data_block_forward.1} parent=11 // pred_fallthru
        _
      // Predicated region
      $region25: #{upsample_data_block_forward.1} parent=11 // pred_check
        %p379 = pneg %p182
      $region26: #{upsample_data_block_forward.1} parent=11 // pred_check_branch
        %381 = sbr.rel (%p379) target = $region28
      $region27: #{upsample_data_block_forward.1} parent=11 // pred_region
        _
      $region28: #{upsample_data_block_forward.1} parent=11 // pred_fallthru
        _
      // Predicated region
      $region29: #{upsample_data_block_forward.1} parent=11 // pred_check
        %p382 = pneg %p203
      $region30: #{upsample_data_block_forward.1} parent=11 // pred_check_branch
        %384 = sbr.rel (%p382) target = $region32
      $region31: #{upsample_data_block_forward.1} parent=11 // pred_region
        _
      $region32: #{upsample_data_block_forward.1} parent=11 // pred_fallthru
        _
      // Predicated region
      $region33: #{upsample_data_block_forward.1} parent=11 // pred_check
        %p385 = pneg %p224
      $region34: #{upsample_data_block_forward.1} parent=11 // pred_check_branch
        %387 = sbr.rel (%p385) target = $region36
      $region35: #{upsample_data_block_forward.1} parent=11 // pred_region
        _
      $region36: #{upsample_data_block_forward.1} parent=11 // pred_fallthru
        _
      // Predicated region
      $region37: #{upsample_data_block_forward.1} parent=11 // pred_check
        %p388 = pneg %p245
      $region38: #{upsample_data_block_forward.1} parent=11 // pred_check_branch
        %390 = sbr.rel (%p388) target = $region40
      $region39: #{upsample_data_block_forward.1} parent=11 // pred_region
        _
      $region40: #{upsample_data_block_forward.1} parent=11 // pred_fallthru
        _
      // Predicated region
      $region41: #{upsample_data_block_forward.1} parent=11 // pred_check
        %p391 = pneg %p266
      $region42: #{upsample_data_block_forward.1} parent=11 // pred_check_branch
        %393 = sbr.rel (%p391) target = $region44
      $region43: #{upsample_data_block_forward.1} parent=11 // pred_region
        _
      $region44: #{upsample_data_block_forward.1} parent=11 // pred_fallthru
        _
      // Predicated region
      $region45: #{upsample_data_block_forward.1} parent=11 // pred_check
        %p394 = pneg %p287
      $region46: #{upsample_data_block_forward.1} parent=11 // pred_check_branch
        %396 = sbr.rel (%p394) target = $region48
      $region47: #{upsample_data_block_forward.1} parent=11 // pred_region
        _
      $region48: #{upsample_data_block_forward.1} parent=11 // pred_fallthru
        _
      // Predicated region
      $region49: #{upsample_data_block_forward.1} parent=11 // pred_check
        %p397 = pneg %p308
      $region50: #{upsample_data_block_forward.1} parent=11 // pred_check_branch
        %399 = sbr.rel (%p397) target = $region52
      $region51: #{upsample_data_block_forward.1} parent=11 // pred_region
        _
      $region52: #{upsample_data_block_forward.1} parent=11 // pred_fallthru
        _
      // Predicated region
      $region53: #{upsample_data_block_forward.1} parent=11 // pred_check
        %p400 = pneg %p329
      $region54: #{upsample_data_block_forward.1} parent=11 // pred_check_branch
        %402 = sbr.rel (%p400) target = $region56
      $region55: #{upsample_data_block_forward.1} parent=11 // pred_region
        _
      $region56: #{upsample_data_block_forward.1} parent=11 // pred_fallthru
        _
    $region12: #{upsample_data_block_forward.1} parent=5 // pred_fallthru
      _
    %p403 = scmp.lt.s32.totalorder %s20, 2
    // Predicated region
    $region57: #{upsample_data_block_forward.1} parent=5 // pred_check
      %p404 = pneg %p403
    $region58: #{upsample_data_block_forward.1} parent=5 // pred_check_branch
      %406 = sbr.rel (%p404) target = $region60
    $region59: #{upsample_data_block_forward.1} parent=5 // pred_region
      // Predicated region
      $region61: #{upsample_data_block_forward.1} parent=59 // pred_check
        %p407 = pneg %p40
      $region62: #{upsample_data_block_forward.1} parent=59 // pred_check_branch
        %409 = sbr.rel (%p407) target = $region64
      $region63: #{upsample_data_block_forward.1} parent=59 // pred_region
        %p410 = scmp.lt.s32.totalorder %s20, 1
        %s411 = scalar_select %p410, %s20, 1
        %s412 = smul.addr %s411, 4
        %s413 = scalar_lea.vmem %s0, %s412
      $region64: #{upsample_data_block_forward.1} parent=59 // pred_fallthru
        _
      // Predicated region
      $region65: #{upsample_data_block_forward.1} parent=59 // pred_check
        %p414 = pneg %p66
      $region66: #{upsample_data_block_forward.1} parent=59 // pred_check_branch
        %416 = sbr.rel (%p414) target = $region68
      $region67: #{upsample_data_block_forward.1} parent=59 // pred_region
        %p417 = scmp.lt.s32.totalorder %s20, 1
        %s418 = scalar_select %p417, %s20, 1
        %s419 = smul.addr %s418, 8
        %s420 = smul.addr %s419, 4
        %s421 = scalar_lea.vmem %s1, %s420
      $region68: #{upsample_data_block_forward.1} parent=59 // pred_fallthru
        _
      // Predicated region
      $region69: #{upsample_data_block_forward.1} parent=59 // pred_check
        %p422 = pneg %p92
      $region70: #{upsample_data_block_forward.1} parent=59 // pred_check_branch
        %424 = sbr.rel (%p422) target = $region72
      $region71: #{upsample_data_block_forward.1} parent=59 // pred_region
        %p425 = scmp.lt.s32.totalorder %s20, 1
        %s426 = scalar_select %p425, %s20, 1
        %s427 = smul.addr %s426, 2
        %s428 = smul.addr %s427, 4
        %s429 = scalar_lea.vmem %s2, %s428
      $region72: #{upsample_data_block_forward.1} parent=59 // pred_fallthru
        _
    $region60: #{upsample_data_block_forward.1} parent=5 // pred_fallthru
      _
    %p430 = scmp.le.s32.totalorder 1, %s20
    %p431 = scmp.lt.s32.totalorder %s20, 3
    %p432 = pnand %p430, %p431
    %p433 = pneg %p432
    // Predicated region
    $region73: #{upsample_data_block_forward.1} parent=5 // pred_check
      _
    $region74: #{upsample_data_block_forward.1} parent=5 // pred_check_branch
      %435 = sbr.rel (%p432) target = $region76
    $region75: #{upsample_data_block_forward.1} parent=5 // pred_region
      %s436 = ssub.s32 %s20, 1
      %p437 = scmp.lt.s32.totalorder %s25, 1
      %s438 = scalar_select %p437, %s25, 1
      %s439 = smul.addr %s438, 4
      %s440 = scalar_lea.vmem %s0, %s439
      %p441 = pneg %p46
      %p442 = pneg %p43
      %p443 = scmp.lt.s32.totalorder %s25, 1
      %s444 = scalar_select %p443, %s25, 1
      %s445 = smul.addr %s444, 8
      %s446 = smul.addr %s445, 4
      %s447 = scalar_lea.vmem %s1, %s446
      %p448 = pneg %p72
      %p449 = pneg %p69
      %p450 = scmp.lt.s32.totalorder %s25, 1
      %s451 = scalar_select %p450, %s25, 1
      %s452 = smul.addr %s451, 2
      %s453 = smul.addr %s452, 4
      %s454 = scalar_lea.vmem %s2, %s453
      %p455 = pneg %p98
      %p456 = pneg %p95
      %p457 = pneg %p119
      %p458 = pneg %p116
      %p459 = pneg %p140
      %p460 = pneg %p137
      %p461 = pneg %p161
      %p462 = pneg %p158
      %p463 = pneg %p182
      %p464 = pneg %p179
      %p465 = pneg %p203
      %p466 = pneg %p200
      %p467 = pneg %p224
      %p468 = pneg %p221
      %p469 = pneg %p245
      %p470 = pneg %p242
      %p471 = pneg %p266
      %p472 = pneg %p263
      %p473 = pneg %p287
      %p474 = pneg %p284
      %p475 = pneg %p308
      %p476 = pneg %p305
      %p477 = pneg %p329
      %p478 = pneg %p326
      %p479 = pneg %p355
      %p480 = pneg %p352
      %p481 = scmp.lt.s32.totalorder %s25, 1
      %s482 = scalar_select %p481, %s25, 1
      %s483 = smul.addr %s482, 8
      %s484 = smul.addr %s483, 8
      %s485 = scalar_lea.vmem %s14, %s484
      %p486 = scmp.lt.s32.totalorder %s25, 1
      %s487 = scalar_select %p486, %s25, 1
      %s488 = smul.addr %s487, 4
      %s489 = scalar_lea.vmem %s0, %s488
      %p490 = scmp.lt.s32.totalorder %s25, 1
      %s491 = scalar_select %p490, %s25, 1
      %s492 = smul.addr %s491, 8
      %s493 = smul.addr %s492, 4
      %s494 = scalar_lea.vmem %s1, %s493
      %p495 = scmp.lt.s32.totalorder %s25, 1
      %s496 = scalar_select %p495, %s25, 1
      %s497 = smul.addr %s496, 2
      %s498 = smul.addr %s497, 4
      %s499 = scalar_lea.vmem %s2, %s498
      %p500 = scmp.lt.s32.totalorder %s25, 1
      %s501 = scalar_select %p500, %s25, 1
      %s502 = smul.addr %s501, 8
      %s503 = smul.addr %s502, 8
      %s504 = scalar_lea.vmem %s14, %s503
      %v506 = vld [vmem:[%s489] sm:$0xf]
      %v507 = vpack.c.bf16 %v506, %v506
      %v508 = vld [vmem:[%s3] sm:$0xf]
      %v509 = vld [vmem:[%s3 + $0x4] sm:$0xf]
      %v512 = vunpack.c.l.b16 %v508
      %v513 = vunpack.c.l.b16 %v509
      %v514 = vpack.c.b16 %v513, %v512
      %vm516 = vcmask 130048
      %v518 = vsel %vm516, %v507, 0
      %520 = vmatprep.subr.bf16.mxu0 0
      %521 = vmatpush1.bf16.msra.mxu0 0
      %522 = vmatprep.subr.bf16.mxu0 0
      %523 = vmatpush1.bf16.msra.mxu0 0
      %524 = vmatprep.subr.bf16.mxu0 0
      %525 = vmatpush1.bf16.msra.mxu0 0
      %526 = vmatprep.subr.bf16.mxu0 0
      %527 = vmatpush1.bf16.msra.mxu0 0
      %528 = vmatprep.subr.bf16.mxu0 0
      %529 = vmatpush1.bf16.msra.mxu0 0
      %530 = vmatprep.subr.bf16.mxu0 0
      %531 = vmatpush1.bf16.msra.mxu0 0
      %532 = vmatprep.subr.bf16.mxu0 0
      %533 = vmatpush1.bf16.msra.mxu0 0
      %534 = vmatprep.subr.bf16.mxu0 0
      %535 = vmatpush1.bf16.msra.mxu0 %v514
      %536 = vmatprep.subr.bf16.mxu0 0
      %537 = vmatpush2.bf16.msra.mxu0 0
      %538 = vmatprep.subr.bf16.mxu0 0
      %539 = vmatpush2.bf16.msra.mxu0 0
      %540 = vmatprep.subr.bf16.mxu0 0
      %541 = vmatpush2.bf16.msra.mxu0 0
      %542 = vmatprep.subr.bf16.mxu0 0
      %543 = vmatpush2.bf16.msra.mxu0 0
      %544 = vmatprep.subr.bf16.mxu0 0
      %545 = vmatpush2.bf16.msra.mxu0 0
      %546 = vmatprep.subr.bf16.mxu0 0
      %547 = vmatpush2.bf16.msra.mxu0 0
      %548 = vmatprep.subr.bf16.mxu0 0
      %549 = vmatpush2.bf16.msra.mxu0 0
      %550 = vmatprep.subr.bf16.mxu0 0
      %551 = vmatpush2.bf16.msra.mxu0 0
      %552 = vmatprep.mubr.bf16.mxu0 0
      %553 = vmatmul.mubr.bf16.gmra.mxu0 %v518
      %v554 = vpop.f32.mrf.mxu0
      %v555 = vadd.f32 0.0, %v554
      %v556 = vpop.f32.mrf.mxu0
      %v557 = vpop.f32.mrf.mxu0
      %v558 = vpop.f32.mrf.mxu0
      %559 = vdwg.mxu0
      %v560 = vlaneseq
      %v561 = vand.u32 %v560, 127
      %v562 = vand.u32 %v561, 7
      %v563 = vshra.s32 %v561, 3
      %vm564 = vcmp.ge.s32.totalorder %v563, 1
      %vm565 = vcmp.le.s32.totalorder %v563, 6
      %vm566 = vcmp.ge.s32.totalorder %v562, 1
      %vm567 = vcmp.le.s32.totalorder %v562, 6
      %vm568 = vmand %vm564, %vm566
      %vm569 = vmand %vm564, %vm567
      %vm570 = vmand %vm565, %vm566
      %vm571 = vmand %vm565, %vm567
      %v572 = vld [vmem:[%s4] sm:$0x3]
      %v573 = vld [vmem:[%s5] sm:$0xf]
      %vm574 = vcmask 1043456
      %v575 = vsel %vm574, %v555, 0.0
      %577 = vrot.lane.b32.xlu0 %v575, 73
      %v578 = vpop.permute.xlu0 %577
      %580 = vrot.lane.b32.xlu0 %v575, 9
      %v581 = vpop.permute.xlu0 %580
      %vm583 = vcmask 72704
      %v584 = vsel %vm583, %v578, %v581
      %v585 = vsel %vm568, 1, 0
      %vm586 = vcmp.eq.s32.totalorder %v585, 1
      %v587 = vsel %vm586, %v584, 0.0
      %588 = vrot.lane.b32.xlu0 %v575, 72
      %v589 = vpop.permute.xlu0 %588
      %591 = vrot.lane.b32.xlu0 %v575, 8
      %v592 = vpop.permute.xlu0 %591
      %vm594 = vcmask 64512
      %v595 = vsel %vm594, %v589, %v592
      %v596 = vsel %vm564, 1, 0
      %vm597 = vcmp.eq.s32.totalorder %v596, 1
      %v598 = vsel %vm597, %v595, 0.0
      %599 = vrot.lane.b32.xlu0 %v575, 71
      %v600 = vpop.permute.xlu0 %599
      %602 = vrot.lane.b32.xlu0 %v575, 7
      %v603 = vpop.permute.xlu0 %602
      %vm605 = vcmask 56320
      %v606 = vsel %vm605, %v600, %v603
      %v607 = vsel %vm569, 1, 0
      %vm608 = vcmp.eq.s32.totalorder %v607, 1
      %v609 = vsel %vm608, %v606, 0.0
      %610 = vrot.lane.b32.xlu0 %v575, 65
      %v611 = vpop.permute.xlu0 %610
      %613 = vrot.lane.b32.xlu0 %v575, 1
      %v614 = vpop.permute.xlu0 %613
      %vm616 = vcmask 7168
      %v617 = vsel %vm616, %v611, %v614
      %v618 = vsel %vm566, 1, 0
      %vm619 = vcmp.eq.s32.totalorder %v618, 1
      %v620 = vsel %vm619, %v617, 0.0
      %621 = vrot.lane.b32.xlu0 %v575, 127
      %v622 = vpop.permute.xlu0 %621
      %624 = vrot.lane.b32.xlu0 %v575, 63
      %v625 = vpop.permute.xlu0 %624
      %vm627 = vcmask 515072
      %v628 = vsel %vm627, %v622, %v625
      %v629 = vsel %vm567, 1, 0
      %vm630 = vcmp.eq.s32.totalorder %v629, 1
      %v631 = vsel %vm630, %v628, 0.0
      %632 = vrot.lane.b32.xlu0 %v575, 121
      %v633 = vpop.permute.xlu0 %632
      %635 = vrot.lane.b32.xlu0 %v575, 57
      %v636 = vpop.permute.xlu0 %635
      %vm638 = vcmask 465920
      %v639 = vsel %vm638, %v633, %v636
      %v640 = vsel %vm570, 1, 0
      %vm641 = vcmp.eq.s32.totalorder %v640, 1
      %v642 = vsel %vm641, %v639, 0.0
      %643 = vrot.lane.b32.xlu0 %v575, 120
      %v644 = vpop.permute.xlu0 %643
      %646 = vrot.lane.b32.xlu0 %v575, 56
      %v647 = vpop.permute.xlu0 %646
      %vm649 = vcmask 457728
      %v650 = vsel %vm649, %v644, %v647
      %v651 = vsel %vm565, 1, 0
      %vm652 = vcmp.eq.s32.totalorder %v651, 1
      %v653 = vsel %vm652, %v650, 0.0
      %654 = vrot.lane.b32.xlu0 %v575, 119
      %v655 = vpop.permute.xlu0 %654
      %657 = vrot.lane.b32.xlu0 %v575, 55
      %v658 = vpop.permute.xlu0 %657
      %vm660 = vcmask 449536
      %v661 = vsel %vm660, %v655, %v658
      %v662 = vsel %vm571, 1, 0
      %vm663 = vcmp.eq.s32.totalorder %v662, 1
      %v664 = vsel %vm663, %v661, 0.0
      %v665 = vpack.c.bf16 %v598, %v587
      %v666 = vpack.c.bf16 %v620, %v609
      %v667 = vpack.c.bf16 %v631, %v575
      %v668 = vpack.c.bf16 %v653, %v642
      %v669 = vpack.c.bf16 %v664, %v664
      %671 = vset.pattern.permute.xlu0 0
      %672 = vperm.xlu0 %671, %v573
      %v673 = vpop.permute.xlu0 %672
      %vm675 = vcmask 588800
      %v677 = vsel %vm675, %v572, 0
      %v680 = vsel %vm574, %v669, 0
      %682 = vmatprep.subr.bf16.mxu0 0
      %683 = vmatpush1.bf16.msra.mxu0 0
      %684 = vmatprep.subr.bf16.mxu0 0
      %685 = vmatpush1.bf16.msra.mxu0 0
      %686 = vmatprep.subr.bf16.mxu0 0
      %687 = vmatpush1.bf16.msra.mxu0 0
      %688 = vmatprep.subr.bf16.mxu0 0
      %689 = vmatpush1.bf16.msra.mxu0 %v680
      %690 = vmatprep.subr.bf16.mxu0 0
      %691 = vmatpush1.bf16.msra.mxu0 %v668
      %692 = vmatprep.subr.bf16.mxu0 0
      %693 = vmatpush1.bf16.msra.mxu0 %v667
      %694 = vmatprep.subr.bf16.mxu0 0
      %695 = vmatpush1.bf16.msra.mxu0 %v666
      %696 = vmatprep.subr.bf16.mxu0 0
      %697 = vmatpush1.bf16.msra.mxu0 %v665
      %698 = vmatprep.subr.bf16.mxu0 0
      %699 = vmatpush2.bf16.msra.mxu0 0
      %700 = vmatprep.subr.bf16.mxu0 0
      %701 = vmatpush2.bf16.msra.mxu0 0
      %702 = vmatprep.subr.bf16.mxu0 0
      %703 = vmatpush2.bf16.msra.mxu0 0
      %704 = vmatprep.subr.bf16.mxu0 0
      %705 = vmatpush2.bf16.msra.mxu0 0
      %706 = vmatprep.subr.bf16.mxu0 0
      %707 = vmatpush2.bf16.msra.mxu0 0
      %708 = vmatprep.subr.bf16.mxu0 0
      %709 = vmatpush2.bf16.msra.mxu0 0
      %710 = vmatprep.subr.bf16.mxu0 0
      %711 = vmatpush2.bf16.msra.mxu0 0
      %712 = vmatprep.subr.bf16.mxu0 0
      %713 = vmatpush2.bf16.msra.mxu0 0
      %714 = vmatprep.mubr.bf16.mxu0 0
      %715 = vmatmul.mubr.bf16.gmra.mxu0 %v677
      %v716 = vpop.f32.mrf.mxu0
      %v717 = vadd.f32 %v673, %v716
      %v718 = vpop.f32.mrf.mxu0
      %v719 = vpop.f32.mrf.mxu0
      %v720 = vpop.f32.mrf.mxu0
      %721 = vdwg.mxu0
      %vm722 = vcmp.gt.f32.partialorder %v717, 0.0
      %v723 = vmul.f32 %v717, 0.01
      %v724 = vsel %vm722, %v717, %v723
      %v725 = vld [vmem:[%s6] sm:$0x3]
      %v726 = vld [vmem:[%s7] sm:$0xf]
      %v727 = vsel %vm574, %v724, 0.0
      %729 = vrot.lane.b32.xlu0 %v727, 73
      %v730 = vpop.permute.xlu0 %729
      %732 = vrot.lane.b32.xlu0 %v727, 9
      %v733 = vpop.permute.xlu0 %732
      %v735 = vsel %vm583, %v730, %v733
      %v736 = vsel %vm586, %v735, 0.0
      %737 = vrot.lane.b32.xlu0 %v727, 72
      %v738 = vpop.permute.xlu0 %737
      %740 = vrot.lane.b32.xlu0 %v727, 8
      %v741 = vpop.permute.xlu0 %740
      %v743 = vsel %vm594, %v738, %v741
      %v744 = vsel %vm597, %v743, 0.0
      %745 = vrot.lane.b32.xlu0 %v727, 71
      %v746 = vpop.permute.xlu0 %745
      %748 = vrot.lane.b32.xlu0 %v727, 7
      %v749 = vpop.permute.xlu0 %748
      %v751 = vsel %vm605, %v746, %v749
      %v752 = vsel %vm608, %v751, 0.0
      %753 = vrot.lane.b32.xlu0 %v727, 65
      %v754 = vpop.permute.xlu0 %753
      %756 = vrot.lane.b32.xlu0 %v727, 1
      %v757 = vpop.permute.xlu0 %756
      %v759 = vsel %vm616, %v754, %v757
      %v760 = vsel %vm619, %v759, 0.0
      %761 = vrot.lane.b32.xlu0 %v727, 127
      %v762 = vpop.permute.xlu0 %761
      %764 = vrot.lane.b32.xlu0 %v727, 63
      %v765 = vpop.permute.xlu0 %764
      %v767 = vsel %vm627, %v762, %v765
      %v768 = vsel %vm630, %v767, 0.0
      %769 = vrot.lane.b32.xlu0 %v727, 121
      %v770 = vpop.permute.xlu0 %769
      %772 = vrot.lane.b32.xlu0 %v727, 57
      %v773 = vpop.permute.xlu0 %772
      %v775 = vsel %vm638, %v770, %v773
      %v776 = vsel %vm641, %v775, 0.0
      %777 = vrot.lane.b32.xlu0 %v727, 120
      %v778 = vpop.permute.xlu0 %777
      %780 = vrot.lane.b32.xlu0 %v727, 56
      %v781 = vpop.permute.xlu0 %780
      %v783 = vsel %vm649, %v778, %v781
      %v784 = vsel %vm652, %v783, 0.0
      %785 = vrot.lane.b32.xlu0 %v727, 119
      %v786 = vpop.permute.xlu0 %785
      %788 = vrot.lane.b32.xlu0 %v727, 55
      %v789 = vpop.permute.xlu0 %788
      %v791 = vsel %vm660, %v786, %v789
      %v792 = vsel %vm663, %v791, 0.0
      %v793 = vpack.c.bf16 %v744, %v736
      %v794 = vpack.c.bf16 %v760, %v752
      %v795 = vpack.c.bf16 %v768, %v727
      %v796 = vpack.c.bf16 %v784, %v776
      %v797 = vpack.c.bf16 %v792, %v792
      %799 = vset.pattern.permute.xlu0 0
      %800 = vperm.xlu0 %799, %v726
      %v801 = vpop.permute.xlu0 %800
      %v804 = vsel %vm675, %v725, 0
      %v807 = vsel %vm574, %v797, 0
      %809 = vmatprep.subr.bf16.mxu0 0
      %810 = vmatpush1.bf16.msra.mxu0 0
      %811 = vmatprep.subr.bf16.mxu0 0
      %812 = vmatpush1.bf16.msra.mxu0 0
      %813 = vmatprep.subr.bf16.mxu0 0
      %814 = vmatpush1.bf16.msra.mxu0 0
      %815 = vmatprep.subr.bf16.mxu0 0
      %816 = vmatpush1.bf16.msra.mxu0 %v807
      %817 = vmatprep.subr.bf16.mxu0 0
      %818 = vmatpush1.bf16.msra.mxu0 %v796
      %819 = vmatprep.subr.bf16.mxu0 0
      %820 = vmatpush1.bf16.msra.mxu0 %v795
      %821 = vmatprep.subr.bf16.mxu0 0
      %822 = vmatpush1.bf16.msra.mxu0 %v794
      %823 = vmatprep.subr.bf16.mxu0 0
      %824 = vmatpush1.bf16.msra.mxu0 %v793
      %825 = vmatprep.subr.bf16.mxu0 0
      %826 = vmatpush2.bf16.msra.mxu0 0
      %827 = vmatprep.subr.bf16.mxu0 0
      %828 = vmatpush2.bf16.msra.mxu0 0
      %829 = vmatprep.subr.bf16.mxu0 0
      %830 = vmatpush2.bf16.msra.mxu0 0
      %831 = vmatprep.subr.bf16.mxu0 0
      %832 = vmatpush2.bf16.msra.mxu0 0
      %833 = vmatprep.subr.bf16.mxu0 0
      %834 = vmatpush2.bf16.msra.mxu0 0
      %835 = vmatprep.subr.bf16.mxu0 0
      %836 = vmatpush2.bf16.msra.mxu0 0
      %837 = vmatprep.subr.bf16.mxu0 0
      %838 = vmatpush2.bf16.msra.mxu0 0
      %839 = vmatprep.subr.bf16.mxu0 0
      %840 = vmatpush2.bf16.msra.mxu0 0
      %841 = vmatprep.mubr.bf16.mxu0 0
      %842 = vmatmul.mubr.bf16.gmra.mxu0 %v804
      %v843 = vpop.f32.mrf.mxu0
      %v844 = vadd.f32 %v801, %v843
      %v845 = vpop.f32.mrf.mxu0
      %v846 = vpop.f32.mrf.mxu0
      %v847 = vpop.f32.mrf.mxu0
      %848 = vdwg.mxu0
      %vm849 = vcmp.gt.f32.partialorder %v844, 0.0
      %v850 = vmul.f32 %v844, 0.01
      %v851 = vsel %vm849, %v844, %v850
      %v852 = vpack.c.bf16 %v851, %v851
      %v853 = vld [vmem:[%s8] sm:$0xff]
      %v854 = vld [vmem:[%s8 + $0x8] sm:$0xff]
      %v855 = vld [vmem:[%s8 + $0x10] sm:$0xff]
      %v856 = vld [vmem:[%s8 + $0x18] sm:$0xff]
      %v857 = vld [vmem:[%s8 + $0x20] sm:$0xff]
      %v858 = vld [vmem:[%s8 + $0x28] sm:$0xff]
      %v859 = vld [vmem:[%s8 + $0x30] sm:$0xff]
      %v860 = vld [vmem:[%s8 + $0x38] sm:$0xff]
      %v861 = vld [vmem:[%s8 + $0x40] sm:$0xff]
      %v862 = vld [vmem:[%s8 + $0x48] sm:$0xff]
      %v863 = vld [vmem:[%s8 + $0x50] sm:$0xff]
      %v864 = vld [vmem:[%s8 + $0x58] sm:$0xff]
      %v865 = vld [vmem:[%s8 + $0x60] sm:$0xff]
      %v866 = vld [vmem:[%s8 + $0x68] sm:$0xff]
      %v867 = vld [vmem:[%s8 + $0x70] sm:$0xff]
      %v868 = vld [vmem:[%s8 + $0x78] sm:$0xff]
      %v869 = vld [vmem:[%s8 + $0x80] sm:$0xff]
      %v870 = vld [vmem:[%s8 + $0x88] sm:$0xff]
      %v871 = vld [vmem:[%s8 + $0x90] sm:$0xff]
      %v872 = vld [vmem:[%s8 + $0x98] sm:$0xff]
      %v873 = vld [vmem:[%s8 + $0xa0] sm:$0xff]
      %v874 = vld [vmem:[%s8 + $0xa8] sm:$0xff]
      %v875 = vld [vmem:[%s8 + $0xb0] sm:$0xff]
      %v876 = vld [vmem:[%s8 + $0xb8] sm:$0xff]
      %v877 = vld [vmem:[%s8 + $0xc0] sm:$0xff]
      %v878 = vld [vmem:[%s8 + $0xc8] sm:$0xff]
      %v879 = vld [vmem:[%s8 + $0xd0] sm:$0xff]
      %v880 = vld [vmem:[%s8 + $0xd8] sm:$0xff]
      %v881 = vld [vmem:[%s8 + $0xe0] sm:$0xff]
      %v882 = vld [vmem:[%s8 + $0xe8] sm:$0xff]
      %v883 = vld [vmem:[%s8 + $0xf0] sm:$0xff]
      %v884 = vld [vmem:[%s8 + $0xf8] sm:$0xff]
      %v917 = vunpack.c.l.b16 %v853
      %v918 = vunpack.c.h.b16 %v853
      %v919 = vunpack.c.l.b16 %v854
      %v920 = vunpack.c.h.b16 %v854
      %v921 = vunpack.c.l.b16 %v855
      %v922 = vunpack.c.h.b16 %v855
      %v923 = vunpack.c.l.b16 %v856
      %v924 = vunpack.c.h.b16 %v856
      %v925 = vunpack.c.l.b16 %v857
      %v926 = vunpack.c.h.b16 %v857
      %v927 = vunpack.c.l.b16 %v858
      %v928 = vunpack.c.h.b16 %v858
      %v929 = vunpack.c.l.b16 %v859
      %v930 = vunpack.c.h.b16 %v859
      %v931 = vunpack.c.l.b16 %v860
      %v932 = vunpack.c.h.b16 %v860
      %v933 = vunpack.c.l.b16 %v861
      %v934 = vunpack.c.h.b16 %v861
      %v935 = vunpack.c.l.b16 %v862
      %v936 = vunpack.c.h.b16 %v862
      %v937 = vunpack.c.l.b16 %v863
      %v938 = vunpack.c.h.b16 %v863
      %v939 = vunpack.c.l.b16 %v864
      %v940 = vunpack.c.h.b16 %v864
      %v941 = vunpack.c.l.b16 %v865
      %v942 = vunpack.c.h.b16 %v865
      %v943 = vunpack.c.l.b16 %v866
      %v944 = vunpack.c.h.b16 %v866
      %v945 = vunpack.c.l.b16 %v867
      %v946 = vunpack.c.h.b16 %v867
      %v947 = vunpack.c.l.b16 %v868
      %v948 = vunpack.c.h.b16 %v868
      %v949 = vunpack.c.l.b16 %v869
      %v950 = vunpack.c.h.b16 %v869
      %v951 = vunpack.c.l.b16 %v870
      %v952 = vunpack.c.h.b16 %v870
      %v953 = vunpack.c.l.b16 %v871
      %v954 = vunpack.c.h.b16 %v871
      %v955 = vunpack.c.l.b16 %v872
      %v956 = vunpack.c.h.b16 %v872
      %v957 = vunpack.c.l.b16 %v873
      %v958 = vunpack.c.h.b16 %v873
      %v959 = vunpack.c.l.b16 %v874
      %v960 = vunpack.c.h.b16 %v874
      %v961 = vunpack.c.l.b16 %v875
      %v962 = vunpack.c.h.b16 %v875
      %v963 = vunpack.c.l.b16 %v876
      %v964 = vunpack.c.h.b16 %v876
      %v965 = vunpack.c.l.b16 %v877
      %v966 = vunpack.c.h.b16 %v877
      %v967 = vunpack.c.l.b16 %v878
      %v968 = vunpack.c.h.b16 %v878
      %v969 = vunpack.c.l.b16 %v879
      %v970 = vunpack.c.h.b16 %v879
      %v971 = vunpack.c.l.b16 %v880
      %v972 = vunpack.c.h.b16 %v880
      %v973 = vunpack.c.l.b16 %v881
      %v974 = vunpack.c.h.b16 %v881
      %v975 = vunpack.c.l.b16 %v882
      %v976 = vunpack.c.h.b16 %v882
      %v977 = vunpack.c.l.b16 %v883
      %v978 = vunpack.c.h.b16 %v883
      %v979 = vunpack.c.l.b16 %v884
      %v980 = vunpack.c.h.b16 %v884
      %v981 = vpack.c.b16 %v925, %v917
      %v982 = vpack.c.b16 %v926, %v918
      %v983 = vpack.c.b16 %v927, %v919
      %v984 = vpack.c.b16 %v928, %v920
      %v985 = vpack.c.b16 %v929, %v921
      %v986 = vpack.c.b16 %v930, %v922
      %v987 = vpack.c.b16 %v931, %v923
      %v988 = vpack.c.b16 %v932, %v924
      %v989 = vpack.c.b16 %v941, %v933
      %v990 = vpack.c.b16 %v942, %v934
      %v991 = vpack.c.b16 %v943, %v935
      %v992 = vpack.c.b16 %v944, %v936
      %v993 = vpack.c.b16 %v945, %v937
      %v994 = vpack.c.b16 %v946, %v938
      %v995 = vpack.c.b16 %v947, %v939
      %v996 = vpack.c.b16 %v948, %v940
      %v997 = vpack.c.b16 %v957, %v949
      %v998 = vpack.c.b16 %v958, %v950
      %v999 = vpack.c.b16 %v959, %v951
      %v1000 = vpack.c.b16 %v960, %v952
      %v1001 = vpack.c.b16 %v961, %v953
      %v1002 = vpack.c.b16 %v962, %v954
      %v1003 = vpack.c.b16 %v963, %v955
      %v1004 = vpack.c.b16 %v964, %v956
      %v1005 = vpack.c.b16 %v973, %v965
      %v1006 = vpack.c.b16 %v974, %v966
      %v1007 = vpack.c.b16 %v975, %v967
      %v1008 = vpack.c.b16 %v976, %v968
      %v1009 = vpack.c.b16 %v977, %v969
      %v1010 = vpack.c.b16 %v978, %v970
      %v1011 = vpack.c.b16 %v979, %v971
      %v1012 = vpack.c.b16 %v980, %v972
      %vm1045 = vcmask 523264
      %v1047 = vsel %vm1045, %v852, 0
      %1049 = vmatprep.subr.bf16.mxu0 0
      %1050 = vmatpush1.bf16.msra.mxu0 0
      %1051 = vmatprep.subr.bf16.mxu0 0
      %1052 = vmatpush1.bf16.msra.mxu0 0
      %1053 = vmatprep.subr.bf16.mxu0 0
      %1054 = vmatpush1.bf16.msra.mxu0 0
      %1055 = vmatprep.subr.bf16.mxu0 0
      %1056 = vmatpush1.bf16.msra.mxu0 0
      %1057 = vmatprep.subr.bf16.mxu0 %v1006
      %1058 = vmatpush1.bf16.msra.mxu0 %v1005
      %1059 = vmatprep.subr.bf16.mxu0 %v998
      %1060 = vmatpush1.bf16.msra.mxu0 %v997
      %1061 = vmatprep.subr.bf16.mxu0 %v990
      %1062 = vmatpush1.bf16.msra.mxu0 %v989
      %1063 = vmatprep.subr.bf16.mxu0 %v982
      %1064 = vmatpush1.bf16.msra.mxu0 %v981
      %1065 = vmatprep.subr.bf16.mxu0 0
      %1066 = vmatpush2.bf16.msra.mxu0 0
      %1067 = vmatprep.subr.bf16.mxu0 0
      %1068 = vmatpush2.bf16.msra.mxu0 0
      %1069 = vmatprep.subr.bf16.mxu0 0
      %1070 = vmatpush2.bf16.msra.mxu0 0
      %1071 = vmatprep.subr.bf16.mxu0 0
      %1072 = vmatpush2.bf16.msra.mxu0 0
      %1073 = vmatprep.subr.bf16.mxu0 0
      %1074 = vmatpush2.bf16.msra.mxu0 0
      %1075 = vmatprep.subr.bf16.mxu0 0
      %1076 = vmatpush2.bf16.msra.mxu0 0
      %1077 = vmatprep.subr.bf16.mxu0 0
      %1078 = vmatpush2.bf16.msra.mxu0 0
      %1079 = vmatprep.subr.bf16.mxu0 0
      %1080 = vmatpush2.bf16.msra.mxu0 0
      %1081 = vmatprep.mubr.bf16.mxu0 0
      %1082 = vmatmul.mubr.bf16.gmra.mxu0 %v1047
      %v1083 = vpop.f32.mrf.mxu0
      %v1084 = vadd.f32 0.0, %v1083
      %v1085 = vpop.f32.mrf.mxu0
      %v1086 = vadd.f32 0.0, %v1085
      %v1087 = vpop.f32.mrf.mxu0
      %v1088 = vpop.f32.mrf.mxu0
      %1089 = vdwg.mxu0
      %1090 = vmatprep.subr.bf16.mxu0 0
      %1091 = vmatpush1.bf16.msra.mxu0 0
      %1092 = vmatprep.subr.bf16.mxu0 0
      %1093 = vmatpush1.bf16.msra.mxu0 0
      %1094 = vmatprep.subr.bf16.mxu0 0
      %1095 = vmatpush1.bf16.msra.mxu0 0
      %1096 = vmatprep.subr.bf16.mxu0 0
      %1097 = vmatpush1.bf16.msra.mxu0 0
      %1098 = vmatprep.subr.bf16.mxu0 %v1008
      %1099 = vmatpush1.bf16.msra.mxu0 %v1007
      %1100 = vmatprep.subr.bf16.mxu0 %v1000
      %1101 = vmatpush1.bf16.msra.mxu0 %v999
      %1102 = vmatprep.subr.bf16.mxu0 %v992
      %1103 = vmatpush1.bf16.msra.mxu0 %v991
      %1104 = vmatprep.subr.bf16.mxu0 %v984
      %1105 = vmatpush1.bf16.msra.mxu0 %v983
      %1106 = vmatprep.subr.bf16.mxu0 0
      %1107 = vmatpush2.bf16.msra.mxu0 0
      %1108 = vmatprep.subr.bf16.mxu0 0
      %1109 = vmatpush2.bf16.msra.mxu0 0
      %1110 = vmatprep.subr.bf16.mxu0 0
      %1111 = vmatpush2.bf16.msra.mxu0 0
      %1112 = vmatprep.subr.bf16.mxu0 0
      %1113 = vmatpush2.bf16.msra.mxu0 0
      %1114 = vmatprep.subr.bf16.mxu0 0
      %1115 = vmatpush2.bf16.msra.mxu0 0
      %1116 = vmatprep.subr.bf16.mxu0 0
      %1117 = vmatpush2.bf16.msra.mxu0 0
      %1118 = vmatprep.subr.bf16.mxu0 0
      %1119 = vmatpush2.bf16.msra.mxu0 0
      %1120 = vmatprep.subr.bf16.mxu0 0
      %1121 = vmatpush2.bf16.msra.mxu0 0
      %1122 = vmatprep.mubr.bf16.mxu0 0
      %1123 = vmatmul.mubr.bf16.gmra.mxu0 %v1047
      %v1124 = vpop.f32.mrf.mxu0
      %v1125 = vadd.f32 0.0, %v1124
      %v1126 = vpop.f32.mrf.mxu0
      %v1127 = vadd.f32 0.0, %v1126
      %v1128 = vpop.f32.mrf.mxu0
      %v1129 = vpop.f32.mrf.mxu0
      %1130 = vdwg.mxu0
      %1131 = vmatprep.subr.bf16.mxu0 0
      %1132 = vmatpush1.bf16.msra.mxu0 0
      %1133 = vmatprep.subr.bf16.mxu0 0
      %1134 = vmatpush1.bf16.msra.mxu0 0
      %1135 = vmatprep.subr.bf16.mxu0 0
      %1136 = vmatpush1.bf16.msra.mxu0 0
      %1137 = vmatprep.subr.bf16.mxu0 0
      %1138 = vmatpush1.bf16.msra.mxu0 0
      %1139 = vmatprep.subr.bf16.mxu0 %v1010
      %1140 = vmatpush1.bf16.msra.mxu0 %v1009
      %1141 = vmatprep.subr.bf16.mxu0 %v1002
      %1142 = vmatpush1.bf16.msra.mxu0 %v1001
      %1143 = vmatprep.subr.bf16.mxu0 %v994
      %1144 = vmatpush1.bf16.msra.mxu0 %v993
      %1145 = vmatprep.subr.bf16.mxu0 %v986
      %1146 = vmatpush1.bf16.msra.mxu0 %v985
      %1147 = vmatprep.subr.bf16.mxu0 0
      %1148 = vmatpush2.bf16.msra.mxu0 0
      %1149 = vmatprep.subr.bf16.mxu0 0
      %1150 = vmatpush2.bf16.msra.mxu0 0
      %1151 = vmatprep.subr.bf16.mxu0 0
      %1152 = vmatpush2.bf16.msra.mxu0 0
      %1153 = vmatprep.subr.bf16.mxu0 0
      %1154 = vmatpush2.bf16.msra.mxu0 0
      %1155 = vmatprep.subr.bf16.mxu0 0
      %1156 = vmatpush2.bf16.msra.mxu0 0
      %1157 = vmatprep.subr.bf16.mxu0 0
      %1158 = vmatpush2.bf16.msra.mxu0 0
      %1159 = vmatprep.subr.bf16.mxu0 0
      %1160 = vmatpush2.bf16.msra.mxu0 0
      %1161 = vmatprep.subr.bf16.mxu0 0
      %1162 = vmatpush2.bf16.msra.mxu0 0
      %1163 = vmatprep.mubr.bf16.mxu0 0
      %1164 = vmatmul.mubr.bf16.gmra.mxu0 %v1047
      %v1165 = vpop.f32.mrf.mxu0
      %v1166 = vadd.f32 0.0, %v1165
      %v1167 = vpop.f32.mrf.mxu0
      %v1168 = vadd.f32 0.0, %v1167
      %v1169 = vpop.f32.mrf.mxu0
      %v1170 = vpop.f32.mrf.mxu0
      %1171 = vdwg.mxu0
      %1172 = vmatprep.subr.bf16.mxu0 0
      %1173 = vmatpush1.bf16.msra.mxu0 0
      %1174 = vmatprep.subr.bf16.mxu0 0
      %1175 = vmatpush1.bf16.msra.mxu0 0
      %1176 = vmatprep.subr.bf16.mxu0 0
      %1177 = vmatpush1.bf16.msra.mxu0 0
      %1178 = vmatprep.subr.bf16.mxu0 0
      %1179 = vmatpush1.bf16.msra.mxu0 0
      %1180 = vmatprep.subr.bf16.mxu0 %v1012
      %1181 = vmatpush1.bf16.msra.mxu0 %v1011
      %1182 = vmatprep.subr.bf16.mxu0 %v1004
      %1183 = vmatpush1.bf16.msra.mxu0 %v1003
      %1184 = vmatprep.subr.bf16.mxu0 %v996
      %1185 = vmatpush1.bf16.msra.mxu0 %v995
      %1186 = vmatprep.subr.bf16.mxu0 %v988
      %1187 = vmatpush1.bf16.msra.mxu0 %v987
      %1188 = vmatprep.subr.bf16.mxu0 0
      %1189 = vmatpush2.bf16.msra.mxu0 0
      %1190 = vmatprep.subr.bf16.mxu0 0
      %1191 = vmatpush2.bf16.msra.mxu0 0
      %1192 = vmatprep.subr.bf16.mxu0 0
      %1193 = vmatpush2.bf16.msra.mxu0 0
      %1194 = vmatprep.subr.bf16.mxu0 0
      %1195 = vmatpush2.bf16.msra.mxu0 0
      %1196 = vmatprep.subr.bf16.mxu0 0
      %1197 = vmatpush2.bf16.msra.mxu0 0
      %1198 = vmatprep.subr.bf16.mxu0 0
      %1199 = vmatpush2.bf16.msra.mxu0 0
      %1200 = vmatprep.subr.bf16.mxu0 0
      %1201 = vmatpush2.bf16.msra.mxu0 0
      %1202 = vmatprep.subr.bf16.mxu0 0
      %1203 = vmatpush2.bf16.msra.mxu0 0
      %1204 = vmatprep.mubr.bf16.mxu0 0
      %1205 = vmatmul.mubr.bf16.gmra.mxu0 %v1047
      %v1206 = vpop.f32.mrf.mxu0
      %v1207 = vadd.f32 0.0, %v1206
      %v1208 = vpop.f32.mrf.mxu0
      %v1209 = vadd.f32 0.0, %v1208
      %v1210 = vpop.f32.mrf.mxu0
      %v1211 = vpop.f32.mrf.mxu0
      %1212 = vdwg.mxu0
      %v1213 = vld [vmem:[%s499] sm:$0xff]
      %v1215 = vcombine.high %v1213, %v1213
      %v1217 = vpack.c.bf16 %v1213, %v1213
      %v1218 = vpack.c.bf16 %v1215, %v1215
      %v1219 = vld [vmem:[%s9] sm:$0xff]
      %v1220 = vld [vmem:[%s9 + $0x8] sm:$0xff]
      %v1221 = vld [vmem:[%s9 + $0x10] sm:$0xff]
      %v1222 = vld [vmem:[%s9 + $0x18] sm:$0xff]
      %v1223 = vld [vmem:[%s9 + $0x20] sm:$0xff]
      %v1224 = vld [vmem:[%s9 + $0x28] sm:$0xff]
      %v1225 = vld [vmem:[%s9 + $0x30] sm:$0xff]
      %v1226 = vld [vmem:[%s9 + $0x38] sm:$0xff]
      %v1227 = vld [vmem:[%s9 + $0x40] sm:$0xff]
      %v1228 = vld [vmem:[%s9 + $0x48] sm:$0xff]
      %v1229 = vld [vmem:[%s9 + $0x50] sm:$0xff]
      %v1230 = vld [vmem:[%s9 + $0x58] sm:$0xff]
      %v1231 = vld [vmem:[%s9 + $0x60] sm:$0xff]
      %v1232 = vld [vmem:[%s9 + $0x68] sm:$0xff]
      %v1233 = vld [vmem:[%s9 + $0x70] sm:$0xff]
      %v1234 = vld [vmem:[%s9 + $0x78] sm:$0xff]
      %v1235 = vld [vmem:[%s9 + $0x80] sm:$0xff]
      %v1236 = vld [vmem:[%s9 + $0x88] sm:$0xff]
      %v1237 = vld [vmem:[%s9 + $0x90] sm:$0xff]
      %v1238 = vld [vmem:[%s9 + $0x98] sm:$0xff]
      %v1239 = vld [vmem:[%s9 + $0xa0] sm:$0xff]
      %v1240 = vld [vmem:[%s9 + $0xa8] sm:$0xff]
      %v1241 = vld [vmem:[%s9 + $0xb0] sm:$0xff]
      %v1242 = vld [vmem:[%s9 + $0xb8] sm:$0xff]
      %v1243 = vld [vmem:[%s9 + $0xc0] sm:$0xff]
      %v1244 = vld [vmem:[%s9 + $0xc8] sm:$0xff]
      %v1245 = vld [vmem:[%s9 + $0xd0] sm:$0xff]
      %v1246 = vld [vmem:[%s9 + $0xd8] sm:$0xff]
      %v1247 = vld [vmem:[%s9 + $0xe0] sm:$0xff]
      %v1248 = vld [vmem:[%s9 + $0xe8] sm:$0xff]
      %v1249 = vld [vmem:[%s9 + $0xf0] sm:$0xff]
      %v1250 = vld [vmem:[%s9 + $0xf8] sm:$0xff]
      %v1251 = vld [vmem:[%s9 + $0x100] sm:$0xff]
      %v1252 = vld [vmem:[%s9 + $0x108] sm:$0xff]
      %v1253 = vld [vmem:[%s9 + $0x110] sm:$0xff]
      %v1254 = vld [vmem:[%s9 + $0x118] sm:$0xff]
      %v1255 = vld [vmem:[%s9 + $0x120] sm:$0xff]
      %v1256 = vld [vmem:[%s9 + $0x128] sm:$0xff]
      %v1257 = vld [vmem:[%s9 + $0x130] sm:$0xff]
      %v1258 = vld [vmem:[%s9 + $0x138] sm:$0xff]
      %v1259 = vld [vmem:[%s9 + $0x140] sm:$0xff]
      %v1260 = vld [vmem:[%s9 + $0x148] sm:$0xff]
      %v1261 = vld [vmem:[%s9 + $0x150] sm:$0xff]
      %v1262 = vld [vmem:[%s9 + $0x158] sm:$0xff]
      %v1263 = vld [vmem:[%s9 + $0x160] sm:$0xff]
      %v1264 = vld [vmem:[%s9 + $0x168] sm:$0xff]
      %v1265 = vld [vmem:[%s9 + $0x170] sm:$0xff]
      %v1266 = vld [vmem:[%s9 + $0x178] sm:$0xff]
      %v1267 = vld [vmem:[%s9 + $0x180] sm:$0xff]
      %v1268 = vld [vmem:[%s9 + $0x188] sm:$0xff]
      %v1269 = vld [vmem:[%s9 + $0x190] sm:$0xff]
      %v1270 = vld [vmem:[%s9 + $0x198] sm:$0xff]
      %v1271 = vld [vmem:[%s9 + $0x1a0] sm:$0xff]
      %v1272 = vld [vmem:[%s9 + $0x1a8] sm:$0xff]
      %v1273 = vld [vmem:[%s9 + $0x1b0] sm:$0xff]
      %v1274 = vld [vmem:[%s9 + $0x1b8] sm:$0xff]
      %v1275 = vld [vmem:[%s9 + $0x1c0] sm:$0xff]
      %v1276 = vld [vmem:[%s9 + $0x1c8] sm:$0xff]
      %v1277 = vld [vmem:[%s9 + $0x1d0] sm:$0xff]
      %v1278 = vld [vmem:[%s9 + $0x1d8] sm:$0xff]
      %v1279 = vld [vmem:[%s9 + $0x1e0] sm:$0xff]
      %v1280 = vld [vmem:[%s9 + $0x1e8] sm:$0xff]
      %v1281 = vld [vmem:[%s9 + $0x1f0] sm:$0xff]
      %v1282 = vld [vmem:[%s9 + $0x1f8] sm:$0xff]
      %v1283 = vld [vmem:[%s9 + $0x200] sm:$0xff]
      %v1284 = vld [vmem:[%s9 + $0x208] sm:$0xff]
      %v1285 = vld [vmem:[%s9 + $0x210] sm:$0xff]
      %v1286 = vld [vmem:[%s9 + $0x218] sm:$0xff]
      %v1287 = vld [vmem:[%s9 + $0x220] sm:$0xff]
      %v1288 = vld [vmem:[%s9 + $0x228] sm:$0xff]
      %v1289 = vld [vmem:[%s9 + $0x230] sm:$0xff]
      %v1290 = vld [vmem:[%s9 + $0x238] sm:$0xff]
      %v1291 = vld [vmem:[%s9 + $0x240] sm:$0xff]
      %v1292 = vld [vmem:[%s9 + $0x248] sm:$0xff]
      %v1293 = vld [vmem:[%s9 + $0x250] sm:$0xff]
      %v1294 = vld [vmem:[%s9 + $0x258] sm:$0xff]
      %v1295 = vld [vmem:[%s9 + $0x260] sm:$0xff]
      %v1296 = vld [vmem:[%s9 + $0x268] sm:$0xff]
      %v1297 = vld [vmem:[%s9 + $0x270] sm:$0xff]
      %v1298 = vld [vmem:[%s9 + $0x278] sm:$0xff]
      %v1299 = vld [vmem:[%s9 + $0x280] sm:$0xff]
      %v1300 = vld [vmem:[%s9 + $0x288] sm:$0xff]
      %v1301 = vld [vmem:[%s9 + $0x290] sm:$0xff]
      %v1302 = vld [vmem:[%s9 + $0x298] sm:$0xff]
      %v1303 = vld [vmem:[%s9 + $0x2a0] sm:$0xff]
      %v1304 = vld [vmem:[%s9 + $0x2a8] sm:$0xff]
      %v1305 = vld [vmem:[%s9 + $0x2b0] sm:$0xff]
      %v1306 = vld [vmem:[%s9 + $0x2b8] sm:$0xff]
      %v1307 = vld [vmem:[%s9 + $0x2c0] sm:$0xff]
      %v1308 = vld [vmem:[%s9 + $0x2c8] sm:$0xff]
      %v1309 = vld [vmem:[%s9 + $0x2d0] sm:$0xff]
      %v1310 = vld [vmem:[%s9 + $0x2d8] sm:$0xff]
      %v1311 = vld [vmem:[%s9 + $0x2e0] sm:$0xff]
      %v1312 = vld [vmem:[%s9 + $0x2e8] sm:$0xff]
      %v1313 = vld [vmem:[%s9 + $0x2f0] sm:$0xff]
      %v1314 = vld [vmem:[%s9 + $0x2f8] sm:$0xff]
      %v1315 = vld [vmem:[%s9 + $0x300] sm:$0xff]
      %v1316 = vld [vmem:[%s9 + $0x308] sm:$0xff]
      %v1317 = vld [vmem:[%s9 + $0x310] sm:$0xff]
      %v1318 = vld [vmem:[%s9 + $0x318] sm:$0xff]
      %v1319 = vld [vmem:[%s9 + $0x320] sm:$0xff]
      %v1320 = vld [vmem:[%s9 + $0x328] sm:$0xff]
      %v1321 = vld [vmem:[%s9 + $0x330] sm:$0xff]
      %v1322 = vld [vmem:[%s9 + $0x338] sm:$0xff]
      %v1323 = vld [vmem:[%s9 + $0x340] sm:$0xff]
      %v1324 = vld [vmem:[%s9 + $0x348] sm:$0xff]
      %v1325 = vld [vmem:[%s9 + $0x350] sm:$0xff]
      %v1326 = vld [vmem:[%s9 + $0x358] sm:$0xff]
      %v1327 = vld [vmem:[%s9 + $0x360] sm:$0xff]
      %v1328 = vld [vmem:[%s9 + $0x368] sm:$0xff]
      %v1329 = vld [vmem:[%s9 + $0x370] sm:$0xff]
      %v1330 = vld [vmem:[%s9 + $0x378] sm:$0xff]
      %v1331 = vld [vmem:[%s9 + $0x380] sm:$0xff]
      %v1332 = vld [vmem:[%s9 + $0x388] sm:$0xff]
      %v1333 = vld [vmem:[%s9 + $0x390] sm:$0xff]
      %v1334 = vld [vmem:[%s9 + $0x398] sm:$0xff]
      %v1335 = vld [vmem:[%s9 + $0x3a0] sm:$0xff]
      %v1336 = vld [vmem:[%s9 + $0x3a8] sm:$0xff]
      %v1337 = vld [vmem:[%s9 + $0x3b0] sm:$0xff]
      %v1338 = vld [vmem:[%s9 + $0x3b8] sm:$0xff]
      %v1339 = vld [vmem:[%s9 + $0x3c0] sm:$0xff]
      %v1340 = vld [vmem:[%s9 + $0x3c8] sm:$0xff]
      %v1341 = vld [vmem:[%s9 + $0x3d0] sm:$0xff]
      %v1342 = vld [vmem:[%s9 + $0x3d8] sm:$0xff]
      %v1343 = vld [vmem:[%s9 + $0x3e0] sm:$0xff]
      %v1344 = vld [vmem:[%s9 + $0x3e8] sm:$0xff]
      %v1345 = vld [vmem:[%s9 + $0x3f0] sm:$0xff]
      %v1346 = vld [vmem:[%s9 + $0x3f8] sm:$0xff]
      %v1475 = vunpack.c.l.b16 %v1219
      %v1476 = vunpack.c.h.b16 %v1219
      %v1477 = vunpack.c.l.b16 %v1220
      %v1478 = vunpack.c.h.b16 %v1220
      %v1479 = vunpack.c.l.b16 %v1221
      %v1480 = vunpack.c.h.b16 %v1221
      %v1481 = vunpack.c.l.b16 %v1222
      %v1482 = vunpack.c.h.b16 %v1222
      %v1483 = vunpack.c.l.b16 %v1223
      %v1484 = vunpack.c.h.b16 %v1223
      %v1485 = vunpack.c.l.b16 %v1224
      %v1486 = vunpack.c.h.b16 %v1224
      %v1487 = vunpack.c.l.b16 %v1225
      %v1488 = vunpack.c.h.b16 %v1225
      %v1489 = vunpack.c.l.b16 %v1226
      %v1490 = vunpack.c.h.b16 %v1226
      %v1491 = vunpack.c.l.b16 %v1227
      %v1492 = vunpack.c.h.b16 %v1227
      %v1493 = vunpack.c.l.b16 %v1228
      %v1494 = vunpack.c.h.b16 %v1228
      %v1495 = vunpack.c.l.b16 %v1229
      %v1496 = vunpack.c.h.b16 %v1229
      %v1497 = vunpack.c.l.b16 %v1230
      %v1498 = vunpack.c.h.b16 %v1230
      %v1499 = vunpack.c.l.b16 %v1231
      %v1500 = vunpack.c.h.b16 %v1231
      %v1501 = vunpack.c.l.b16 %v1232
      %v1502 = vunpack.c.h.b16 %v1232
      %v1503 = vunpack.c.l.b16 %v1233
      %v1504 = vunpack.c.h.b16 %v1233
      %v1505 = vunpack.c.l.b16 %v1234
      %v1506 = vunpack.c.h.b16 %v1234
      %v1507 = vunpack.c.l.b16 %v1235
      %v1508 = vunpack.c.h.b16 %v1235
      %v1509 = vunpack.c.l.b16 %v1236
      %v1510 = vunpack.c.h.b16 %v1236
      %v1511 = vunpack.c.l.b16 %v1237
      %v1512 = vunpack.c.h.b16 %v1237
      %v1513 = vunpack.c.l.b16 %v1238
      %v1514 = vunpack.c.h.b16 %v1238
      %v1515 = vunpack.c.l.b16 %v1239
      %v1516 = vunpack.c.h.b16 %v1239
      %v1517 = vunpack.c.l.b16 %v1240
      %v1518 = vunpack.c.h.b16 %v1240
      %v1519 = vunpack.c.l.b16 %v1241
      %v1520 = vunpack.c.h.b16 %v1241
      %v1521 = vunpack.c.l.b16 %v1242
      %v1522 = vunpack.c.h.b16 %v1242
      %v1523 = vunpack.c.l.b16 %v1243
      %v1524 = vunpack.c.h.b16 %v1243
      %v1525 = vunpack.c.l.b16 %v1244
      %v1526 = vunpack.c.h.b16 %v1244
      %v1527 = vunpack.c.l.b16 %v1245
      %v1528 = vunpack.c.h.b16 %v1245
      %v1529 = vunpack.c.l.b16 %v1246
      %v1530 = vunpack.c.h.b16 %v1246
      %v1531 = vunpack.c.l.b16 %v1247
      %v1532 = vunpack.c.h.b16 %v1247
      %v1533 = vunpack.c.l.b16 %v1248
      %v1534 = vunpack.c.h.b16 %v1248
      %v1535 = vunpack.c.l.b16 %v1249
      %v1536 = vunpack.c.h.b16 %v1249
      %v1537 = vunpack.c.l.b16 %v1250
      %v1538 = vunpack.c.h.b16 %v1250
      %v1539 = vunpack.c.l.b16 %v1251
      %v1540 = vunpack.c.h.b16 %v1251
      %v1541 = vunpack.c.l.b16 %v1252
      %v1542 = vunpack.c.h.b16 %v1252
      %v1543 = vunpack.c.l.b16 %v1253
      %v1544 = vunpack.c.h.b16 %v1253
      %v1545 = vunpack.c.l.b16 %v1254
      %v1546 = vunpack.c.h.b16 %v1254
      %v1547 = vunpack.c.l.b16 %v1255
      %v1548 = vunpack.c.h.b16 %v1255
      %v1549 = vunpack.c.l.b16 %v1256
      %v1550 = vunpack.c.h.b16 %v1256
      %v1551 = vunpack.c.l.b16 %v1257
      %v1552 = vunpack.c.h.b16 %v1257
      %v1553 = vunpack.c.l.b16 %v1258
      %v1554 = vunpack.c.h.b16 %v1258
      %v1555 = vunpack.c.l.b16 %v1259
      %v1556 = vunpack.c.h.b16 %v1259
      %v1557 = vunpack.c.l.b16 %v1260
      %v1558 = vunpack.c.h.b16 %v1260
      %v1559 = vunpack.c.l.b16 %v1261
      %v1560 = vunpack.c.h.b16 %v1261
      %v1561 = vunpack.c.l.b16 %v1262
      %v1562 = vunpack.c.h.b16 %v1262
      %v1563 = vunpack.c.l.b16 %v1263
      %v1564 = vunpack.c.h.b16 %v1263
      %v1565 = vunpack.c.l.b16 %v1264
      %v1566 = vunpack.c.h.b16 %v1264
      %v1567 = vunpack.c.l.b16 %v1265
      %v1568 = vunpack.c.h.b16 %v1265
      %v1569 = vunpack.c.l.b16 %v1266
      %v1570 = vunpack.c.h.b16 %v1266
      %v1571 = vunpack.c.l.b16 %v1267
      %v1572 = vunpack.c.h.b16 %v1267
      %v1573 = vunpack.c.l.b16 %v1268
      %v1574 = vunpack.c.h.b16 %v1268
      %v1575 = vunpack.c.l.b16 %v1269
      %v1576 = vunpack.c.h.b16 %v1269
      %v1577 = vunpack.c.l.b16 %v1270
      %v1578 = vunpack.c.h.b16 %v1270
      %v1579 = vunpack.c.l.b16 %v1271
      %v1580 = vunpack.c.h.b16 %v1271
      %v1581 = vunpack.c.l.b16 %v1272
      %v1582 = vunpack.c.h.b16 %v1272
      %v1583 = vunpack.c.l.b16 %v1273
      %v1584 = vunpack.c.h.b16 %v1273
      %v1585 = vunpack.c.l.b16 %v1274
      %v1586 = vunpack.c.h.b16 %v1274
      %v1587 = vunpack.c.l.b16 %v1275
      %v1588 = vunpack.c.h.b16 %v1275
      %v1589 = vunpack.c.l.b16 %v1276
      %v1590 = vunpack.c.h.b16 %v1276
      %v1591 = vunpack.c.l.b16 %v1277
      %v1592 = vunpack.c.h.b16 %v1277
      %v1593 = vunpack.c.l.b16 %v1278
      %v1594 = vunpack.c.h.b16 %v1278
      %v1595 = vunpack.c.l.b16 %v1279
      %v1596 = vunpack.c.h.b16 %v1279
      %v1597 = vunpack.c.l.b16 %v1280
      %v1598 = vunpack.c.h.b16 %v1280
      %v1599 = vunpack.c.l.b16 %v1281
      %v1600 = vunpack.c.h.b16 %v1281
      %v1601 = vunpack.c.l.b16 %v1282
      %v1602 = vunpack.c.h.b16 %v1282
      %v1603 = vunpack.c.l.b16 %v1283
      %v1604 = vunpack.c.h.b16 %v1283
      %v1605 = vunpack.c.l.b16 %v1284
      %v1606 = vunpack.c.h.b16 %v1284
      %v1607 = vunpack.c.l.b16 %v1285
      %v1608 = vunpack.c.h.b16 %v1285
      %v1609 = vunpack.c.l.b16 %v1286
      %v1610 = vunpack.c.h.b16 %v1286
      %v1611 = vunpack.c.l.b16 %v1287
      %v1612 = vunpack.c.h.b16 %v1287
      %v1613 = vunpack.c.l.b16 %v1288
      %v1614 = vunpack.c.h.b16 %v1288
      %v1615 = vunpack.c.l.b16 %v1289
      %v1616 = vunpack.c.h.b16 %v1289
      %v1617 = vunpack.c.l.b16 %v1290
      %v1618 = vunpack.c.h.b16 %v1290
      %v1619 = vunpack.c.l.b16 %v1291
      %v1620 = vunpack.c.h.b16 %v1291
      %v1621 = vunpack.c.l.b16 %v1292
      %v1622 = vunpack.c.h.b16 %v1292
      %v1623 = vunpack.c.l.b16 %v1293
      %v1624 = vunpack.c.h.b16 %v1293
      %v1625 = vunpack.c.l.b16 %v1294
      %v1626 = vunpack.c.h.b16 %v1294
      %v1627 = vunpack.c.l.b16 %v1295
      %v1628 = vunpack.c.h.b16 %v1295
      %v1629 = vunpack.c.l.b16 %v1296
      %v1630 = vunpack.c.h.b16 %v1296
      %v1631 = vunpack.c.l.b16 %v1297
      %v1632 = vunpack.c.h.b16 %v1297
      %v1633 = vunpack.c.l.b16 %v1298
      %v1634 = vunpack.c.h.b16 %v1298
      %v1635 = vunpack.c.l.b16 %v1299
      %v1636 = vunpack.c.h.b16 %v1299
      %v1637 = vunpack.c.l.b16 %v1300
      %v1638 = vunpack.c.h.b16 %v1300
      %v1639 = vunpack.c.l.b16 %v1301
      %v1640 = vunpack.c.h.b16 %v1301
      %v1641 = vunpack.c.l.b16 %v1302
      %v1642 = vunpack.c.h.b16 %v1302
      %v1643 = vunpack.c.l.b16 %v1303
      %v1644 = vunpack.c.h.b16 %v1303
      %v1645 = vunpack.c.l.b16 %v1304
      %v1646 = vunpack.c.h.b16 %v1304
      %v1647 = vunpack.c.l.b16 %v1305
      %v1648 = vunpack.c.h.b16 %v1305
      %v1649 = vunpack.c.l.b16 %v1306
      %v1650 = vunpack.c.h.b16 %v1306
      %v1651 = vunpack.c.l.b16 %v1307
      %v1652 = vunpack.c.h.b16 %v1307
      %v1653 = vunpack.c.l.b16 %v1308
      %v1654 = vunpack.c.h.b16 %v1308
      %v1655 = vunpack.c.l.b16 %v1309
      %v1656 = vunpack.c.h.b16 %v1309
      %v1657 = vunpack.c.l.b16 %v1310
      %v1658 = vunpack.c.h.b16 %v1310
      %v1659 = vunpack.c.l.b16 %v1311
      %v1660 = vunpack.c.h.b16 %v1311
      %v1661 = vunpack.c.l.b16 %v1312
      %v1662 = vunpack.c.h.b16 %v1312
      %v1663 = vunpack.c.l.b16 %v1313
      %v1664 = vunpack.c.h.b16 %v1313
      %v1665 = vunpack.c.l.b16 %v1314
      %v1666 = vunpack.c.h.b16 %v1314
      %v1667 = vunpack.c.l.b16 %v1315
      %v1668 = vunpack.c.h.b16 %v1315
      %v1669 = vunpack.c.l.b16 %v1316
      %v1670 = vunpack.c.h.b16 %v1316
      %v1671 = vunpack.c.l.b16 %v1317
      %v1672 = vunpack.c.h.b16 %v1317
      %v1673 = vunpack.c.l.b16 %v1318
      %v1674 = vunpack.c.h.b16 %v1318
      %v1675 = vunpack.c.l.b16 %v1319
      %v1676 = vunpack.c.h.b16 %v1319
      %v1677 = vunpack.c.l.b16 %v1320
      %v1678 = vunpack.c.h.b16 %v1320
      %v1679 = vunpack.c.l.b16 %v1321
      %v1680 = vunpack.c.h.b16 %v1321
      %v1681 = vunpack.c.l.b16 %v1322
      %v1682 = vunpack.c.h.b16 %v1322
      %v1683 = vunpack.c.l.b16 %v1323
      %v1684 = vunpack.c.h.b16 %v1323
      %v1685 = vunpack.c.l.b16 %v1324
      %v1686 = vunpack.c.h.b16 %v1324
      %v1687 = vunpack.c.l.b16 %v1325
      %v1688 = vunpack.c.h.b16 %v1325
      %v1689 = vunpack.c.l.b16 %v1326
      %v1690 = vunpack.c.h.b16 %v1326
      %v1691 = vunpack.c.l.b16 %v1327
      %v1692 = vunpack.c.h.b16 %v1327
      %v1693 = vunpack.c.l.b16 %v1328
      %v1694 = vunpack.c.h.b16 %v1328
      %v1695 = vunpack.c.l.b16 %v1329
      %v1696 = vunpack.c.h.b16 %v1329
      %v1697 = vunpack.c.l.b16 %v1330
      %v1698 = vunpack.c.h.b16 %v1330
      %v1699 = vunpack.c.l.b16 %v1331
      %v1700 = vunpack.c.h.b16 %v1331
      %v1701 = vunpack.c.l.b16 %v1332
      %v1702 = vunpack.c.h.b16 %v1332
      %v1703 = vunpack.c.l.b16 %v1333
      %v1704 = vunpack.c.h.b16 %v1333
      %v1705 = vunpack.c.l.b16 %v1334
      %v1706 = vunpack.c.h.b16 %v1334
      %v1707 = vunpack.c.l.b16 %v1335
      %v1708 = vunpack.c.h.b16 %v1335
      %v1709 = vunpack.c.l.b16 %v1336
      %v1710 = vunpack.c.h.b16 %v1336
      %v1711 = vunpack.c.l.b16 %v1337
      %v1712 = vunpack.c.h.b16 %v1337
      %v1713 = vunpack.c.l.b16 %v1338
      %v1714 = vunpack.c.h.b16 %v1338
      %v1715 = vunpack.c.l.b16 %v1339
      %v1716 = vunpack.c.h.b16 %v1339
      %v1717 = vunpack.c.l.b16 %v1340
      %v1718 = vunpack.c.h.b16 %v1340
      %v1719 = vunpack.c.l.b16 %v1341
      %v1720 = vunpack.c.h.b16 %v1341
      %v1721 = vunpack.c.l.b16 %v1342
      %v1722 = vunpack.c.h.b16 %v1342
      %v1723 = vunpack.c.l.b16 %v1343
      %v1724 = vunpack.c.h.b16 %v1343
      %v1725 = vunpack.c.l.b16 %v1344
      %v1726 = vunpack.c.h.b16 %v1344
      %v1727 = vunpack.c.l.b16 %v1345
      %v1728 = vunpack.c.h.b16 %v1345
      %v1729 = vunpack.c.l.b16 %v1346
      %v1730 = vunpack.c.h.b16 %v1346
      %v1731 = vpack.c.b16 %v1483, %v1475
      %v1732 = vpack.c.b16 %v1484, %v1476
      %v1733 = vpack.c.b16 %v1485, %v1477
      %v1734 = vpack.c.b16 %v1486, %v1478
      %v1735 = vpack.c.b16 %v1487, %v1479
      %v1736 = vpack.c.b16 %v1488, %v1480
      %v1737 = vpack.c.b16 %v1489, %v1481
      %v1738 = vpack.c.b16 %v1490, %v1482
      %v1739 = vpack.c.b16 %v1499, %v1491
      %v1740 = vpack.c.b16 %v1500, %v1492
      %v1741 = vpack.c.b16 %v1501, %v1493
      %v1742 = vpack.c.b16 %v1502, %v1494
      %v1743 = vpack.c.b16 %v1503, %v1495
      %v1744 = vpack.c.b16 %v1504, %v1496
      %v1745 = vpack.c.b16 %v1505, %v1497
      %v1746 = vpack.c.b16 %v1506, %v1498
      %v1747 = vpack.c.b16 %v1515, %v1507
      %v1748 = vpack.c.b16 %v1516, %v1508
      %v1749 = vpack.c.b16 %v1517, %v1509
      %v1750 = vpack.c.b16 %v1518, %v1510
      %v1751 = vpack.c.b16 %v1519, %v1511
      %v1752 = vpack.c.b16 %v1520, %v1512
      %v1753 = vpack.c.b16 %v1521, %v1513
      %v1754 = vpack.c.b16 %v1522, %v1514
      %v1755 = vpack.c.b16 %v1531, %v1523
      %v1756 = vpack.c.b16 %v1532, %v1524
      %v1757 = vpack.c.b16 %v1533, %v1525
      %v1758 = vpack.c.b16 %v1534, %v1526
      %v1759 = vpack.c.b16 %v1535, %v1527
      %v1760 = vpack.c.b16 %v1536, %v1528
      %v1761 = vpack.c.b16 %v1537, %v1529
      %v1762 = vpack.c.b16 %v1538, %v1530
      %v1763 = vpack.c.b16 %v1547, %v1539
      %v1764 = vpack.c.b16 %v1548, %v1540
      %v1765 = vpack.c.b16 %v1549, %v1541
      %v1766 = vpack.c.b16 %v1550, %v1542
      %v1767 = vpack.c.b16 %v1551, %v1543
      %v1768 = vpack.c.b16 %v1552, %v1544
      %v1769 = vpack.c.b16 %v1553, %v1545
      %v1770 = vpack.c.b16 %v1554, %v1546
      %v1771 = vpack.c.b16 %v1563, %v1555
      %v1772 = vpack.c.b16 %v1564, %v1556
      %v1773 = vpack.c.b16 %v1565, %v1557
      %v1774 = vpack.c.b16 %v1566, %v1558
      %v1775 = vpack.c.b16 %v1567, %v1559
      %v1776 = vpack.c.b16 %v1568, %v1560
      %v1777 = vpack.c.b16 %v1569, %v1561
      %v1778 = vpack.c.b16 %v1570, %v1562
      %v1779 = vpack.c.b16 %v1579, %v1571
      %v1780 = vpack.c.b16 %v1580, %v1572
      %v1781 = vpack.c.b16 %v1581, %v1573
      %v1782 = vpack.c.b16 %v1582, %v1574
      %v1783 = vpack.c.b16 %v1583, %v1575
      %v1784 = vpack.c.b16 %v1584, %v1576
      %v1785 = vpack.c.b16 %v1585, %v1577
      %v1786 = vpack.c.b16 %v1586, %v1578
      %v1787 = vpack.c.b16 %v1595, %v1587
      %v1788 = vpack.c.b16 %v1596, %v1588
      %v1789 = vpack.c.b16 %v1597, %v1589
      %v1790 = vpack.c.b16 %v1598, %v1590
      %v1791 = vpack.c.b16 %v1599, %v1591
      %v1792 = vpack.c.b16 %v1600, %v1592
      %v1793 = vpack.c.b16 %v1601, %v1593
      %v1794 = vpack.c.b16 %v1602, %v1594
      %v1795 = vpack.c.b16 %v1611, %v1603
      %v1796 = vpack.c.b16 %v1612, %v1604
      %v1797 = vpack.c.b16 %v1613, %v1605
      %v1798 = vpack.c.b16 %v1614, %v1606
      %v1799 = vpack.c.b16 %v1615, %v1607
      %v1800 = vpack.c.b16 %v1616, %v1608
      %v1801 = vpack.c.b16 %v1617, %v1609
      %v1802 = vpack.c.b16 %v1618, %v1610
      %v1803 = vpack.c.b16 %v1627, %v1619
      %v1804 = vpack.c.b16 %v1628, %v1620
      %v1805 = vpack.c.b16 %v1629, %v1621
      %v1806 = vpack.c.b16 %v1630, %v1622
      %v1807 = vpack.c.b16 %v1631, %v1623
      %v1808 = vpack.c.b16 %v1632, %v1624
      %v1809 = vpack.c.b16 %v1633, %v1625
      %v1810 = vpack.c.b16 %v1634, %v1626
      %v1811 = vpack.c.b16 %v1643, %v1635
      %v1812 = vpack.c.b16 %v1644, %v1636
      %v1813 = vpack.c.b16 %v1645, %v1637
      %v1814 = vpack.c.b16 %v1646, %v1638
      %v1815 = vpack.c.b16 %v1647, %v1639
      %v1816 = vpack.c.b16 %v1648, %v1640
      %v1817 = vpack.c.b16 %v1649, %v1641
      %v1818 = vpack.c.b16 %v1650, %v1642
      %v1819 = vpack.c.b16 %v1659, %v1651
      %v1820 = vpack.c.b16 %v1660, %v1652
      %v1821 = vpack.c.b16 %v1661, %v1653
      %v1822 = vpack.c.b16 %v1662, %v1654
      %v1823 = vpack.c.b16 %v1663, %v1655
      %v1824 = vpack.c.b16 %v1664, %v1656
      %v1825 = vpack.c.b16 %v1665, %v1657
      %v1826 = vpack.c.b16 %v1666, %v1658
      %v1827 = vpack.c.b16 %v1675, %v1667
      %v1828 = vpack.c.b16 %v1676, %v1668
      %v1829 = vpack.c.b16 %v1677, %v1669
      %v1830 = vpack.c.b16 %v1678, %v1670
      %v1831 = vpack.c.b16 %v1679, %v1671
      %v1832 = vpack.c.b16 %v1680, %v1672
      %v1833 = vpack.c.b16 %v1681, %v1673
      %v1834 = vpack.c.b16 %v1682, %v1674
      %v1835 = vpack.c.b16 %v1691, %v1683
      %v1836 = vpack.c.b16 %v1692, %v1684
      %v1837 = vpack.c.b16 %v1693, %v1685
      %v1838 = vpack.c.b16 %v1694, %v1686
      %v1839 = vpack.c.b16 %v1695, %v1687
      %v1840 = vpack.c.b16 %v1696, %v1688
      %v1841 = vpack.c.b16 %v1697, %v1689
      %v1842 = vpack.c.b16 %v1698, %v1690
      %v1843 = vpack.c.b16 %v1707, %v1699
      %v1844 = vpack.c.b16 %v1708, %v1700
      %v1845 = vpack.c.b16 %v1709, %v1701
      %v1846 = vpack.c.b16 %v1710, %v1702
      %v1847 = vpack.c.b16 %v1711, %v1703
      %v1848 = vpack.c.b16 %v1712, %v1704
      %v1849 = vpack.c.b16 %v1713, %v1705
      %v1850 = vpack.c.b16 %v1714, %v1706
      %v1851 = vpack.c.b16 %v1723, %v1715
      %v1852 = vpack.c.b16 %v1724, %v1716
      %v1853 = vpack.c.b16 %v1725, %v1717
      %v1854 = vpack.c.b16 %v1726, %v1718
      %v1855 = vpack.c.b16 %v1727, %v1719
      %v1856 = vpack.c.b16 %v1728, %v1720
      %v1857 = vpack.c.b16 %v1729, %v1721
      %v1858 = vpack.c.b16 %v1730, %v1722
      %1987 = vmatprep.subr.bf16.mxu0 %v1788
      %1988 = vmatpush1.bf16.msra.mxu0 %v1787
      %1989 = vmatprep.subr.bf16.mxu0 %v1780
      %1990 = vmatpush1.bf16.msra.mxu0 %v1779
      %1991 = vmatprep.subr.bf16.mxu0 %v1772
      %1992 = vmatpush1.bf16.msra.mxu0 %v1771
      %1993 = vmatprep.subr.bf16.mxu0 %v1764
      %1994 = vmatpush1.bf16.msra.mxu0 %v1763
      %1995 = vmatprep.subr.bf16.mxu0 %v1756
      %1996 = vmatpush1.bf16.msra.mxu0 %v1755
      %1997 = vmatprep.subr.bf16.mxu0 %v1748
      %1998 = vmatpush1.bf16.msra.mxu0 %v1747
      %1999 = vmatprep.subr.bf16.mxu0 %v1740
      %2000 = vmatpush1.bf16.msra.mxu0 %v1739
      %2001 = vmatprep.subr.bf16.mxu0 %v1732
      %2002 = vmatpush1.bf16.msra.mxu0 %v1731
      %2003 = vmatprep.subr.bf16.mxu0 %v1852
      %2004 = vmatpush2.bf16.msra.mxu0 %v1851
      %2005 = vmatprep.subr.bf16.mxu0 %v1844
      %2006 = vmatpush2.bf16.msra.mxu0 %v1843
      %2007 = vmatprep.subr.bf16.mxu0 %v1836
      %2008 = vmatpush2.bf16.msra.mxu0 %v1835
      %2009 = vmatprep.subr.bf16.mxu0 %v1828
      %2010 = vmatpush2.bf16.msra.mxu0 %v1827
      %2011 = vmatprep.subr.bf16.mxu0 %v1820
      %2012 = vmatpush2.bf16.msra.mxu0 %v1819
      %2013 = vmatprep.subr.bf16.mxu0 %v1812
      %2014 = vmatpush2.bf16.msra.mxu0 %v1811
      %2015 = vmatprep.subr.bf16.mxu0 %v1804
      %2016 = vmatpush2.bf16.msra.mxu0 %v1803
      %2017 = vmatprep.subr.bf16.mxu0 %v1796
      %2018 = vmatpush2.bf16.msra.mxu0 %v1795
      %2019 = vmatprep.mubr.bf16.mxu0 %v1218
      %2020 = vmatmul.mubr.bf16.gmra.mxu0 %v1217
      %v2021 = vpop.f32.mrf.mxu0
      %v2022 = vadd.f32 0.0, %v2021
      %v2023 = vpop.f32.mrf.mxu0
      %v2024 = vadd.f32 0.0, %v2023
      %v2025 = vpop.f32.mrf.mxu0
      %v2026 = vpop.f32.mrf.mxu0
      %2027 = vdwg.mxu0
      %2028 = vmatprep.subr.bf16.mxu0 %v1790
      %2029 = vmatpush1.bf16.msra.mxu0 %v1789
      %2030 = vmatprep.subr.bf16.mxu0 %v1782
      %2031 = vmatpush1.bf16.msra.mxu0 %v1781
      %2032 = vmatprep.subr.bf16.mxu0 %v1774
      %2033 = vmatpush1.bf16.msra.mxu0 %v1773
      %2034 = vmatprep.subr.bf16.mxu0 %v1766
      %2035 = vmatpush1.bf16.msra.mxu0 %v1765
      %2036 = vmatprep.subr.bf16.mxu0 %v1758
      %2037 = vmatpush1.bf16.msra.mxu0 %v1757
      %2038 = vmatprep.subr.bf16.mxu0 %v1750
      %2039 = vmatpush1.bf16.msra.mxu0 %v1749
      %2040 = vmatprep.subr.bf16.mxu0 %v1742
      %2041 = vmatpush1.bf16.msra.mxu0 %v1741
      %2042 = vmatprep.subr.bf16.mxu0 %v1734
      %2043 = vmatpush1.bf16.msra.mxu0 %v1733
      %2044 = vmatprep.subr.bf16.mxu0 %v1854
      %2045 = vmatpush2.bf16.msra.mxu0 %v1853
      %2046 = vmatprep.subr.bf16.mxu0 %v1846
      %2047 = vmatpush2.bf16.msra.mxu0 %v1845
      %2048 = vmatprep.subr.bf16.mxu0 %v1838
      %2049 = vmatpush2.bf16.msra.mxu0 %v1837
      %2050 = vmatprep.subr.bf16.mxu0 %v1830
      %2051 = vmatpush2.bf16.msra.mxu0 %v1829
      %2052 = vmatprep.subr.bf16.mxu0 %v1822
      %2053 = vmatpush2.bf16.msra.mxu0 %v1821
      %2054 = vmatprep.subr.bf16.mxu0 %v1814
      %2055 = vmatpush2.bf16.msra.mxu0 %v1813
      %2056 = vmatprep.subr.bf16.mxu0 %v1806
      %2057 = vmatpush2.bf16.msra.mxu0 %v1805
      %2058 = vmatprep.subr.bf16.mxu0 %v1798
      %2059 = vmatpush2.bf16.msra.mxu0 %v1797
      %2060 = vmatprep.mubr.bf16.mxu0 %v1218
      %2061 = vmatmul.mubr.bf16.gmra.mxu0 %v1217
      %v2062 = vpop.f32.mrf.mxu0
      %v2063 = vadd.f32 0.0, %v2062
      %v2064 = vpop.f32.mrf.mxu0
      %v2065 = vadd.f32 0.0, %v2064
      %v2066 = vpop.f32.mrf.mxu0
      %v2067 = vpop.f32.mrf.mxu0
      %2068 = vdwg.mxu0
      %2069 = vmatprep.subr.bf16.mxu0 %v1792
      %2070 = vmatpush1.bf16.msra.mxu0 %v1791
      %2071 = vmatprep.subr.bf16.mxu0 %v1784
      %2072 = vmatpush1.bf16.msra.mxu0 %v1783
      %2073 = vmatprep.subr.bf16.mxu0 %v1776
      %2074 = vmatpush1.bf16.msra.mxu0 %v1775
      %2075 = vmatprep.subr.bf16.mxu0 %v1768
      %2076 = vmatpush1.bf16.msra.mxu0 %v1767
      %2077 = vmatprep.subr.bf16.mxu0 %v1760
      %2078 = vmatpush1.bf16.msra.mxu0 %v1759
      %2079 = vmatprep.subr.bf16.mxu0 %v1752
      %2080 = vmatpush1.bf16.msra.mxu0 %v1751
      %2081 = vmatprep.subr.bf16.mxu0 %v1744
      %2082 = vmatpush1.bf16.msra.mxu0 %v1743
      %2083 = vmatprep.subr.bf16.mxu0 %v1736
      %2084 = vmatpush1.bf16.msra.mxu0 %v1735
      %2085 = vmatprep.subr.bf16.mxu0 %v1856
      %2086 = vmatpush2.bf16.msra.mxu0 %v1855
      %2087 = vmatprep.subr.bf16.mxu0 %v1848
      %2088 = vmatpush2.bf16.msra.mxu0 %v1847
      %2089 = vmatprep.subr.bf16.mxu0 %v1840
      %2090 = vmatpush2.bf16.msra.mxu0 %v1839
      %2091 = vmatprep.subr.bf16.mxu0 %v1832
      %2092 = vmatpush2.bf16.msra.mxu0 %v1831
      %2093 = vmatprep.subr.bf16.mxu0 %v1824
      %2094 = vmatpush2.bf16.msra.mxu0 %v1823
      %2095 = vmatprep.subr.bf16.mxu0 %v1816
      %2096 = vmatpush2.bf16.msra.mxu0 %v1815
      %2097 = vmatprep.subr.bf16.mxu0 %v1808
      %2098 = vmatpush2.bf16.msra.mxu0 %v1807
      %2099 = vmatprep.subr.bf16.mxu0 %v1800
      %2100 = vmatpush2.bf16.msra.mxu0 %v1799
      %2101 = vmatprep.mubr.bf16.mxu0 %v1218
      %2102 = vmatmul.mubr.bf16.gmra.mxu0 %v1217
      %v2103 = vpop.f32.mrf.mxu0
      %v2104 = vadd.f32 0.0, %v2103
      %v2105 = vpop.f32.mrf.mxu0
      %v2106 = vadd.f32 0.0, %v2105
      %v2107 = vpop.f32.mrf.mxu0
      %v2108 = vpop.f32.mrf.mxu0
      %2109 = vdwg.mxu0
      %2110 = vmatprep.subr.bf16.mxu0 %v1794
      %2111 = vmatpush1.bf16.msra.mxu0 %v1793
      %2112 = vmatprep.subr.bf16.mxu0 %v1786
      %2113 = vmatpush1.bf16.msra.mxu0 %v1785
      %2114 = vmatprep.subr.bf16.mxu0 %v1778
      %2115 = vmatpush1.bf16.msra.mxu0 %v1777
      %2116 = vmatprep.subr.bf16.mxu0 %v1770
      %2117 = vmatpush1.bf16.msra.mxu0 %v1769
      %2118 = vmatprep.subr.bf16.mxu0 %v1762
      %2119 = vmatpush1.bf16.msra.mxu0 %v1761
      %2120 = vmatprep.subr.bf16.mxu0 %v1754
      %2121 = vmatpush1.bf16.msra.mxu0 %v1753
      %2122 = vmatprep.subr.bf16.mxu0 %v1746
      %2123 = vmatpush1.bf16.msra.mxu0 %v1745
      %2124 = vmatprep.subr.bf16.mxu0 %v1738
      %2125 = vmatpush1.bf16.msra.mxu0 %v1737
      %2126 = vmatprep.subr.bf16.mxu0 %v1858
      %2127 = vmatpush2.bf16.msra.mxu0 %v1857
      %2128 = vmatprep.subr.bf16.mxu0 %v1850
      %2129 = vmatpush2.bf16.msra.mxu0 %v1849
      %2130 = vmatprep.subr.bf16.mxu0 %v1842
      %2131 = vmatpush2.bf16.msra.mxu0 %v1841
      %2132 = vmatprep.subr.bf16.mxu0 %v1834
      %2133 = vmatpush2.bf16.msra.mxu0 %v1833
      %2134 = vmatprep.subr.bf16.mxu0 %v1826
      %2135 = vmatpush2.bf16.msra.mxu0 %v1825
      %2136 = vmatprep.subr.bf16.mxu0 %v1818
      %2137 = vmatpush2.bf16.msra.mxu0 %v1817
      %2138 = vmatprep.subr.bf16.mxu0 %v1810
      %2139 = vmatpush2.bf16.msra.mxu0 %v1809
      %2140 = vmatprep.subr.bf16.mxu0 %v1802
      %2141 = vmatpush2.bf16.msra.mxu0 %v1801
      %2142 = vmatprep.mubr.bf16.mxu0 %v1218
      %2143 = vmatmul.mubr.bf16.gmra.mxu0 %v1217
      %v2144 = vpop.f32.mrf.mxu0
      %v2145 = vadd.f32 0.0, %v2144
      %v2146 = vpop.f32.mrf.mxu0
      %v2147 = vadd.f32 0.0, %v2146
      %v2148 = vpop.f32.mrf.mxu0
      %v2149 = vpop.f32.mrf.mxu0
      %2150 = vdwg.mxu0
      %v2151 = vld [vmem:[%s494] sm:$0xff]
      %v2152 = vld [vmem:[%s494 + $0x8] sm:$0xff]
      %v2153 = vld [vmem:[%s494 + $0x10] sm:$0xff]
      %v2154 = vld [vmem:[%s494 + $0x18] sm:$0xff]
      %v2159 = vcombine.high %v2151, %v2151
      %v2160 = vcombine.high %v2152, %v2152
      %v2161 = vcombine.high %v2153, %v2153
      %v2162 = vcombine.high %v2154, %v2154
      %v2175 = vrot.slane %v1084, 4
      %v2176 = vrot.slane %v1086, 4
      %v2177 = vrot.slane %v1125, 4
      %v2178 = vrot.slane %v1127, 4
      %v2179 = vrot.slane %v1166, 4
      %v2180 = vrot.slane %v1168, 4
      %v2181 = vrot.slane %v1207, 4
      %v2182 = vrot.slane %v1209, 4
      %v2191 = vsel %vm574, %v2151, %v2175
      %v2192 = vsel %vm574, %v2159, %v2176
      %v2193 = vsel %vm574, %v2152, %v2177
      %v2194 = vsel %vm574, %v2160, %v2178
      %v2195 = vsel %vm574, %v2153, %v2179
      %v2196 = vsel %vm574, %v2161, %v2180
      %v2197 = vsel %vm574, %v2154, %v2181
      %v2198 = vsel %vm574, %v2162, %v2182
      %v2199 = vadd.s32 %v561, 128
      %v2200 = vadd.s32 %v561, 256
      %v2201 = vadd.s32 %v561, 384
      %v2202 = vadd.s32 %v561, 512
      %v2203 = vadd.s32 %v561, 640
      %v2204 = vadd.s32 %v561, 768
      %v2205 = vadd.s32 %v561, 896
      %v2206 = vand.u32 %v561, 31
      %v2207 = vand.u32 %v2199, 31
      %v2208 = vand.u32 %v2200, 31
      %v2209 = vand.u32 %v2201, 31
      %v2210 = vand.u32 %v2202, 31
      %v2211 = vand.u32 %v2203, 31
      %v2212 = vand.u32 %v2204, 31
      %v2213 = vand.u32 %v2205, 31
      %v2214 = vshra.s32 %v561, 5
      %v2215 = vshra.s32 %v2199, 5
      %v2216 = vshra.s32 %v2200, 5
      %v2217 = vshra.s32 %v2201, 5
      %v2218 = vshra.s32 %v2202, 5
      %v2219 = vshra.s32 %v2203, 5
      %v2220 = vshra.s32 %v2204, 5
      %v2221 = vshra.s32 %v2205, 5
      %vm2222 = vcmp.ge.s32.totalorder %v2214, 1
      %vm2223 = vcmp.ge.s32.totalorder %v2215, 1
      %vm2224 = vcmp.ge.s32.totalorder %v2216, 1
      %vm2225 = vcmp.ge.s32.totalorder %v2217, 1
      %vm2226 = vcmp.ge.s32.totalorder %v2218, 1
      %vm2227 = vcmp.ge.s32.totalorder %v2219, 1
      %vm2228 = vcmp.ge.s32.totalorder %v2220, 1
      %vm2229 = vcmp.ge.s32.totalorder %v2221, 1
      %vm2230 = vcmp.le.s32.totalorder %v2214, 30
      %vm2231 = vcmp.le.s32.totalorder %v2215, 30
      %vm2232 = vcmp.le.s32.totalorder %v2216, 30
      %vm2233 = vcmp.le.s32.totalorder %v2217, 30
      %vm2234 = vcmp.le.s32.totalorder %v2218, 30
      %vm2235 = vcmp.le.s32.totalorder %v2219, 30
      %vm2236 = vcmp.le.s32.totalorder %v2220, 30
      %vm2237 = vcmp.le.s32.totalorder %v2221, 30
      %vm2238 = vcmp.ge.s32.totalorder %v2206, 1
      %vm2239 = vcmp.ge.s32.totalorder %v2207, 1
      %vm2240 = vcmp.ge.s32.totalorder %v2208, 1
      %vm2241 = vcmp.ge.s32.totalorder %v2209, 1
      %vm2242 = vcmp.ge.s32.totalorder %v2210, 1
      %vm2243 = vcmp.ge.s32.totalorder %v2211, 1
      %vm2244 = vcmp.ge.s32.totalorder %v2212, 1
      %vm2245 = vcmp.ge.s32.totalorder %v2213, 1
      %vm2246 = vcmp.le.s32.totalorder %v2206, 30
      %vm2247 = vcmp.le.s32.totalorder %v2207, 30
      %vm2248 = vcmp.le.s32.totalorder %v2208, 30
      %vm2249 = vcmp.le.s32.totalorder %v2209, 30
      %vm2250 = vcmp.le.s32.totalorder %v2210, 30
      %vm2251 = vcmp.le.s32.totalorder %v2211, 30
      %vm2252 = vcmp.le.s32.totalorder %v2212, 30
      %vm2253 = vcmp.le.s32.totalorder %v2213, 30
      %vm2254 = vmand %vm2222, %vm2238
      %vm2255 = vmand %vm2223, %vm2239
      %vm2256 = vmand %vm2224, %vm2240
      %vm2257 = vmand %vm2225, %vm2241
      %vm2258 = vmand %vm2226, %vm2242
      %vm2259 = vmand %vm2227, %vm2243
      %vm2260 = vmand %vm2228, %vm2244
      %vm2261 = vmand %vm2229, %vm2245
      %vm2262 = vmand %vm2222, %vm2246
      %vm2263 = vmand %vm2223, %vm2247
      %vm2264 = vmand %vm2224, %vm2248
      %vm2265 = vmand %vm2225, %vm2249
      %vm2266 = vmand %vm2226, %vm2250
      %vm2267 = vmand %vm2227, %vm2251
      %vm2268 = vmand %vm2228, %vm2252
      %vm2269 = vmand %vm2229, %vm2253
      %vm2270 = vmand %vm2230, %vm2238
      %vm2271 = vmand %vm2231, %vm2239
      %vm2272 = vmand %vm2232, %vm2240
      %vm2273 = vmand %vm2233, %vm2241
      %vm2274 = vmand %vm2234, %vm2242
      %vm2275 = vmand %vm2235, %vm2243
      %vm2276 = vmand %vm2236, %vm2244
      %vm2277 = vmand %vm2237, %vm2245
      %vm2278 = vmand %vm2230, %vm2246
      %vm2279 = vmand %vm2231, %vm2247
      %vm2280 = vmand %vm2232, %vm2248
      %vm2281 = vmand %vm2233, %vm2249
      %vm2282 = vmand %vm2234, %vm2250
      %vm2283 = vmand %vm2235, %vm2251
      %vm2284 = vmand %vm2236, %vm2252
      %vm2285 = vmand %vm2237, %vm2253
      %v2286 = vld [vmem:[%s10] sm:$0xff]
      %v2287 = vld [vmem:[%s11] sm:$0xff]
      %v2288 = vsel %vm574, %v2022, 0.0
      %v2289 = vsel %vm574, %v2024, 0.0
      %v2290 = vsel %vm574, %v2063, 0.0
      %v2291 = vsel %vm574, %v2065, 0.0
      %v2292 = vsel %vm574, %v2104, 0.0
      %v2293 = vsel %vm574, %v2106, 0.0
      %v2294 = vsel %vm574, %v2145, 0.0
      %v2295 = vsel %vm574, %v2147, 0.0
      %2296 = vrot.lane.b32.xlu0 %v2191, 33
      %v2297 = vpop.permute.xlu0 %2296
      %2298 = vrot.lane.b32.xlu0 %v2288, 33
      %v2299 = vpop.permute.xlu0 %2298
      %2300 = vrot.lane.b32.xlu0 %v2192, 33
      %v2301 = vpop.permute.xlu0 %2300
      %2302 = vrot.lane.b32.xlu0 %v2289, 33
      %v2303 = vpop.permute.xlu0 %2302
      %2304 = vrot.lane.b32.xlu0 %v2193, 33
      %v2305 = vpop.permute.xlu0 %2304
      %2306 = vrot.lane.b32.xlu0 %v2290, 33
      %v2307 = vpop.permute.xlu0 %2306
      %2308 = vrot.lane.b32.xlu0 %v2194, 33
      %v2309 = vpop.permute.xlu0 %2308
      %2310 = vrot.lane.b32.xlu0 %v2291, 33
      %v2311 = vpop.permute.xlu0 %2310
      %2312 = vrot.lane.b32.xlu0 %v2195, 33
      %v2313 = vpop.permute.xlu0 %2312
      %2314 = vrot.lane.b32.xlu0 %v2292, 33
      %v2315 = vpop.permute.xlu0 %2314
      %2316 = vrot.lane.b32.xlu0 %v2196, 33
      %v2317 = vpop.permute.xlu0 %2316
      %2318 = vrot.lane.b32.xlu0 %v2293, 33
      %v2319 = vpop.permute.xlu0 %2318
      %2320 = vrot.lane.b32.xlu0 %v2197, 33
      %v2321 = vpop.permute.xlu0 %2320
      %2322 = vrot.lane.b32.xlu0 %v2294, 33
      %v2323 = vpop.permute.xlu0 %2322
      %2324 = vrot.lane.b32.xlu0 %v2198, 33
      %v2325 = vpop.permute.xlu0 %2324
      %2326 = vrot.lane.b32.xlu0 %v2295, 33
      %v2327 = vpop.permute.xlu0 %2326
      %vm2328 = vcmp.lt.s32.totalorder %v561, 33
      %v2329 = vsel %vm2328, %v2321, %v2325
      %v2330 = vsel %vm2328, %v2323, %v2327
      %v2331 = vsel %vm2328, %v2317, %v2321
      %v2332 = vsel %vm2328, %v2319, %v2323
      %v2333 = vsel %vm2328, %v2313, %v2317
      %v2334 = vsel %vm2328, %v2315, %v2319
      %v2335 = vsel %vm2328, %v2309, %v2313
      %v2336 = vsel %vm2328, %v2311, %v2315
      %v2337 = vsel %vm2328, %v2305, %v2309
      %v2338 = vsel %vm2328, %v2307, %v2311
      %v2339 = vsel %vm2328, %v2301, %v2305
      %v2340 = vsel %vm2328, %v2303, %v2307
      %v2341 = vsel %vm2328, %v2297, %v2301
      %v2342 = vsel %vm2328, %v2299, %v2303
      %v2343 = vsel %vm2328, %v2325, %v2297
      %v2344 = vsel %vm2328, %v2327, %v2299
      %v2345 = vsel %vm2254, 1, 0
      %v2346 = vsel %vm2255, 1, 0
      %v2347 = vsel %vm2256, 1, 0
      %v2348 = vsel %vm2257, 1, 0
      %v2349 = vsel %vm2258, 1, 0
      %v2350 = vsel %vm2259, 1, 0
      %v2351 = vsel %vm2260, 1, 0
      %v2352 = vsel %vm2261, 1, 0
      %vm2353 = vcmp.eq.s32.totalorder %v2345, 1
      %vm2354 = vcmp.eq.s32.totalorder %v2346, 1
      %vm2355 = vcmp.eq.s32.totalorder %v2347, 1
      %vm2356 = vcmp.eq.s32.totalorder %v2348, 1
      %vm2357 = vcmp.eq.s32.totalorder %v2349, 1
      %vm2358 = vcmp.eq.s32.totalorder %v2350, 1
      %vm2359 = vcmp.eq.s32.totalorder %v2351, 1
      %vm2360 = vcmp.eq.s32.totalorder %v2352, 1
      %v2361 = vsel %vm2353, %v2343, 0.0
      %v2362 = vsel %vm2354, %v2341, 0.0
      %v2363 = vsel %vm2355, %v2339, 0.0
      %v2364 = vsel %vm2356, %v2337, 0.0
      %v2365 = vsel %vm2357, %v2335, 0.0
      %v2366 = vsel %vm2358, %v2333, 0.0
      %v2367 = vsel %vm2359, %v2331, 0.0
      %v2368 = vsel %vm2360, %v2329, 0.0
      %v2369 = vsel %vm2353, %v2344, 0.0
      %v2370 = vsel %vm2354, %v2342, 0.0
      %v2371 = vsel %vm2355, %v2340, 0.0
      %v2372 = vsel %vm2356, %v2338, 0.0
      %v2373 = vsel %vm2357, %v2336, 0.0
      %v2374 = vsel %vm2358, %v2334, 0.0
      %v2375 = vsel %vm2359, %v2332, 0.0
      %v2376 = vsel %vm2360, %v2330, 0.0
      %2377 = vrot.lane.b32.xlu0 %v2191, 32
      %v2378 = vpop.permute.xlu0 %2377
      %2379 = vrot.lane.b32.xlu0 %v2288, 32
      %v2380 = vpop.permute.xlu0 %2379
      %2381 = vrot.lane.b32.xlu0 %v2192, 32
      %v2382 = vpop.permute.xlu0 %2381
      %2383 = vrot.lane.b32.xlu0 %v2289, 32
      %v2384 = vpop.permute.xlu0 %2383
      %2385 = vrot.lane.b32.xlu0 %v2193, 32
      %v2386 = vpop.permute.xlu0 %2385
      %2387 = vrot.lane.b32.xlu0 %v2290, 32
      %v2388 = vpop.permute.xlu0 %2387
      %2389 = vrot.lane.b32.xlu0 %v2194, 32
      %v2390 = vpop.permute.xlu0 %2389
      %2391 = vrot.lane.b32.xlu0 %v2291, 32
      %v2392 = vpop.permute.xlu0 %2391
      %2393 = vrot.lane.b32.xlu0 %v2195, 32
      %v2394 = vpop.permute.xlu0 %2393
      %2395 = vrot.lane.b32.xlu0 %v2292, 32
      %v2396 = vpop.permute.xlu0 %2395
      %2397 = vrot.lane.b32.xlu0 %v2196, 32
      %v2398 = vpop.permute.xlu0 %2397
      %2399 = vrot.lane.b32.xlu0 %v2293, 32
      %v2400 = vpop.permute.xlu0 %2399
      %2401 = vrot.lane.b32.xlu0 %v2197, 32
      %v2402 = vpop.permute.xlu0 %2401
      %2403 = vrot.lane.b32.xlu0 %v2294, 32
      %v2404 = vpop.permute.xlu0 %2403
      %2405 = vrot.lane.b32.xlu0 %v2198, 32
      %v2406 = vpop.permute.xlu0 %2405
      %2407 = vrot.lane.b32.xlu0 %v2295, 32
      %v2408 = vpop.permute.xlu0 %2407
      %vm2409 = vcmp.lt.s32.totalorder %v561, 32
      %v2410 = vsel %vm2409, %v2402, %v2406
      %v2411 = vsel %vm2409, %v2404, %v2408
      %v2412 = vsel %vm2409, %v2398, %v2402
      %v2413 = vsel %vm2409, %v2400, %v2404
      %v2414 = vsel %vm2409, %v2394, %v2398
      %v2415 = vsel %vm2409, %v2396, %v2400
      %v2416 = vsel %vm2409, %v2390, %v2394
      %v2417 = vsel %vm2409, %v2392, %v2396
      %v2418 = vsel %vm2409, %v2386, %v2390
      %v2419 = vsel %vm2409, %v2388, %v2392
      %v2420 = vsel %vm2409, %v2382, %v2386
      %v2421 = vsel %vm2409, %v2384, %v2388
      %v2422 = vsel %vm2409, %v2378, %v2382
      %v2423 = vsel %vm2409, %v2380, %v2384
      %v2424 = vsel %vm2409, %v2406, %v2378
      %v2425 = vsel %vm2409, %v2408, %v2380
      %v2426 = vsel %vm2222, 1, 0
      %v2427 = vsel %vm2223, 1, 0
      %v2428 = vsel %vm2224, 1, 0
      %v2429 = vsel %vm2225, 1, 0
      %v2430 = vsel %vm2226, 1, 0
      %v2431 = vsel %vm2227, 1, 0
      %v2432 = vsel %vm2228, 1, 0
      %v2433 = vsel %vm2229, 1, 0
      %vm2434 = vcmp.eq.s32.totalorder %v2426, 1
      %vm2435 = vcmp.eq.s32.totalorder %v2427, 1
      %vm2436 = vcmp.eq.s32.totalorder %v2428, 1
      %vm2437 = vcmp.eq.s32.totalorder %v2429, 1
      %vm2438 = vcmp.eq.s32.totalorder %v2430, 1
      %vm2439 = vcmp.eq.s32.totalorder %v2431, 1
      %vm2440 = vcmp.eq.s32.totalorder %v2432, 1
      %vm2441 = vcmp.eq.s32.totalorder %v2433, 1
      %v2442 = vsel %vm2434, %v2424, 0.0
      %v2443 = vsel %vm2435, %v2422, 0.0
      %v2444 = vsel %vm2436, %v2420, 0.0
      %v2445 = vsel %vm2437, %v2418, 0.0
      %v2446 = vsel %vm2438, %v2416, 0.0
      %v2447 = vsel %vm2439, %v2414, 0.0
      %v2448 = vsel %vm2440, %v2412, 0.0
      %v2449 = vsel %vm2441, %v2410, 0.0
      %v2450 = vsel %vm2434, %v2425, 0.0
      %v2451 = vsel %vm2435, %v2423, 0.0
      %v2452 = vsel %vm2436, %v2421, 0.0
      %v2453 = vsel %vm2437, %v2419, 0.0
      %v2454 = vsel %vm2438, %v2417, 0.0
      %v2455 = vsel %vm2439, %v2415, 0.0
      %v2456 = vsel %vm2440, %v2413, 0.0
      %v2457 = vsel %vm2441, %v2411, 0.0
      %2458 = vrot.lane.b32.xlu0 %v2191, 31
      %v2459 = vpop.permute.xlu0 %2458
      %2460 = vrot.lane.b32.xlu0 %v2288, 31
      %v2461 = vpop.permute.xlu0 %2460
      %2462 = vrot.lane.b32.xlu0 %v2192, 31
      %v2463 = vpop.permute.xlu0 %2462
      %2464 = vrot.lane.b32.xlu0 %v2289, 31
      %v2465 = vpop.permute.xlu0 %2464
      %2466 = vrot.lane.b32.xlu0 %v2193, 31
      %v2467 = vpop.permute.xlu0 %2466
      %2468 = vrot.lane.b32.xlu0 %v2290, 31
      %v2469 = vpop.permute.xlu0 %2468
      %2470 = vrot.lane.b32.xlu0 %v2194, 31
      %v2471 = vpop.permute.xlu0 %2470
      %2472 = vrot.lane.b32.xlu0 %v2291, 31
      %v2473 = vpop.permute.xlu0 %2472
      %2474 = vrot.lane.b32.xlu0 %v2195, 31
      %v2475 = vpop.permute.xlu0 %2474
      %2476 = vrot.lane.b32.xlu0 %v2292, 31
      %v2477 = vpop.permute.xlu0 %2476
      %2478 = vrot.lane.b32.xlu0 %v2196, 31
      %v2479 = vpop.permute.xlu0 %2478
      %2480 = vrot.lane.b32.xlu0 %v2293, 31
      %v2481 = vpop.permute.xlu0 %2480
      %2482 = vrot.lane.b32.xlu0 %v2197, 31
      %v2483 = vpop.permute.xlu0 %2482
      %2484 = vrot.lane.b32.xlu0 %v2294, 31
      %v2485 = vpop.permute.xlu0 %2484
      %2486 = vrot.lane.b32.xlu0 %v2198, 31
      %v2487 = vpop.permute.xlu0 %2486
      %2488 = vrot.lane.b32.xlu0 %v2295, 31
      %v2489 = vpop.permute.xlu0 %2488
      %vm2490 = vcmp.lt.s32.totalorder %v561, 31
      %v2491 = vsel %vm2490, %v2483, %v2487
      %v2492 = vsel %vm2490, %v2485, %v2489
      %v2493 = vsel %vm2490, %v2479, %v2483
      %v2494 = vsel %vm2490, %v2481, %v2485
      %v2495 = vsel %vm2490, %v2475, %v2479
      %v2496 = vsel %vm2490, %v2477, %v2481
      %v2497 = vsel %vm2490, %v2471, %v2475
      %v2498 = vsel %vm2490, %v2473, %v2477
      %v2499 = vsel %vm2490, %v2467, %v2471
      %v2500 = vsel %vm2490, %v2469, %v2473
      %v2501 = vsel %vm2490, %v2463, %v2467
      %v2502 = vsel %vm2490, %v2465, %v2469
      %v2503 = vsel %vm2490, %v2459, %v2463
      %v2504 = vsel %vm2490, %v2461, %v2465
      %v2505 = vsel %vm2490, %v2487, %v2459
      %v2506 = vsel %vm2490, %v2489, %v2461
      %v2507 = vsel %vm2262, 1, 0
      %v2508 = vsel %vm2263, 1, 0
      %v2509 = vsel %vm2264, 1, 0
      %v2510 = vsel %vm2265, 1, 0
      %v2511 = vsel %vm2266, 1, 0
      %v2512 = vsel %vm2267, 1, 0
      %v2513 = vsel %vm2268, 1, 0
      %v2514 = vsel %vm2269, 1, 0
      %vm2515 = vcmp.eq.s32.totalorder %v2507, 1
      %vm2516 = vcmp.eq.s32.totalorder %v2508, 1
      %vm2517 = vcmp.eq.s32.totalorder %v2509, 1
      %vm2518 = vcmp.eq.s32.totalorder %v2510, 1
      %vm2519 = vcmp.eq.s32.totalorder %v2511, 1
      %vm2520 = vcmp.eq.s32.totalorder %v2512, 1
      %vm2521 = vcmp.eq.s32.totalorder %v2513, 1
      %vm2522 = vcmp.eq.s32.totalorder %v2514, 1
      %v2523 = vsel %vm2515, %v2505, 0.0
      %v2524 = vsel %vm2516, %v2503, 0.0
      %v2525 = vsel %vm2517, %v2501, 0.0
      %v2526 = vsel %vm2518, %v2499, 0.0
      %v2527 = vsel %vm2519, %v2497, 0.0
      %v2528 = vsel %vm2520, %v2495, 0.0
      %v2529 = vsel %vm2521, %v2493, 0.0
      %v2530 = vsel %vm2522, %v2491, 0.0
      %v2531 = vsel %vm2515, %v2506, 0.0
      %v2532 = vsel %vm2516, %v2504, 0.0
      %v2533 = vsel %vm2517, %v2502, 0.0
      %v2534 = vsel %vm2518, %v2500, 0.0
      %v2535 = vsel %vm2519, %v2498, 0.0
      %v2536 = vsel %vm2520, %v2496, 0.0
      %v2537 = vsel %vm2521, %v2494, 0.0
      %v2538 = vsel %vm2522, %v2492, 0.0
      %2539 = vrot.lane.b32.xlu0 %v2191, 1
      %v2540 = vpop.permute.xlu0 %2539
      %2541 = vrot.lane.b32.xlu0 %v2288, 1
      %v2542 = vpop.permute.xlu0 %2541
      %2543 = vrot.lane.b32.xlu0 %v2192, 1
      %v2544 = vpop.permute.xlu0 %2543
      %2545 = vrot.lane.b32.xlu0 %v2289, 1
      %v2546 = vpop.permute.xlu0 %2545
      %2547 = vrot.lane.b32.xlu0 %v2193, 1
      %v2548 = vpop.permute.xlu0 %2547
      %2549 = vrot.lane.b32.xlu0 %v2290, 1
      %v2550 = vpop.permute.xlu0 %2549
      %2551 = vrot.lane.b32.xlu0 %v2194, 1
      %v2552 = vpop.permute.xlu0 %2551
      %2553 = vrot.lane.b32.xlu0 %v2291, 1
      %v2554 = vpop.permute.xlu0 %2553
      %2555 = vrot.lane.b32.xlu0 %v2195, 1
      %v2556 = vpop.permute.xlu0 %2555
      %2557 = vrot.lane.b32.xlu0 %v2292, 1
      %v2558 = vpop.permute.xlu0 %2557
      %2559 = vrot.lane.b32.xlu0 %v2196, 1
      %v2560 = vpop.permute.xlu0 %2559
      %2561 = vrot.lane.b32.xlu0 %v2293, 1
      %v2562 = vpop.permute.xlu0 %2561
      %2563 = vrot.lane.b32.xlu0 %v2197, 1
      %v2564 = vpop.permute.xlu0 %2563
      %2565 = vrot.lane.b32.xlu0 %v2294, 1
      %v2566 = vpop.permute.xlu0 %2565
      %2567 = vrot.lane.b32.xlu0 %v2198, 1
      %v2568 = vpop.permute.xlu0 %2567
      %2569 = vrot.lane.b32.xlu0 %v2295, 1
      %v2570 = vpop.permute.xlu0 %2569
      %vm2571 = vcmp.lt.s32.totalorder %v561, 1
      %v2572 = vsel %vm2571, %v2564, %v2568
      %v2573 = vsel %vm2571, %v2566, %v2570
      %v2574 = vsel %vm2571, %v2560, %v2564
      %v2575 = vsel %vm2571, %v2562, %v2566
      %v2576 = vsel %vm2571, %v2556, %v2560
      %v2577 = vsel %vm2571, %v2558, %v2562
      %v2578 = vsel %vm2571, %v2552, %v2556
      %v2579 = vsel %vm2571, %v2554, %v2558
      %v2580 = vsel %vm2571, %v2548, %v2552
      %v2581 = vsel %vm2571, %v2550, %v2554
      %v2582 = vsel %vm2571, %v2544, %v2548
      %v2583 = vsel %vm2571, %v2546, %v2550
      %v2584 = vsel %vm2571, %v2540, %v2544
      %v2585 = vsel %vm2571, %v2542, %v2546
      %v2586 = vsel %vm2571, %v2568, %v2540
      %v2587 = vsel %vm2571, %v2570, %v2542
      %v2588 = vsel %vm2238, 1, 0
      %v2589 = vsel %vm2239, 1, 0
      %v2590 = vsel %vm2240, 1, 0
      %v2591 = vsel %vm2241, 1, 0
      %v2592 = vsel %vm2242, 1, 0
      %v2593 = vsel %vm2243, 1, 0
      %v2594 = vsel %vm2244, 1, 0
      %v2595 = vsel %vm2245, 1, 0
      %vm2596 = vcmp.eq.s32.totalorder %v2588, 1
      %vm2597 = vcmp.eq.s32.totalorder %v2589, 1
      %vm2598 = vcmp.eq.s32.totalorder %v2590, 1
      %vm2599 = vcmp.eq.s32.totalorder %v2591, 1
      %vm2600 = vcmp.eq.s32.totalorder %v2592, 1
      %vm2601 = vcmp.eq.s32.totalorder %v2593, 1
      %vm2602 = vcmp.eq.s32.totalorder %v2594, 1
      %vm2603 = vcmp.eq.s32.totalorder %v2595, 1
      %v2604 = vsel %vm2596, %v2586, 0.0
      %v2605 = vsel %vm2597, %v2584, 0.0
      %v2606 = vsel %vm2598, %v2582, 0.0
      %v2607 = vsel %vm2599, %v2580, 0.0
      %v2608 = vsel %vm2600, %v2578, 0.0
      %v2609 = vsel %vm2601, %v2576, 0.0
      %v2610 = vsel %vm2602, %v2574, 0.0
      %v2611 = vsel %vm2603, %v2572, 0.0
      %v2612 = vsel %vm2596, %v2587, 0.0
      %v2613 = vsel %vm2597, %v2585, 0.0
      %v2614 = vsel %vm2598, %v2583, 0.0
      %v2615 = vsel %vm2599, %v2581, 0.0
      %v2616 = vsel %vm2600, %v2579, 0.0
      %v2617 = vsel %vm2601, %v2577, 0.0
      %v2618 = vsel %vm2602, %v2575, 0.0
      %v2619 = vsel %vm2603, %v2573, 0.0
      %2620 = vrot.lane.b32.xlu0 %v2191, 127
      %v2621 = vpop.permute.xlu0 %2620
      %2622 = vrot.lane.b32.xlu0 %v2288, 127
      %v2623 = vpop.permute.xlu0 %2622
      %2624 = vrot.lane.b32.xlu0 %v2192, 127
      %v2625 = vpop.permute.xlu0 %2624
      %2626 = vrot.lane.b32.xlu0 %v2289, 127
      %v2627 = vpop.permute.xlu0 %2626
      %2628 = vrot.lane.b32.xlu0 %v2193, 127
      %v2629 = vpop.permute.xlu0 %2628
      %2630 = vrot.lane.b32.xlu0 %v2290, 127
      %v2631 = vpop.permute.xlu0 %2630
      %2632 = vrot.lane.b32.xlu0 %v2194, 127
      %v2633 = vpop.permute.xlu0 %2632
      %2634 = vrot.lane.b32.xlu0 %v2291, 127
      %v2635 = vpop.permute.xlu0 %2634
      %2636 = vrot.lane.b32.xlu0 %v2195, 127
      %v2637 = vpop.permute.xlu0 %2636
      %2638 = vrot.lane.b32.xlu0 %v2292, 127
      %v2639 = vpop.permute.xlu0 %2638
      %2640 = vrot.lane.b32.xlu0 %v2196, 127
      %v2641 = vpop.permute.xlu0 %2640
      %2642 = vrot.lane.b32.xlu0 %v2293, 127
      %v2643 = vpop.permute.xlu0 %2642
      %2644 = vrot.lane.b32.xlu0 %v2197, 127
      %v2645 = vpop.permute.xlu0 %2644
      %2646 = vrot.lane.b32.xlu0 %v2294, 127
      %v2647 = vpop.permute.xlu0 %2646
      %2648 = vrot.lane.b32.xlu0 %v2198, 127
      %v2649 = vpop.permute.xlu0 %2648
      %2650 = vrot.lane.b32.xlu0 %v2295, 127
      %v2651 = vpop.permute.xlu0 %2650
      %vm2652 = vcmp.lt.s32.totalorder %v561, 127
      %v2653 = vsel %vm2652, %v2645, %v2649
      %v2654 = vsel %vm2652, %v2647, %v2651
      %v2655 = vsel %vm2652, %v2641, %v2645
      %v2656 = vsel %vm2652, %v2643, %v2647
      %v2657 = vsel %vm2652, %v2637, %v2641
      %v2658 = vsel %vm2652, %v2639, %v2643
      %v2659 = vsel %vm2652, %v2633, %v2637
      %v2660 = vsel %vm2652, %v2635, %v2639
      %v2661 = vsel %vm2652, %v2629, %v2633
      %v2662 = vsel %vm2652, %v2631, %v2635
      %v2663 = vsel %vm2652, %v2625, %v2629
      %v2664 = vsel %vm2652, %v2627, %v2631
      %v2665 = vsel %vm2652, %v2621, %v2625
      %v2666 = vsel %vm2652, %v2623, %v2627
      %v2667 = vsel %vm2652, %v2649, %v2621
      %v2668 = vsel %vm2652, %v2651, %v2623
      %v2669 = vsel %vm2246, 1, 0
      %v2670 = vsel %vm2247, 1, 0
      %v2671 = vsel %vm2248, 1, 0
      %v2672 = vsel %vm2249, 1, 0
      %v2673 = vsel %vm2250, 1, 0
      %v2674 = vsel %vm2251, 1, 0
      %v2675 = vsel %vm2252, 1, 0
      %v2676 = vsel %vm2253, 1, 0
      %vm2677 = vcmp.eq.s32.totalorder %v2669, 1
      %vm2678 = vcmp.eq.s32.totalorder %v2670, 1
      %vm2679 = vcmp.eq.s32.totalorder %v2671, 1
      %vm2680 = vcmp.eq.s32.totalorder %v2672, 1
      %vm2681 = vcmp.eq.s32.totalorder %v2673, 1
      %vm2682 = vcmp.eq.s32.totalorder %v2674, 1
      %vm2683 = vcmp.eq.s32.totalorder %v2675, 1
      %vm2684 = vcmp.eq.s32.totalorder %v2676, 1
      %v2685 = vsel %vm2677, %v2665, 0.0
      %v2686 = vsel %vm2678, %v2663, 0.0
      %v2687 = vsel %vm2679, %v2661, 0.0
      %v2688 = vsel %vm2680, %v2659, 0.0
      %v2689 = vsel %vm2681, %v2657, 0.0
      %v2690 = vsel %vm2682, %v2655, 0.0
      %v2691 = vsel %vm2683, %v2653, 0.0
      %v2692 = vsel %vm2684, %v2667, 0.0
      %v2693 = vsel %vm2677, %v2666, 0.0
      %v2694 = vsel %vm2678, %v2664, 0.0
      %v2695 = vsel %vm2679, %v2662, 0.0
      %v2696 = vsel %vm2680, %v2660, 0.0
      %v2697 = vsel %vm2681, %v2658, 0.0
      %v2698 = vsel %vm2682, %v2656, 0.0
      %v2699 = vsel %vm2683, %v2654, 0.0
      %v2700 = vsel %vm2684, %v2668, 0.0
      %2701 = vrot.lane.b32.xlu0 %v2191, 97
      %v2702 = vpop.permute.xlu0 %2701
      %2703 = vrot.lane.b32.xlu0 %v2288, 97
      %v2704 = vpop.permute.xlu0 %2703
      %2705 = vrot.lane.b32.xlu0 %v2192, 97
      %v2706 = vpop.permute.xlu0 %2705
      %2707 = vrot.lane.b32.xlu0 %v2289, 97
      %v2708 = vpop.permute.xlu0 %2707
      %2709 = vrot.lane.b32.xlu0 %v2193, 97
      %v2710 = vpop.permute.xlu0 %2709
      %2711 = vrot.lane.b32.xlu0 %v2290, 97
      %v2712 = vpop.permute.xlu0 %2711
      %2713 = vrot.lane.b32.xlu0 %v2194, 97
      %v2714 = vpop.permute.xlu0 %2713
      %2715 = vrot.lane.b32.xlu0 %v2291, 97
      %v2716 = vpop.permute.xlu0 %2715
      %2717 = vrot.lane.b32.xlu0 %v2195, 97
      %v2718 = vpop.permute.xlu0 %2717
      %2719 = vrot.lane.b32.xlu0 %v2292, 97
      %v2720 = vpop.permute.xlu0 %2719
      %2721 = vrot.lane.b32.xlu0 %v2196, 97
      %v2722 = vpop.permute.xlu0 %2721
      %2723 = vrot.lane.b32.xlu0 %v2293, 97
      %v2724 = vpop.permute.xlu0 %2723
      %2725 = vrot.lane.b32.xlu0 %v2197, 97
      %v2726 = vpop.permute.xlu0 %2725
      %2727 = vrot.lane.b32.xlu0 %v2294, 97
      %v2728 = vpop.permute.xlu0 %2727
      %2729 = vrot.lane.b32.xlu0 %v2198, 97
      %v2730 = vpop.permute.xlu0 %2729
      %2731 = vrot.lane.b32.xlu0 %v2295, 97
      %v2732 = vpop.permute.xlu0 %2731
      %vm2733 = vcmp.lt.s32.totalorder %v561, 97
      %v2734 = vsel %vm2733, %v2726, %v2730
      %v2735 = vsel %vm2733, %v2728, %v2732
      %v2736 = vsel %vm2733, %v2722, %v2726
      %v2737 = vsel %vm2733, %v2724, %v2728
      %v2738 = vsel %vm2733, %v2718, %v2722
      %v2739 = vsel %vm2733, %v2720, %v2724
      %v2740 = vsel %vm2733, %v2714, %v2718
      %v2741 = vsel %vm2733, %v2716, %v2720
      %v2742 = vsel %vm2733, %v2710, %v2714
      %v2743 = vsel %vm2733, %v2712, %v2716
      %v2744 = vsel %vm2733, %v2706, %v2710
      %v2745 = vsel %vm2733, %v2708, %v2712
      %v2746 = vsel %vm2733, %v2702, %v2706
      %v2747 = vsel %vm2733, %v2704, %v2708
      %v2748 = vsel %vm2733, %v2730, %v2702
      %v2749 = vsel %vm2733, %v2732, %v2704
      %v2750 = vsel %vm2270, 1, 0
      %v2751 = vsel %vm2271, 1, 0
      %v2752 = vsel %vm2272, 1, 0
      %v2753 = vsel %vm2273, 1, 0
      %v2754 = vsel %vm2274, 1, 0
      %v2755 = vsel %vm2275, 1, 0
      %v2756 = vsel %vm2276, 1, 0
      %v2757 = vsel %vm2277, 1, 0
      %vm2758 = vcmp.eq.s32.totalorder %v2750, 1
      %vm2759 = vcmp.eq.s32.totalorder %v2751, 1
      %vm2760 = vcmp.eq.s32.totalorder %v2752, 1
      %vm2761 = vcmp.eq.s32.totalorder %v2753, 1
      %vm2762 = vcmp.eq.s32.totalorder %v2754, 1
      %vm2763 = vcmp.eq.s32.totalorder %v2755, 1
      %vm2764 = vcmp.eq.s32.totalorder %v2756, 1
      %vm2765 = vcmp.eq.s32.totalorder %v2757, 1
      %v2766 = vsel %vm2758, %v2746, 0.0
      %v2767 = vsel %vm2759, %v2744, 0.0
      %v2768 = vsel %vm2760, %v2742, 0.0
      %v2769 = vsel %vm2761, %v2740, 0.0
      %v2770 = vsel %vm2762, %v2738, 0.0
      %v2771 = vsel %vm2763, %v2736, 0.0
      %v2772 = vsel %vm2764, %v2734, 0.0
      %v2773 = vsel %vm2765, %v2748, 0.0
      %v2774 = vsel %vm2758, %v2747, 0.0
      %v2775 = vsel %vm2759, %v2745, 0.0
      %v2776 = vsel %vm2760, %v2743, 0.0
      %v2777 = vsel %vm2761, %v2741, 0.0
      %v2778 = vsel %vm2762, %v2739, 0.0
      %v2779 = vsel %vm2763, %v2737, 0.0
      %v2780 = vsel %vm2764, %v2735, 0.0
      %v2781 = vsel %vm2765, %v2749, 0.0
      %2782 = vrot.lane.b32.xlu0 %v2191, 96
      %v2783 = vpop.permute.xlu0 %2782
      %2784 = vrot.lane.b32.xlu0 %v2288, 96
      %v2785 = vpop.permute.xlu0 %2784
      %2786 = vrot.lane.b32.xlu0 %v2192, 96
      %v2787 = vpop.permute.xlu0 %2786
      %2788 = vrot.lane.b32.xlu0 %v2289, 96
      %v2789 = vpop.permute.xlu0 %2788
      %2790 = vrot.lane.b32.xlu0 %v2193, 96
      %v2791 = vpop.permute.xlu0 %2790
      %2792 = vrot.lane.b32.xlu0 %v2290, 96
      %v2793 = vpop.permute.xlu0 %2792
      %2794 = vrot.lane.b32.xlu0 %v2194, 96
      %v2795 = vpop.permute.xlu0 %2794
      %2796 = vrot.lane.b32.xlu0 %v2291, 96
      %v2797 = vpop.permute.xlu0 %2796
      %2798 = vrot.lane.b32.xlu0 %v2195, 96
      %v2799 = vpop.permute.xlu0 %2798
      %2800 = vrot.lane.b32.xlu0 %v2292, 96
      %v2801 = vpop.permute.xlu0 %2800
      %2802 = vrot.lane.b32.xlu0 %v2196, 96
      %v2803 = vpop.permute.xlu0 %2802
      %2804 = vrot.lane.b32.xlu0 %v2293, 96
      %v2805 = vpop.permute.xlu0 %2804
      %2806 = vrot.lane.b32.xlu0 %v2197, 96
      %v2807 = vpop.permute.xlu0 %2806
      %2808 = vrot.lane.b32.xlu0 %v2294, 96
      %v2809 = vpop.permute.xlu0 %2808
      %2810 = vrot.lane.b32.xlu0 %v2198, 96
      %v2811 = vpop.permute.xlu0 %2810
      %2812 = vrot.lane.b32.xlu0 %v2295, 96
      %v2813 = vpop.permute.xlu0 %2812
      %vm2814 = vcmp.lt.s32.totalorder %v561, 96
      %v2815 = vsel %vm2814, %v2807, %v2811
      %v2816 = vsel %vm2814, %v2809, %v2813
      %v2817 = vsel %vm2814, %v2803, %v2807
      %v2818 = vsel %vm2814, %v2805, %v2809
      %v2819 = vsel %vm2814, %v2799, %v2803
      %v2820 = vsel %vm2814, %v2801, %v2805
      %v2821 = vsel %vm2814, %v2795, %v2799
      %v2822 = vsel %vm2814, %v2797, %v2801
      %v2823 = vsel %vm2814, %v2791, %v2795
      %v2824 = vsel %vm2814, %v2793, %v2797
      %v2825 = vsel %vm2814, %v2787, %v2791
      %v2826 = vsel %vm2814, %v2789, %v2793
      %v2827 = vsel %vm2814, %v2783, %v2787
      %v2828 = vsel %vm2814, %v2785, %v2789
      %v2829 = vsel %vm2814, %v2811, %v2783
      %v2830 = vsel %vm2814, %v2813, %v2785
      %v2831 = vsel %vm2230, 1, 0
      %v2832 = vsel %vm2231, 1, 0
      %v2833 = vsel %vm2232, 1, 0
      %v2834 = vsel %vm2233, 1, 0
      %v2835 = vsel %vm2234, 1, 0
      %v2836 = vsel %vm2235, 1, 0
      %v2837 = vsel %vm2236, 1, 0
      %v2838 = vsel %vm2237, 1, 0
      %vm2839 = vcmp.eq.s32.totalorder %v2831, 1
      %vm2840 = vcmp.eq.s32.totalorder %v2832, 1
      %vm2841 = vcmp.eq.s32.totalorder %v2833, 1
      %vm2842 = vcmp.eq.s32.totalorder %v2834, 1
      %vm2843 = vcmp.eq.s32.totalorder %v2835, 1
      %vm2844 = vcmp.eq.s32.totalorder %v2836, 1
      %vm2845 = vcmp.eq.s32.totalorder %v2837, 1
      %vm2846 = vcmp.eq.s32.totalorder %v2838, 1
      %v2847 = vsel %vm2839, %v2827, 0.0
      %v2848 = vsel %vm2840, %v2825, 0.0
      %v2849 = vsel %vm2841, %v2823, 0.0
      %v2850 = vsel %vm2842, %v2821, 0.0
      %v2851 = vsel %vm2843, %v2819, 0.0
      %v2852 = vsel %vm2844, %v2817, 0.0
      %v2853 = vsel %vm2845, %v2815, 0.0
      %v2854 = vsel %vm2846, %v2829, 0.0
      %v2855 = vsel %vm2839, %v2828, 0.0
      %v2856 = vsel %vm2840, %v2826, 0.0
      %v2857 = vsel %vm2841, %v2824, 0.0
      %v2858 = vsel %vm2842, %v2822, 0.0
      %v2859 = vsel %vm2843, %v2820, 0.0
      %v2860 = vsel %vm2844, %v2818, 0.0
      %v2861 = vsel %vm2845, %v2816, 0.0
      %v2862 = vsel %vm2846, %v2830, 0.0
      %2863 = vrot.lane.b32.xlu0 %v2191, 95
      %v2864 = vpop.permute.xlu0 %2863
      %2865 = vrot.lane.b32.xlu0 %v2288, 95
      %v2866 = vpop.permute.xlu0 %2865
      %2867 = vrot.lane.b32.xlu0 %v2192, 95
      %v2868 = vpop.permute.xlu0 %2867
      %2869 = vrot.lane.b32.xlu0 %v2289, 95
      %v2870 = vpop.permute.xlu0 %2869
      %2871 = vrot.lane.b32.xlu0 %v2193, 95
      %v2872 = vpop.permute.xlu0 %2871
      %2873 = vrot.lane.b32.xlu0 %v2290, 95
      %v2874 = vpop.permute.xlu0 %2873
      %2875 = vrot.lane.b32.xlu0 %v2194, 95
      %v2876 = vpop.permute.xlu0 %2875
      %2877 = vrot.lane.b32.xlu0 %v2291, 95
      %v2878 = vpop.permute.xlu0 %2877
      %2879 = vrot.lane.b32.xlu0 %v2195, 95
      %v2880 = vpop.permute.xlu0 %2879
      %2881 = vrot.lane.b32.xlu0 %v2292, 95
      %v2882 = vpop.permute.xlu0 %2881
      %2883 = vrot.lane.b32.xlu0 %v2196, 95
      %v2884 = vpop.permute.xlu0 %2883
      %2885 = vrot.lane.b32.xlu0 %v2293, 95
      %v2886 = vpop.permute.xlu0 %2885
      %2887 = vrot.lane.b32.xlu0 %v2197, 95
      %v2888 = vpop.permute.xlu0 %2887
      %2889 = vrot.lane.b32.xlu0 %v2294, 95
      %v2890 = vpop.permute.xlu0 %2889
      %2891 = vrot.lane.b32.xlu0 %v2198, 95
      %v2892 = vpop.permute.xlu0 %2891
      %2893 = vrot.lane.b32.xlu0 %v2295, 95
      %v2894 = vpop.permute.xlu0 %2893
      %vm2895 = vcmp.lt.s32.totalorder %v561, 95
      %v2896 = vsel %vm2895, %v2888, %v2892
      %v2897 = vsel %vm2895, %v2890, %v2894
      %v2898 = vsel %vm2895, %v2884, %v2888
      %v2899 = vsel %vm2895, %v2886, %v2890
      %v2900 = vsel %vm2895, %v2880, %v2884
      %v2901 = vsel %vm2895, %v2882, %v2886
      %v2902 = vsel %vm2895, %v2876, %v2880
      %v2903 = vsel %vm2895, %v2878, %v2882
      %v2904 = vsel %vm2895, %v2872, %v2876
      %v2905 = vsel %vm2895, %v2874, %v2878
      %v2906 = vsel %vm2895, %v2868, %v2872
      %v2907 = vsel %vm2895, %v2870, %v2874
      %v2908 = vsel %vm2895, %v2864, %v2868
      %v2909 = vsel %vm2895, %v2866, %v2870
      %v2910 = vsel %vm2895, %v2892, %v2864
      %v2911 = vsel %vm2895, %v2894, %v2866
      %v2912 = vsel %vm2278, 1, 0
      %v2913 = vsel %vm2279, 1, 0
      %v2914 = vsel %vm2280, 1, 0
      %v2915 = vsel %vm2281, 1, 0
      %v2916 = vsel %vm2282, 1, 0
      %v2917 = vsel %vm2283, 1, 0
      %v2918 = vsel %vm2284, 1, 0
      %v2919 = vsel %vm2285, 1, 0
      %vm2920 = vcmp.eq.s32.totalorder %v2912, 1
      %vm2921 = vcmp.eq.s32.totalorder %v2913, 1
      %vm2922 = vcmp.eq.s32.totalorder %v2914, 1
      %vm2923 = vcmp.eq.s32.totalorder %v2915, 1
      %vm2924 = vcmp.eq.s32.totalorder %v2916, 1
      %vm2925 = vcmp.eq.s32.totalorder %v2917, 1
      %vm2926 = vcmp.eq.s32.totalorder %v2918, 1
      %vm2927 = vcmp.eq.s32.totalorder %v2919, 1
      %v2928 = vsel %vm2920, %v2908, 0.0
      %v2929 = vsel %vm2921, %v2906, 0.0
      %v2930 = vsel %vm2922, %v2904, 0.0
      %v2931 = vsel %vm2923, %v2902, 0.0
      %v2932 = vsel %vm2924, %v2900, 0.0
      %v2933 = vsel %vm2925, %v2898, 0.0
      %v2934 = vsel %vm2926, %v2896, 0.0
      %v2935 = vsel %vm2927, %v2910, 0.0
      %v2936 = vsel %vm2920, %v2909, 0.0
      %v2937 = vsel %vm2921, %v2907, 0.0
      %v2938 = vsel %vm2922, %v2905, 0.0
      %v2939 = vsel %vm2923, %v2903, 0.0
      %v2940 = vsel %vm2924, %v2901, 0.0
      %v2941 = vsel %vm2925, %v2899, 0.0
      %v2942 = vsel %vm2926, %v2897, 0.0
      %v2943 = vsel %vm2927, %v2911, 0.0
      %v2944 = vpack.c.bf16 %v2369, %v2361
      %v2945 = vpack.c.bf16 %v2370, %v2362
      %v2946 = vpack.c.bf16 %v2371, %v2363
      %v2947 = vpack.c.bf16 %v2372, %v2364
      %v2948 = vpack.c.bf16 %v2373, %v2365
      %v2949 = vpack.c.bf16 %v2374, %v2366
      %v2950 = vpack.c.bf16 %v2375, %v2367
      %v2951 = vpack.c.bf16 %v2376, %v2368
      %v2952 = vpack.c.bf16 %v2450, %v2442
      %v2953 = vpack.c.bf16 %v2451, %v2443
      %v2954 = vpack.c.bf16 %v2452, %v2444
      %v2955 = vpack.c.bf16 %v2453, %v2445
      %v2956 = vpack.c.bf16 %v2454, %v2446
      %v2957 = vpack.c.bf16 %v2455, %v2447
      %v2958 = vpack.c.bf16 %v2456, %v2448
      %v2959 = vpack.c.bf16 %v2457, %v2449
      %v2960 = vpack.c.bf16 %v2531, %v2523
      %v2961 = vpack.c.bf16 %v2532, %v2524
      %v2962 = vpack.c.bf16 %v2533, %v2525
      %v2963 = vpack.c.bf16 %v2534, %v2526
      %v2964 = vpack.c.bf16 %v2535, %v2527
      %v2965 = vpack.c.bf16 %v2536, %v2528
      %v2966 = vpack.c.bf16 %v2537, %v2529
      %v2967 = vpack.c.bf16 %v2538, %v2530
      %v2968 = vpack.c.bf16 %v2612, %v2604
      %v2969 = vpack.c.bf16 %v2613, %v2605
      %v2970 = vpack.c.bf16 %v2614, %v2606
      %v2971 = vpack.c.bf16 %v2615, %v2607
      %v2972 = vpack.c.bf16 %v2616, %v2608
      %v2973 = vpack.c.bf16 %v2617, %v2609
      %v2974 = vpack.c.bf16 %v2618, %v2610
      %v2975 = vpack.c.bf16 %v2619, %v2611
      %v2976 = vpack.c.bf16 %v2288, %v2191
      %v2977 = vpack.c.bf16 %v2289, %v2192
      %v2978 = vpack.c.bf16 %v2290, %v2193
      %v2979 = vpack.c.bf16 %v2291, %v2194
      %v2980 = vpack.c.bf16 %v2292, %v2195
      %v2981 = vpack.c.bf16 %v2293, %v2196
      %v2982 = vpack.c.bf16 %v2294, %v2197
      %v2983 = vpack.c.bf16 %v2295, %v2198
      %v2984 = vpack.c.bf16 %v2693, %v2685
      %v2985 = vpack.c.bf16 %v2694, %v2686
      %v2986 = vpack.c.bf16 %v2695, %v2687
      %v2987 = vpack.c.bf16 %v2696, %v2688
      %v2988 = vpack.c.bf16 %v2697, %v2689
      %v2989 = vpack.c.bf16 %v2698, %v2690
      %v2990 = vpack.c.bf16 %v2699, %v2691
      %v2991 = vpack.c.bf16 %v2700, %v2692
      %v2992 = vpack.c.bf16 %v2774, %v2766
      %v2993 = vpack.c.bf16 %v2775, %v2767
      %v2994 = vpack.c.bf16 %v2776, %v2768
      %v2995 = vpack.c.bf16 %v2777, %v2769
      %v2996 = vpack.c.bf16 %v2778, %v2770
      %v2997 = vpack.c.bf16 %v2779, %v2771
      %v2998 = vpack.c.bf16 %v2780, %v2772
      %v2999 = vpack.c.bf16 %v2781, %v2773
      %v3000 = vpack.c.bf16 %v2855, %v2847
      %v3001 = vpack.c.bf16 %v2856, %v2848
      %v3002 = vpack.c.bf16 %v2857, %v2849
      %v3003 = vpack.c.bf16 %v2858, %v2850
      %v3004 = vpack.c.bf16 %v2859, %v2851
      %v3005 = vpack.c.bf16 %v2860, %v2852
      %v3006 = vpack.c.bf16 %v2861, %v2853
      %v3007 = vpack.c.bf16 %v2862, %v2854
      %v3008 = vpack.c.bf16 %v2936, %v2928
      %v3009 = vpack.c.bf16 %v2937, %v2929
      %v3010 = vpack.c.bf16 %v2938, %v2930
      %v3011 = vpack.c.bf16 %v2939, %v2931
      %v3012 = vpack.c.bf16 %v2940, %v2932
      %v3013 = vpack.c.bf16 %v2941, %v2933
      %v3014 = vpack.c.bf16 %v2942, %v2934
      %v3015 = vpack.c.bf16 %v2943, %v2935
      %3017 = vset.pattern.permute.xlu0 0
      %3018 = vperm.xlu0 %3017, %v2287
      %v3019 = vpop.permute.xlu0 %3018
      %v3022 = vunpack.c.l.b16 %v2286
      %v3023 = vunpack.c.h.b16 %v2286
      %v3024 = vpack.c.b16 %v3022, %v3022
      %v3025 = vpack.c.b16 %v3023, %v3023
      %v3028 = vsel %vm516, %v3025, 0
      %3030 = vmatprep.subr.bf16.mxu0 %v3001
      %3031 = vmatpush1.bf16.msra.mxu0 %v3000
      %3032 = vmatprep.subr.bf16.mxu0 %v2993
      %3033 = vmatpush1.bf16.msra.mxu0 %v2992
      %3034 = vmatprep.subr.bf16.mxu0 %v2985
      %3035 = vmatpush1.bf16.msra.mxu0 %v2984
      %3036 = vmatprep.subr.bf16.mxu0 %v2977
      %3037 = vmatpush1.bf16.msra.mxu0 %v2976
      %3038 = vmatprep.subr.bf16.mxu0 %v2969
      %3039 = vmatpush1.bf16.msra.mxu0 %v2968
      %3040 = vmatprep.subr.bf16.mxu0 %v2961
      %3041 = vmatpush1.bf16.msra.mxu0 %v2960
      %3042 = vmatprep.subr.bf16.mxu0 %v2953
      %3043 = vmatpush1.bf16.msra.mxu0 %v2952
      %3044 = vmatprep.subr.bf16.mxu0 %v2945
      %3045 = vmatpush1.bf16.msra.mxu0 %v2944
      %3046 = vmatprep.subr.bf16.mxu0 0
      %3047 = vmatpush2.bf16.msra.mxu0 0
      %3048 = vmatprep.subr.bf16.mxu0 0
      %3049 = vmatpush2.bf16.msra.mxu0 0
      %3050 = vmatprep.subr.bf16.mxu0 0
      %3051 = vmatpush2.bf16.msra.mxu0 0
      %3052 = vmatprep.subr.bf16.mxu0 0
      %3053 = vmatpush2.bf16.msra.mxu0 0
      %3054 = vmatprep.subr.bf16.mxu0 0
      %3055 = vmatpush2.bf16.msra.mxu0 0
      %3056 = vmatprep.subr.bf16.mxu0 0
      %3057 = vmatpush2.bf16.msra.mxu0 0
      %3058 = vmatprep.subr.bf16.mxu0 0
      %3059 = vmatpush2.bf16.msra.mxu0 0
      %3060 = vmatprep.subr.bf16.mxu0 %v3009
      %3061 = vmatpush2.bf16.msra.mxu0 %v3008
      %3062 = vmatprep.mubr.bf16.mxu0 %v3028
      %3063 = vmatmul.mubr.bf16.gmra.mxu0 %v3024
      %v3064 = vpop.f32.mrf.mxu0
      %v3065 = vadd.f32 %v3019, %v3064
      %v3066 = vpop.f32.mrf.mxu0
      %v3067 = vadd.f32 %v3019, %v3066
      %v3068 = vpop.f32.mrf.mxu0
      %v3069 = vpop.f32.mrf.mxu0
      %3070 = vdwg.mxu0
      %3071 = vmatprep.subr.bf16.mxu0 %v3003
      %3072 = vmatpush1.bf16.msra.mxu0 %v3002
      %3073 = vmatprep.subr.bf16.mxu0 %v2995
      %3074 = vmatpush1.bf16.msra.mxu0 %v2994
      %3075 = vmatprep.subr.bf16.mxu0 %v2987
      %3076 = vmatpush1.bf16.msra.mxu0 %v2986
      %3077 = vmatprep.subr.bf16.mxu0 %v2979
      %3078 = vmatpush1.bf16.msra.mxu0 %v2978
      %3079 = vmatprep.subr.bf16.mxu0 %v2971
      %3080 = vmatpush1.bf16.msra.mxu0 %v2970
      %3081 = vmatprep.subr.bf16.mxu0 %v2963
      %3082 = vmatpush1.bf16.msra.mxu0 %v2962
      %3083 = vmatprep.subr.bf16.mxu0 %v2955
      %3084 = vmatpush1.bf16.msra.mxu0 %v2954
      %3085 = vmatprep.subr.bf16.mxu0 %v2947
      %3086 = vmatpush1.bf16.msra.mxu0 %v2946
      %3087 = vmatprep.subr.bf16.mxu0 0
      %3088 = vmatpush2.bf16.msra.mxu0 0
      %3089 = vmatprep.subr.bf16.mxu0 0
      %3090 = vmatpush2.bf16.msra.mxu0 0
      %3091 = vmatprep.subr.bf16.mxu0 0
      %3092 = vmatpush2.bf16.msra.mxu0 0
      %3093 = vmatprep.subr.bf16.mxu0 0
      %3094 = vmatpush2.bf16.msra.mxu0 0
      %3095 = vmatprep.subr.bf16.mxu0 0
      %3096 = vmatpush2.bf16.msra.mxu0 0
      %3097 = vmatprep.subr.bf16.mxu0 0
      %3098 = vmatpush2.bf16.msra.mxu0 0
      %3099 = vmatprep.subr.bf16.mxu0 0
      %3100 = vmatpush2.bf16.msra.mxu0 0
      %3101 = vmatprep.subr.bf16.mxu0 %v3011
      %3102 = vmatpush2.bf16.msra.mxu0 %v3010
      %3103 = vmatprep.mubr.bf16.mxu0 %v3028
      %3104 = vmatmul.mubr.bf16.gmra.mxu0 %v3024
      %v3105 = vpop.f32.mrf.mxu0
      %v3106 = vadd.f32 %v3019, %v3105
      %v3107 = vpop.f32.mrf.mxu0
      %v3108 = vadd.f32 %v3019, %v3107
      %v3109 = vpop.f32.mrf.mxu0
      %v3110 = vpop.f32.mrf.mxu0
      %3111 = vdwg.mxu0
      %3112 = vmatprep.subr.bf16.mxu0 %v3005
      %3113 = vmatpush1.bf16.msra.mxu0 %v3004
      %3114 = vmatprep.subr.bf16.mxu0 %v2997
      %3115 = vmatpush1.bf16.msra.mxu0 %v2996
      %3116 = vmatprep.subr.bf16.mxu0 %v2989
      %3117 = vmatpush1.bf16.msra.mxu0 %v2988
      %3118 = vmatprep.subr.bf16.mxu0 %v2981
      %3119 = vmatpush1.bf16.msra.mxu0 %v2980
      %3120 = vmatprep.subr.bf16.mxu0 %v2973
      %3121 = vmatpush1.bf16.msra.mxu0 %v2972
      %3122 = vmatprep.subr.bf16.mxu0 %v2965
      %3123 = vmatpush1.bf16.msra.mxu0 %v2964
      %3124 = vmatprep.subr.bf16.mxu0 %v2957
      %3125 = vmatpush1.bf16.msra.mxu0 %v2956
      %3126 = vmatprep.subr.bf16.mxu0 %v2949
      %3127 = vmatpush1.bf16.msra.mxu0 %v2948
      %3128 = vmatprep.subr.bf16.mxu0 0
      %3129 = vmatpush2.bf16.msra.mxu0 0
      %3130 = vmatprep.subr.bf16.mxu0 0
      %3131 = vmatpush2.bf16.msra.mxu0 0
      %3132 = vmatprep.subr.bf16.mxu0 0
      %3133 = vmatpush2.bf16.msra.mxu0 0
      %3134 = vmatprep.subr.bf16.mxu0 0
      %3135 = vmatpush2.bf16.msra.mxu0 0
      %3136 = vmatprep.subr.bf16.mxu0 0
      %3137 = vmatpush2.bf16.msra.mxu0 0
      %3138 = vmatprep.subr.bf16.mxu0 0
      %3139 = vmatpush2.bf16.msra.mxu0 0
      %3140 = vmatprep.subr.bf16.mxu0 0
      %3141 = vmatpush2.bf16.msra.mxu0 0
      %3142 = vmatprep.subr.bf16.mxu0 %v3013
      %3143 = vmatpush2.bf16.msra.mxu0 %v3012
      %3144 = vmatprep.mubr.bf16.mxu0 %v3028
      %3145 = vmatmul.mubr.bf16.gmra.mxu0 %v3024
      %v3146 = vpop.f32.mrf.mxu0
      %v3147 = vadd.f32 %v3019, %v3146
      %v3148 = vpop.f32.mrf.mxu0
      %v3149 = vadd.f32 %v3019, %v3148
      %v3150 = vpop.f32.mrf.mxu0
      %v3151 = vpop.f32.mrf.mxu0
      %3152 = vdwg.mxu0
      %3153 = vmatprep.subr.bf16.mxu0 %v3007
      %3154 = vmatpush1.bf16.msra.mxu0 %v3006
      %3155 = vmatprep.subr.bf16.mxu0 %v2999
      %3156 = vmatpush1.bf16.msra.mxu0 %v2998
      %3157 = vmatprep.subr.bf16.mxu0 %v2991
      %3158 = vmatpush1.bf16.msra.mxu0 %v2990
      %3159 = vmatprep.subr.bf16.mxu0 %v2983
      %3160 = vmatpush1.bf16.msra.mxu0 %v2982
      %3161 = vmatprep.subr.bf16.mxu0 %v2975
      %3162 = vmatpush1.bf16.msra.mxu0 %v2974
      %3163 = vmatprep.subr.bf16.mxu0 %v2967
      %3164 = vmatpush1.bf16.msra.mxu0 %v2966
      %3165 = vmatprep.subr.bf16.mxu0 %v2959
      %3166 = vmatpush1.bf16.msra.mxu0 %v2958
      %3167 = vmatprep.subr.bf16.mxu0 %v2951
      %3168 = vmatpush1.bf16.msra.mxu0 %v2950
      %3169 = vmatprep.subr.bf16.mxu0 0
      %3170 = vmatpush2.bf16.msra.mxu0 0
      %3171 = vmatprep.subr.bf16.mxu0 0
      %3172 = vmatpush2.bf16.msra.mxu0 0
      %3173 = vmatprep.subr.bf16.mxu0 0
      %3174 = vmatpush2.bf16.msra.mxu0 0
      %3175 = vmatprep.subr.bf16.mxu0 0
      %3176 = vmatpush2.bf16.msra.mxu0 0
      %3177 = vmatprep.subr.bf16.mxu0 0
      %3178 = vmatpush2.bf16.msra.mxu0 0
      %3179 = vmatprep.subr.bf16.mxu0 0
      %3180 = vmatpush2.bf16.msra.mxu0 0
      %3181 = vmatprep.subr.bf16.mxu0 0
      %3182 = vmatpush2.bf16.msra.mxu0 0
      %3183 = vmatprep.subr.bf16.mxu0 %v3015
      %3184 = vmatpush2.bf16.msra.mxu0 %v3014
      %3185 = vmatprep.mubr.bf16.mxu0 %v3028
      %3186 = vmatmul.mubr.bf16.gmra.mxu0 %v3024
      %v3187 = vpop.f32.mrf.mxu0
      %v3188 = vadd.f32 %v3019, %v3187
      %v3189 = vpop.f32.mrf.mxu0
      %v3190 = vadd.f32 %v3019, %v3189
      %v3191 = vpop.f32.mrf.mxu0
      %v3192 = vpop.f32.mrf.mxu0
      %3193 = vdwg.mxu0
      %vm3194 = vcmp.gt.f32.partialorder %v3065, 0.0
      %vm3195 = vcmp.gt.f32.partialorder %v3067, 0.0
      %vm3196 = vcmp.gt.f32.partialorder %v3106, 0.0
      %vm3197 = vcmp.gt.f32.partialorder %v3108, 0.0
      %vm3198 = vcmp.gt.f32.partialorder %v3147, 0.0
      %vm3199 = vcmp.gt.f32.partialorder %v3149, 0.0
      %vm3200 = vcmp.gt.f32.partialorder %v3188, 0.0
      %vm3201 = vcmp.gt.f32.partialorder %v3190, 0.0
      %v3202 = vmul.f32 %v3065, 0.01
      %v3203 = vmul.f32 %v3067, 0.01
      %v3204 = vmul.f32 %v3106, 0.01
      %v3205 = vmul.f32 %v3108, 0.01
      %v3206 = vmul.f32 %v3147, 0.01
      %v3207 = vmul.f32 %v3149, 0.01
      %v3208 = vmul.f32 %v3188, 0.01
      %v3209 = vmul.f32 %v3190, 0.01
      %v3210 = vsel %vm3194, %v3065, %v3202
      %v3211 = vsel %vm3195, %v3067, %v3203
      %v3212 = vsel %vm3196, %v3106, %v3204
      %v3213 = vsel %vm3197, %v3108, %v3205
      %v3214 = vsel %vm3198, %v3147, %v3206
      %v3215 = vsel %vm3199, %v3149, %v3207
      %v3216 = vsel %vm3200, %v3188, %v3208
      %v3217 = vsel %vm3201, %v3190, %v3209
      %v3218 = vld [vmem:[%s12] sm:$0xf]
      %v3219 = vld [vmem:[%s13] sm:$0xff]
      %3220 = vrot.lane.b32.xlu0 %v3210, 33
      %v3221 = vpop.permute.xlu0 %3220
      %3222 = vrot.lane.b32.xlu0 %v3211, 33
      %v3223 = vpop.permute.xlu0 %3222
      %3224 = vrot.lane.b32.xlu0 %v3212, 33
      %v3225 = vpop.permute.xlu0 %3224
      %3226 = vrot.lane.b32.xlu0 %v3213, 33
      %v3227 = vpop.permute.xlu0 %3226
      %3228 = vrot.lane.b32.xlu0 %v3214, 33
      %v3229 = vpop.permute.xlu0 %3228
      %3230 = vrot.lane.b32.xlu0 %v3215, 33
      %v3231 = vpop.permute.xlu0 %3230
      %3232 = vrot.lane.b32.xlu0 %v3216, 33
      %v3233 = vpop.permute.xlu0 %3232
      %3234 = vrot.lane.b32.xlu0 %v3217, 33
      %v3235 = vpop.permute.xlu0 %3234
      %v3236 = vsel %vm2328, %v3233, %v3235
      %v3237 = vsel %vm2328, %v3231, %v3233
      %v3238 = vsel %vm2328, %v3229, %v3231
      %v3239 = vsel %vm2328, %v3227, %v3229
      %v3240 = vsel %vm2328, %v3225, %v3227
      %v3241 = vsel %vm2328, %v3223, %v3225
      %v3242 = vsel %vm2328, %v3221, %v3223
      %v3243 = vsel %vm2328, %v3235, %v3221
      %v3244 = vsel %vm2353, %v3243, 0.0
      %v3245 = vsel %vm2354, %v3242, 0.0
      %v3246 = vsel %vm2355, %v3241, 0.0
      %v3247 = vsel %vm2356, %v3240, 0.0
      %v3248 = vsel %vm2357, %v3239, 0.0
      %v3249 = vsel %vm2358, %v3238, 0.0
      %v3250 = vsel %vm2359, %v3237, 0.0
      %v3251 = vsel %vm2360, %v3236, 0.0
      %3252 = vrot.lane.b32.xlu0 %v3210, 32
      %v3253 = vpop.permute.xlu0 %3252
      %3254 = vrot.lane.b32.xlu0 %v3211, 32
      %v3255 = vpop.permute.xlu0 %3254
      %3256 = vrot.lane.b32.xlu0 %v3212, 32
      %v3257 = vpop.permute.xlu0 %3256
      %3258 = vrot.lane.b32.xlu0 %v3213, 32
      %v3259 = vpop.permute.xlu0 %3258
      %3260 = vrot.lane.b32.xlu0 %v3214, 32
      %v3261 = vpop.permute.xlu0 %3260
      %3262 = vrot.lane.b32.xlu0 %v3215, 32
      %v3263 = vpop.permute.xlu0 %3262
      %3264 = vrot.lane.b32.xlu0 %v3216, 32
      %v3265 = vpop.permute.xlu0 %3264
      %3266 = vrot.lane.b32.xlu0 %v3217, 32
      %v3267 = vpop.permute.xlu0 %3266
      %v3268 = vsel %vm2409, %v3265, %v3267
      %v3269 = vsel %vm2409, %v3263, %v3265
      %v3270 = vsel %vm2409, %v3261, %v3263
      %v3271 = vsel %vm2409, %v3259, %v3261
      %v3272 = vsel %vm2409, %v3257, %v3259
      %v3273 = vsel %vm2409, %v3255, %v3257
      %v3274 = vsel %vm2409, %v3253, %v3255
      %v3275 = vsel %vm2409, %v3267, %v3253
      %v3276 = vsel %vm2434, %v3275, 0.0
      %v3277 = vsel %vm2435, %v3274, 0.0
      %v3278 = vsel %vm2436, %v3273, 0.0
      %v3279 = vsel %vm2437, %v3272, 0.0
      %v3280 = vsel %vm2438, %v3271, 0.0
      %v3281 = vsel %vm2439, %v3270, 0.0
      %v3282 = vsel %vm2440, %v3269, 0.0
      %v3283 = vsel %vm2441, %v3268, 0.0
      %3284 = vrot.lane.b32.xlu0 %v3210, 31
      %v3285 = vpop.permute.xlu0 %3284
      %3286 = vrot.lane.b32.xlu0 %v3211, 31
      %v3287 = vpop.permute.xlu0 %3286
      %3288 = vrot.lane.b32.xlu0 %v3212, 31
      %v3289 = vpop.permute.xlu0 %3288
      %3290 = vrot.lane.b32.xlu0 %v3213, 31
      %v3291 = vpop.permute.xlu0 %3290
      %3292 = vrot.lane.b32.xlu0 %v3214, 31
      %v3293 = vpop.permute.xlu0 %3292
      %3294 = vrot.lane.b32.xlu0 %v3215, 31
      %v3295 = vpop.permute.xlu0 %3294
      %3296 = vrot.lane.b32.xlu0 %v3216, 31
      %v3297 = vpop.permute.xlu0 %3296
      %3298 = vrot.lane.b32.xlu0 %v3217, 31
      %v3299 = vpop.permute.xlu0 %3298
      %v3300 = vsel %vm2490, %v3297, %v3299
      %v3301 = vsel %vm2490, %v3295, %v3297
      %v3302 = vsel %vm2490, %v3293, %v3295
      %v3303 = vsel %vm2490, %v3291, %v3293
      %v3304 = vsel %vm2490, %v3289, %v3291
      %v3305 = vsel %vm2490, %v3287, %v3289
      %v3306 = vsel %vm2490, %v3285, %v3287
      %v3307 = vsel %vm2490, %v3299, %v3285
      %v3308 = vsel %vm2515, %v3307, 0.0
      %v3309 = vsel %vm2516, %v3306, 0.0
      %v3310 = vsel %vm2517, %v3305, 0.0
      %v3311 = vsel %vm2518, %v3304, 0.0
      %v3312 = vsel %vm2519, %v3303, 0.0
      %v3313 = vsel %vm2520, %v3302, 0.0
      %v3314 = vsel %vm2521, %v3301, 0.0
      %v3315 = vsel %vm2522, %v3300, 0.0
      %3316 = vrot.lane.b32.xlu0 %v3210, 1
      %v3317 = vpop.permute.xlu0 %3316
      %3318 = vrot.lane.b32.xlu0 %v3211, 1
      %v3319 = vpop.permute.xlu0 %3318
      %3320 = vrot.lane.b32.xlu0 %v3212, 1
      %v3321 = vpop.permute.xlu0 %3320
      %3322 = vrot.lane.b32.xlu0 %v3213, 1
      %v3323 = vpop.permute.xlu0 %3322
      %3324 = vrot.lane.b32.xlu0 %v3214, 1
      %v3325 = vpop.permute.xlu0 %3324
      %3326 = vrot.lane.b32.xlu0 %v3215, 1
      %v3327 = vpop.permute.xlu0 %3326
      %3328 = vrot.lane.b32.xlu0 %v3216, 1
      %v3329 = vpop.permute.xlu0 %3328
      %3330 = vrot.lane.b32.xlu0 %v3217, 1
      %v3331 = vpop.permute.xlu0 %3330
      %v3332 = vsel %vm2571, %v3329, %v3331
      %v3333 = vsel %vm2571, %v3327, %v3329
      %v3334 = vsel %vm2571, %v3325, %v3327
      %v3335 = vsel %vm2571, %v3323, %v3325
      %v3336 = vsel %vm2571, %v3321, %v3323
      %v3337 = vsel %vm2571, %v3319, %v3321
      %v3338 = vsel %vm2571, %v3317, %v3319
      %v3339 = vsel %vm2571, %v3331, %v3317
      %v3340 = vsel %vm2596, %v3339, 0.0
      %v3341 = vsel %vm2597, %v3338, 0.0
      %v3342 = vsel %vm2598, %v3337, 0.0
      %v3343 = vsel %vm2599, %v3336, 0.0
      %v3344 = vsel %vm2600, %v3335, 0.0
      %v3345 = vsel %vm2601, %v3334, 0.0
      %v3346 = vsel %vm2602, %v3333, 0.0
      %v3347 = vsel %vm2603, %v3332, 0.0
      %3348 = vrot.lane.b32.xlu0 %v3210, 127
      %v3349 = vpop.permute.xlu0 %3348
      %3350 = vrot.lane.b32.xlu0 %v3211, 127
      %v3351 = vpop.permute.xlu0 %3350
      %3352 = vrot.lane.b32.xlu0 %v3212, 127
      %v3353 = vpop.permute.xlu0 %3352
      %3354 = vrot.lane.b32.xlu0 %v3213, 127
      %v3355 = vpop.permute.xlu0 %3354
      %3356 = vrot.lane.b32.xlu0 %v3214, 127
      %v3357 = vpop.permute.xlu0 %3356
      %3358 = vrot.lane.b32.xlu0 %v3215, 127
      %v3359 = vpop.permute.xlu0 %3358
      %3360 = vrot.lane.b32.xlu0 %v3216, 127
      %v3361 = vpop.permute.xlu0 %3360
      %3362 = vrot.lane.b32.xlu0 %v3217, 127
      %v3363 = vpop.permute.xlu0 %3362
      %v3364 = vsel %vm2652, %v3361, %v3363
      %v3365 = vsel %vm2652, %v3359, %v3361
      %v3366 = vsel %vm2652, %v3357, %v3359
      %v3367 = vsel %vm2652, %v3355, %v3357
      %v3368 = vsel %vm2652, %v3353, %v3355
      %v3369 = vsel %vm2652, %v3351, %v3353
      %v3370 = vsel %vm2652, %v3349, %v3351
      %v3371 = vsel %vm2652, %v3363, %v3349
      %v3372 = vsel %vm2677, %v3370, 0.0
      %v3373 = vsel %vm2678, %v3369, 0.0
      %v3374 = vsel %vm2679, %v3368, 0.0
      %v3375 = vsel %vm2680, %v3367, 0.0
      %v3376 = vsel %vm2681, %v3366, 0.0
      %v3377 = vsel %vm2682, %v3365, 0.0
      %v3378 = vsel %vm2683, %v3364, 0.0
      %v3379 = vsel %vm2684, %v3371, 0.0
      %3380 = vrot.lane.b32.xlu0 %v3210, 97
      %v3381 = vpop.permute.xlu0 %3380
      %3382 = vrot.lane.b32.xlu0 %v3211, 97
      %v3383 = vpop.permute.xlu0 %3382
      %3384 = vrot.lane.b32.xlu0 %v3212, 97
      %v3385 = vpop.permute.xlu0 %3384
      %3386 = vrot.lane.b32.xlu0 %v3213, 97
      %v3387 = vpop.permute.xlu0 %3386
      %3388 = vrot.lane.b32.xlu0 %v3214, 97
      %v3389 = vpop.permute.xlu0 %3388
      %3390 = vrot.lane.b32.xlu0 %v3215, 97
      %v3391 = vpop.permute.xlu0 %3390
      %3392 = vrot.lane.b32.xlu0 %v3216, 97
      %v3393 = vpop.permute.xlu0 %3392
      %3394 = vrot.lane.b32.xlu0 %v3217, 97
      %v3395 = vpop.permute.xlu0 %3394
      %v3396 = vsel %vm2733, %v3393, %v3395
      %v3397 = vsel %vm2733, %v3391, %v3393
      %v3398 = vsel %vm2733, %v3389, %v3391
      %v3399 = vsel %vm2733, %v3387, %v3389
      %v3400 = vsel %vm2733, %v3385, %v3387
      %v3401 = vsel %vm2733, %v3383, %v3385
      %v3402 = vsel %vm2733, %v3381, %v3383
      %v3403 = vsel %vm2733, %v3395, %v3381
      %v3404 = vsel %vm2758, %v3402, 0.0
      %v3405 = vsel %vm2759, %v3401, 0.0
      %v3406 = vsel %vm2760, %v3400, 0.0
      %v3407 = vsel %vm2761, %v3399, 0.0
      %v3408 = vsel %vm2762, %v3398, 0.0
      %v3409 = vsel %vm2763, %v3397, 0.0
      %v3410 = vsel %vm2764, %v3396, 0.0
      %v3411 = vsel %vm2765, %v3403, 0.0
      %3412 = vrot.lane.b32.xlu0 %v3210, 96
      %v3413 = vpop.permute.xlu0 %3412
      %3414 = vrot.lane.b32.xlu0 %v3211, 96
      %v3415 = vpop.permute.xlu0 %3414
      %3416 = vrot.lane.b32.xlu0 %v3212, 96
      %v3417 = vpop.permute.xlu0 %3416
      %3418 = vrot.lane.b32.xlu0 %v3213, 96
      %v3419 = vpop.permute.xlu0 %3418
      %3420 = vrot.lane.b32.xlu0 %v3214, 96
      %v3421 = vpop.permute.xlu0 %3420
      %3422 = vrot.lane.b32.xlu0 %v3215, 96
      %v3423 = vpop.permute.xlu0 %3422
      %3424 = vrot.lane.b32.xlu0 %v3216, 96
      %v3425 = vpop.permute.xlu0 %3424
      %3426 = vrot.lane.b32.xlu0 %v3217, 96
      %v3427 = vpop.permute.xlu0 %3426
      %v3428 = vsel %vm2814, %v3425, %v3427
      %v3429 = vsel %vm2814, %v3423, %v3425
      %v3430 = vsel %vm2814, %v3421, %v3423
      %v3431 = vsel %vm2814, %v3419, %v3421
      %v3432 = vsel %vm2814, %v3417, %v3419
      %v3433 = vsel %vm2814, %v3415, %v3417
      %v3434 = vsel %vm2814, %v3413, %v3415
      %v3435 = vsel %vm2814, %v3427, %v3413
      %v3436 = vsel %vm2839, %v3434, 0.0
      %v3437 = vsel %vm2840, %v3433, 0.0
      %v3438 = vsel %vm2841, %v3432, 0.0
      %v3439 = vsel %vm2842, %v3431, 0.0
      %v3440 = vsel %vm2843, %v3430, 0.0
      %v3441 = vsel %vm2844, %v3429, 0.0
      %v3442 = vsel %vm2845, %v3428, 0.0
      %v3443 = vsel %vm2846, %v3435, 0.0
      %3444 = vrot.lane.b32.xlu0 %v3210, 95
      %v3445 = vpop.permute.xlu0 %3444
      %3446 = vrot.lane.b32.xlu0 %v3211, 95
      %v3447 = vpop.permute.xlu0 %3446
      %3448 = vrot.lane.b32.xlu0 %v3212, 95
      %v3449 = vpop.permute.xlu0 %3448
      %3450 = vrot.lane.b32.xlu0 %v3213, 95
      %v3451 = vpop.permute.xlu0 %3450
      %3452 = vrot.lane.b32.xlu0 %v3214, 95
      %v3453 = vpop.permute.xlu0 %3452
      %3454 = vrot.lane.b32.xlu0 %v3215, 95
      %v3455 = vpop.permute.xlu0 %3454
      %3456 = vrot.lane.b32.xlu0 %v3216, 95
      %v3457 = vpop.permute.xlu0 %3456
      %3458 = vrot.lane.b32.xlu0 %v3217, 95
      %v3459 = vpop.permute.xlu0 %3458
      %v3460 = vsel %vm2895, %v3457, %v3459
      %v3461 = vsel %vm2895, %v3455, %v3457
      %v3462 = vsel %vm2895, %v3453, %v3455
      %v3463 = vsel %vm2895, %v3451, %v3453
      %v3464 = vsel %vm2895, %v3449, %v3451
      %v3465 = vsel %vm2895, %v3447, %v3449
      %v3466 = vsel %vm2895, %v3445, %v3447
      %v3467 = vsel %vm2895, %v3459, %v3445
      %v3468 = vsel %vm2920, %v3466, 0.0
      %v3469 = vsel %vm2921, %v3465, 0.0
      %v3470 = vsel %vm2922, %v3464, 0.0
      %v3471 = vsel %vm2923, %v3463, 0.0
      %v3472 = vsel %vm2924, %v3462, 0.0
      %v3473 = vsel %vm2925, %v3461, 0.0
      %v3474 = vsel %vm2926, %v3460, 0.0
      %v3475 = vsel %vm2927, %v3467, 0.0
      %v3476 = vpack.c.bf16 %v3276, %v3244
      %v3477 = vpack.c.bf16 %v3277, %v3245
      %v3478 = vpack.c.bf16 %v3278, %v3246
      %v3479 = vpack.c.bf16 %v3279, %v3247
      %v3480 = vpack.c.bf16 %v3280, %v3248
      %v3481 = vpack.c.bf16 %v3281, %v3249
      %v3482 = vpack.c.bf16 %v3282, %v3250
      %v3483 = vpack.c.bf16 %v3283, %v3251
      %v3484 = vpack.c.bf16 %v3340, %v3308
      %v3485 = vpack.c.bf16 %v3341, %v3309
      %v3486 = vpack.c.bf16 %v3342, %v3310
      %v3487 = vpack.c.bf16 %v3343, %v3311
      %v3488 = vpack.c.bf16 %v3344, %v3312
      %v3489 = vpack.c.bf16 %v3345, %v3313
      %v3490 = vpack.c.bf16 %v3346, %v3314
      %v3491 = vpack.c.bf16 %v3347, %v3315
      %v3492 = vpack.c.bf16 %v3372, %v3210
      %v3493 = vpack.c.bf16 %v3373, %v3211
      %v3494 = vpack.c.bf16 %v3374, %v3212
      %v3495 = vpack.c.bf16 %v3375, %v3213
      %v3496 = vpack.c.bf16 %v3376, %v3214
      %v3497 = vpack.c.bf16 %v3377, %v3215
      %v3498 = vpack.c.bf16 %v3378, %v3216
      %v3499 = vpack.c.bf16 %v3379, %v3217
      %v3500 = vpack.c.bf16 %v3436, %v3404
      %v3501 = vpack.c.bf16 %v3437, %v3405
      %v3502 = vpack.c.bf16 %v3438, %v3406
      %v3503 = vpack.c.bf16 %v3439, %v3407
      %v3504 = vpack.c.bf16 %v3440, %v3408
      %v3505 = vpack.c.bf16 %v3441, %v3409
      %v3506 = vpack.c.bf16 %v3442, %v3410
      %v3507 = vpack.c.bf16 %v3443, %v3411
      %v3508 = vpack.c.bf16 %v3468, %v3468
      %v3509 = vpack.c.bf16 %v3469, %v3469
      %v3510 = vpack.c.bf16 %v3470, %v3470
      %v3511 = vpack.c.bf16 %v3471, %v3471
      %v3512 = vpack.c.bf16 %v3472, %v3472
      %v3513 = vpack.c.bf16 %v3473, %v3473
      %v3514 = vpack.c.bf16 %v3474, %v3474
      %v3515 = vpack.c.bf16 %v3475, %v3475
      %3517 = vset.pattern.permute.xlu0 0
      %3518 = vperm.xlu0 %3517, %v3219
      %v3519 = vpop.permute.xlu0 %3518
      %v3522 = vsel %vm675, %v3218, 0
      %v3525 = vsel %vm574, %v3508, 0
      %v3528 = vsel %vm574, %v3509, 0
      %v3531 = vsel %vm574, %v3510, 0
      %v3534 = vsel %vm574, %v3511, 0
      %v3537 = vsel %vm574, %v3512, 0
      %v3540 = vsel %vm574, %v3513, 0
      %v3543 = vsel %vm574, %v3514, 0
      %v3546 = vsel %vm574, %v3515, 0
      %3548 = vmatprep.subr.bf16.mxu0 0
      %3549 = vmatpush1.bf16.msra.mxu0 0
      %3550 = vmatprep.subr.bf16.mxu0 0
      %3551 = vmatpush1.bf16.msra.mxu0 0
      %3552 = vmatprep.subr.bf16.mxu0 0
      %3553 = vmatpush1.bf16.msra.mxu0 0
      %3554 = vmatprep.subr.bf16.mxu0 %v3528
      %3555 = vmatpush1.bf16.msra.mxu0 %v3525
      %3556 = vmatprep.subr.bf16.mxu0 %v3501
      %3557 = vmatpush1.bf16.msra.mxu0 %v3500
      %3558 = vmatprep.subr.bf16.mxu0 %v3493
      %3559 = vmatpush1.bf16.msra.mxu0 %v3492
      %3560 = vmatprep.subr.bf16.mxu0 %v3485
      %3561 = vmatpush1.bf16.msra.mxu0 %v3484
      %3562 = vmatprep.subr.bf16.mxu0 %v3477
      %3563 = vmatpush1.bf16.msra.mxu0 %v3476
      %3564 = vmatprep.subr.bf16.mxu0 0
      %3565 = vmatpush2.bf16.msra.mxu0 0
      %3566 = vmatprep.subr.bf16.mxu0 0
      %3567 = vmatpush2.bf16.msra.mxu0 0
      %3568 = vmatprep.subr.bf16.mxu0 0
      %3569 = vmatpush2.bf16.msra.mxu0 0
      %3570 = vmatprep.subr.bf16.mxu0 0
      %3571 = vmatpush2.bf16.msra.mxu0 0
      %3572 = vmatprep.subr.bf16.mxu0 0
      %3573 = vmatpush2.bf16.msra.mxu0 0
      %3574 = vmatprep.subr.bf16.mxu0 0
      %3575 = vmatpush2.bf16.msra.mxu0 0
      %3576 = vmatprep.subr.bf16.mxu0 0
      %3577 = vmatpush2.bf16.msra.mxu0 0
      %3578 = vmatprep.subr.bf16.mxu0 0
      %3579 = vmatpush2.bf16.msra.mxu0 0
      %3580 = vmatprep.mubr.bf16.mxu0 0
      %3581 = vmatmul.mubr.bf16.gmra.mxu0 %v3522
      %v3582 = vpop.f32.mrf.mxu0
      %v3583 = vadd.f32 %v3519, %v3582
      %v3584 = vpop.f32.mrf.mxu0
      %v3585 = vadd.f32 %v3519, %v3584
      %v3586 = vpop.f32.mrf.mxu0
      %v3587 = vpop.f32.mrf.mxu0
      %3588 = vdwg.mxu0
      %3589 = vmatprep.subr.bf16.mxu0 0
      %3590 = vmatpush1.bf16.msra.mxu0 0
      %3591 = vmatprep.subr.bf16.mxu0 0
      %3592 = vmatpush1.bf16.msra.mxu0 0
      %3593 = vmatprep.subr.bf16.mxu0 0
      %3594 = vmatpush1.bf16.msra.mxu0 0
      %3595 = vmatprep.subr.bf16.mxu0 %v3534
      %3596 = vmatpush1.bf16.msra.mxu0 %v3531
      %3597 = vmatprep.subr.bf16.mxu0 %v3503
      %3598 = vmatpush1.bf16.msra.mxu0 %v3502
      %3599 = vmatprep.subr.bf16.mxu0 %v3495
      %3600 = vmatpush1.bf16.msra.mxu0 %v3494
      %3601 = vmatprep.subr.bf16.mxu0 %v3487
      %3602 = vmatpush1.bf16.msra.mxu0 %v3486
      %3603 = vmatprep.subr.bf16.mxu0 %v3479
      %3604 = vmatpush1.bf16.msra.mxu0 %v3478
      %3605 = vmatprep.subr.bf16.mxu0 0
      %3606 = vmatpush2.bf16.msra.mxu0 0
      %3607 = vmatprep.subr.bf16.mxu0 0
      %3608 = vmatpush2.bf16.msra.mxu0 0
      %3609 = vmatprep.subr.bf16.mxu0 0
      %3610 = vmatpush2.bf16.msra.mxu0 0
      %3611 = vmatprep.subr.bf16.mxu0 0
      %3612 = vmatpush2.bf16.msra.mxu0 0
      %3613 = vmatprep.subr.bf16.mxu0 0
      %3614 = vmatpush2.bf16.msra.mxu0 0
      %3615 = vmatprep.subr.bf16.mxu0 0
      %3616 = vmatpush2.bf16.msra.mxu0 0
      %3617 = vmatprep.subr.bf16.mxu0 0
      %3618 = vmatpush2.bf16.msra.mxu0 0
      %3619 = vmatprep.subr.bf16.mxu0 0
      %3620 = vmatpush2.bf16.msra.mxu0 0
      %3621 = vmatprep.mubr.bf16.mxu0 0
      %3622 = vmatmul.mubr.bf16.gmra.mxu0 %v3522
      %v3623 = vpop.f32.mrf.mxu0
      %v3624 = vadd.f32 %v3519, %v3623
      %v3625 = vpop.f32.mrf.mxu0
      %v3626 = vadd.f32 %v3519, %v3625
      %v3627 = vpop.f32.mrf.mxu0
      %v3628 = vpop.f32.mrf.mxu0
      %3629 = vdwg.mxu0
      %3630 = vmatprep.subr.bf16.mxu0 0
      %3631 = vmatpush1.bf16.msra.mxu0 0
      %3632 = vmatprep.subr.bf16.mxu0 0
      %3633 = vmatpush1.bf16.msra.mxu0 0
      %3634 = vmatprep.subr.bf16.mxu0 0
      %3635 = vmatpush1.bf16.msra.mxu0 0
      %3636 = vmatprep.subr.bf16.mxu0 %v3540
      %3637 = vmatpush1.bf16.msra.mxu0 %v3537
      %3638 = vmatprep.subr.bf16.mxu0 %v3505
      %3639 = vmatpush1.bf16.msra.mxu0 %v3504
      %3640 = vmatprep.subr.bf16.mxu0 %v3497
      %3641 = vmatpush1.bf16.msra.mxu0 %v3496
      %3642 = vmatprep.subr.bf16.mxu0 %v3489
      %3643 = vmatpush1.bf16.msra.mxu0 %v3488
      %3644 = vmatprep.subr.bf16.mxu0 %v3481
      %3645 = vmatpush1.bf16.msra.mxu0 %v3480
      %3646 = vmatprep.subr.bf16.mxu0 0
      %3647 = vmatpush2.bf16.msra.mxu0 0
      %3648 = vmatprep.subr.bf16.mxu0 0
      %3649 = vmatpush2.bf16.msra.mxu0 0
      %3650 = vmatprep.subr.bf16.mxu0 0
      %3651 = vmatpush2.bf16.msra.mxu0 0
      %3652 = vmatprep.subr.bf16.mxu0 0
      %3653 = vmatpush2.bf16.msra.mxu0 0
      %3654 = vmatprep.subr.bf16.mxu0 0
      %3655 = vmatpush2.bf16.msra.mxu0 0
      %3656 = vmatprep.subr.bf16.mxu0 0
      %3657 = vmatpush2.bf16.msra.mxu0 0
      %3658 = vmatprep.subr.bf16.mxu0 0
      %3659 = vmatpush2.bf16.msra.mxu0 0
      %3660 = vmatprep.subr.bf16.mxu0 0
      %3661 = vmatpush2.bf16.msra.mxu0 0
      %3662 = vmatprep.mubr.bf16.mxu0 0
      %3663 = vmatmul.mubr.bf16.gmra.mxu0 %v3522
      %v3664 = vpop.f32.mrf.mxu0
      %v3665 = vadd.f32 %v3519, %v3664
      %v3666 = vpop.f32.mrf.mxu0
      %v3667 = vadd.f32 %v3519, %v3666
      %v3668 = vpop.f32.mrf.mxu0
      %v3669 = vpop.f32.mrf.mxu0
      %3670 = vdwg.mxu0
      %3671 = vmatprep.subr.bf16.mxu0 0
      %3672 = vmatpush1.bf16.msra.mxu0 0
      %3673 = vmatprep.subr.bf16.mxu0 0
      %3674 = vmatpush1.bf16.msra.mxu0 0
      %3675 = vmatprep.subr.bf16.mxu0 0
      %3676 = vmatpush1.bf16.msra.mxu0 0
      %3677 = vmatprep.subr.bf16.mxu0 %v3546
      %3678 = vmatpush1.bf16.msra.mxu0 %v3543
      %3679 = vmatprep.subr.bf16.mxu0 %v3507
      %3680 = vmatpush1.bf16.msra.mxu0 %v3506
      %3681 = vmatprep.subr.bf16.mxu0 %v3499
      %3682 = vmatpush1.bf16.msra.mxu0 %v3498
      %3683 = vmatprep.subr.bf16.mxu0 %v3491
      %3684 = vmatpush1.bf16.msra.mxu0 %v3490
      %3685 = vmatprep.subr.bf16.mxu0 %v3483
      %3686 = vmatpush1.bf16.msra.mxu0 %v3482
      %3687 = vmatprep.subr.bf16.mxu0 0
      %3688 = vmatpush2.bf16.msra.mxu0 0
      %3689 = vmatprep.subr.bf16.mxu0 0
      %3690 = vmatpush2.bf16.msra.mxu0 0
      %3691 = vmatprep.subr.bf16.mxu0 0
      %3692 = vmatpush2.bf16.msra.mxu0 0
      %3693 = vmatprep.subr.bf16.mxu0 0
      %3694 = vmatpush2.bf16.msra.mxu0 0
      %3695 = vmatprep.subr.bf16.mxu0 0
      %3696 = vmatpush2.bf16.msra.mxu0 0
      %3697 = vmatprep.subr.bf16.mxu0 0
      %3698 = vmatpush2.bf16.msra.mxu0 0
      %3699 = vmatprep.subr.bf16.mxu0 0
      %3700 = vmatpush2.bf16.msra.mxu0 0
      %3701 = vmatprep.subr.bf16.mxu0 0
      %3702 = vmatpush2.bf16.msra.mxu0 0
      %3703 = vmatprep.mubr.bf16.mxu0 0
      %3704 = vmatmul.mubr.bf16.gmra.mxu0 %v3522
      %v3705 = vpop.f32.mrf.mxu0
      %v3706 = vadd.f32 %v3519, %v3705
      %v3707 = vpop.f32.mrf.mxu0
      %v3708 = vadd.f32 %v3519, %v3707
      %v3709 = vpop.f32.mrf.mxu0
      %v3710 = vpop.f32.mrf.mxu0
      %3711 = vdwg.mxu0
      %vm3712 = vcmp.gt.f32.partialorder %v3583, 0.0
      %vm3713 = vcmp.gt.f32.partialorder %v3585, 0.0
      %vm3714 = vcmp.gt.f32.partialorder %v3624, 0.0
      %vm3715 = vcmp.gt.f32.partialorder %v3626, 0.0
      %vm3716 = vcmp.gt.f32.partialorder %v3665, 0.0
      %vm3717 = vcmp.gt.f32.partialorder %v3667, 0.0
      %vm3718 = vcmp.gt.f32.partialorder %v3706, 0.0
      %vm3719 = vcmp.gt.f32.partialorder %v3708, 0.0
      %v3720 = vmul.f32 %v3583, 0.01
      %v3721 = vmul.f32 %v3585, 0.01
      %v3722 = vmul.f32 %v3624, 0.01
      %v3723 = vmul.f32 %v3626, 0.01
      %v3724 = vmul.f32 %v3665, 0.01
      %v3725 = vmul.f32 %v3667, 0.01
      %v3726 = vmul.f32 %v3706, 0.01
      %v3727 = vmul.f32 %v3708, 0.01
      %v3728 = vsel %vm3712, %v3583, %v3720
      %v3729 = vsel %vm3713, %v3585, %v3721
      %v3730 = vsel %vm3714, %v3624, %v3722
      %v3731 = vsel %vm3715, %v3626, %v3723
      %v3732 = vsel %vm3716, %v3665, %v3724
      %v3733 = vsel %vm3717, %v3667, %v3725
      %v3734 = vsel %vm3718, %v3706, %v3726
      %v3735 = vsel %vm3719, %v3708, %v3727
      %3736 = vst [vmem:[%s504] sm:$0xff] %v3728
      %3737 = vst [vmem:[%s504 + $0x8] sm:$0xff] %v3729
      %3738 = vst [vmem:[%s504 + $0x10] sm:$0xff] %v3730
      %3739 = vst [vmem:[%s504 + $0x18] sm:$0xff] %v3731
      %3740 = vst [vmem:[%s504 + $0x20] sm:$0xff] %v3732
      %3741 = vst [vmem:[%s504 + $0x28] sm:$0xff] %v3733
      %3742 = vst [vmem:[%s504 + $0x30] sm:$0xff] %v3734
      %3743 = vst [vmem:[%s504 + $0x38] sm:$0xff] %v3735
      %p3744 = scmp.lt.s32.totalorder %s25, 1
      %s3745 = scalar_select %p3744, %s25, 1
      %s3746 = smul.addr %s3745, 8
      %s3747 = smul.addr %s3746, 8
      %s3748 = scalar_lea.vmem %s14, %s3747
      // Predicated region
      $region77: #{upsample_data_block_forward.1} parent=75 // pred_check
        %p3749 = pneg %p352
      $region78: #{upsample_data_block_forward.1} parent=75 // pred_check_branch
        %3751 = sbr.rel (%p3749) target = $region80
      $region79: #{upsample_data_block_forward.1} parent=75 // pred_region
        _
      $region80: #{upsample_data_block_forward.1} parent=75 // pred_fallthru
        _
    $region76: #{upsample_data_block_forward.1} parent=5 // pred_fallthru
      _
    %p3752 = scmp.le.s32.totalorder 2, %s20
    // Predicated region
    $region81: #{upsample_data_block_forward.1} parent=5 // pred_check
      %p3753 = pneg %p3752
    $region82: #{upsample_data_block_forward.1} parent=5 // pred_check_branch
      %3755 = sbr.rel (%p3753) target = $region84
    $region83: #{upsample_data_block_forward.1} parent=5 // pred_region
      %s3756 = ssub.s32 %s20, 2
      // Predicated region
      $region85: #{upsample_data_block_forward.1} parent=83 // pred_check
        %p3757 = pneg %p358
      $region86: #{upsample_data_block_forward.1} parent=83 // pred_check_branch
        %3759 = sbr.rel (%p3757) target = $region88
      $region87: #{upsample_data_block_forward.1} parent=83 // pred_region
        %p3760 = scmp.lt.s32.totalorder %s26, 1
        %s3761 = scalar_select %p3760, %s26, 1
        %s3762 = smul.addr %s3761, 8
        %s3763 = smul.addr %s3762, 8
        %s3764 = scalar_lea.vmem %s14, %s3763
      $region88: #{upsample_data_block_forward.1} parent=83 // pred_fallthru
        _
    $region84: #{upsample_data_block_forward.1} parent=5 // pred_fallthru
      _
  $region6: #{upsample_data_block_forward.1} parent=0 // loop_footer
    %s24 = sadd.s32 1, %s20
  $region7: #{upsample_data_block_forward.1} parent=0 // loop_footer_branch
    %19 = sbr.rel target = $region3
  $region8: #{upsample_data_block_forward.1} parent=0 // loop_exit
    _

</llo_original>
